<compile_context>
chip_gen: v5e
topology: v5e:2x2
jax: 0.10.0
libtpu: 0.0.40
codegen_flags: <defaults>
</compile_context>

<pallas_src>
import jax
import jax.numpy as jnp
from jax.experimental import pallas as pl
from jax.experimental.pallas import tpu as pltpu

K = 9     # kernel size
P = 4     # 'same' padding
SEG = 32  # lanes per (batch, channel) segment; requires W + K - 2 < SEG


def _dwconv9x9_kernel(x_ref, w_ref, o_ref):
    """Depthwise 9x9 'same' conv, all (batch, channel) planes lane-packed.

    x_ref: (H + 2P, CWP) f32 -- packed, zero-padded input. Segment s = n*C + c
           occupies lanes [s*SEG, (s+1)*SEG); padded input column p of that
           plane sits at segment lane p; remaining lanes are zero.
           CWP >= CW + K - 1 and is lane-group (128) aligned.
    w_ref: (81, H, CW) f32 -- per-tap weights, pre-broadcast over H (sublanes)
           and over each 32-lane segment, so each tap is a plain vector load.
    o_ref: (H, CW) f32 -- packed output; valid data for segment s lives in
           lanes [s*SEG, s*SEG + W).
    """
    H, CW = o_ref.shape

    # 4 independent partial accumulators -> no 81-deep serial VALU chain.
    accs = [jnp.zeros((H, CW), jnp.float32) for _ in range(4)]

    for kh in range(K):
        # One sublane-shifted load per kh; the 9 kw shifts are lane slices of
        # this register-resident slab.
        rows = x_ref[kh:kh + H, :]
        for kw in range(K):
            t = kh * K + kw
            accs[t % 4] = accs[t % 4] + rows[:, kw:kw + CW] * w_ref[t]

    acc = (accs[0] + accs[1]) + (accs[2] + accs[3])
    # Single unmasked lane-dense store (4 full vregs).
    o_ref[...] = acc.astype(o_ref.dtype)


def spatial_message_passing(x, weight, direction="horizontal"):
    """x: (N, C, H, W) float32; weight: (C, 1, 9, 9) float32 (PyTorch OIHW, groups=C)."""
    N, C, H, W = x.shape
    assert weight.shape == (C, 1, K, K), weight.shape
    assert W + 2 * P <= SEG, "padded row must fit in one segment"
    assert W + K - 2 < SEG, "segment gap too small -> cross-channel bleed"

    Hp = H + 2 * P
    CW = N * C * SEG
    CWP = ((CW + K - 1 + 127) // 128) * 128   # lane-group aligned packed width

    # ---- XLA-side packing (tiny, fuses upstream) --------------------------
    # Spatial zero padding + pad each row segment out to SEG lanes.
    xp = jnp.pad(x.astype(jnp.float32),
                 ((0, 0), (0, 0), (P, P), (P, SEG - W - P)))       # (N, C, Hp, SEG)
    # All (n, c) planes side by side on the lane axis: segment s = n*C + c.
    xp = jnp.transpose(xp, (2, 0, 1, 3)).reshape(Hp, CW)           # (Hp, CW)
    xp = jnp.pad(xp, ((0, 0), (0, CWP - CW)))                      # (Hp, CWP)

    # Pre-broadcast per-tap weight table (81, H, CW): lane segment s carries
    # weight[s % C]; broadcast over H so the kernel does zero broadcasts.
    w_taps = weight.reshape(C, K * K).T.astype(jnp.float32)        # (81, C)
    wrow = jnp.tile(jnp.repeat(w_taps, SEG, axis=1), (1, N))       # (81, CW)
    wtab = jnp.broadcast_to(wrow[:, None, :], (K * K, H, CW))      # (81, H, CW)

    out_packed = pl.pallas_call(
        _dwconv9x9_kernel,
        out_shape=jax.ShapeDtypeStruct((H, CW), jnp.float32),
        in_specs=[pl.BlockSpec(memory_space=pltpu.MemorySpace.VMEM),
                  pl.BlockSpec(memory_space=pltpu.MemorySpace.VMEM)],
        out_specs=pl.BlockSpec(memory_space=pltpu.MemorySpace.VMEM),
    )(xp, wtab)

    # ---- XLA-side unpacking ------------------------------------------------
    out = out_packed.reshape(H, N, C, SEG)[:, :, :, :W]            # (H, N, C, W)
    if direction == "horizontal":
        # module does conv then permute(0, 2, 3, 1): NCHW -> NHWC
        return jnp.transpose(out, (1, 0, 3, 2)).astype(x.dtype)    # (N, H, W, C)
    elif direction == "vertical":
        return jnp.transpose(out, (1, 2, 0, 3)).astype(x.dtype)    # (N, C, H, W)
    else:
        raise ValueError(direction)


if __name__ == "__main__":
    key = jax.random.PRNGKey(0)
    kx, kw_key = jax.random.split(key)

    N, C, H, W = 2, 4, 16, 16
    x = jax.random.normal(kx, (N, C, H, W), dtype=jnp.float32)
    # deterministic synthetic depthwise conv weights, PyTorch OIHW (C, 1, 9, 9)
    weight = jax.random.normal(kw_key, (C, 1, K, K), dtype=jnp.float32) * 0.1

    # Reference: XLA grouped conv (same semantics as nn.Conv2d(groups=C, bias=False)).
    ref_nchw = jax.lax.conv_general_dilated(
        x, weight,
        window_strides=(1, 1),
        padding=((P, P), (P, P)),
        dimension_numbers=("NCHW", "OIHW", "NCHW"),
        feature_group_count=C,
    )

    out_h = jax.block_until_ready(spatial_message_passing(x, weight, "horizontal"))
    assert out_h.shape == (N, H, W, C), out_h.shape
    assert jnp.allclose(out_h, jnp.transpose(ref_nchw, (0, 2, 3, 1)),
                        atol=1e-4, rtol=1e-4), "horizontal mismatch vs reference conv"

    out_v = jax.block_until_ready(spatial_message_passing(x, weight, "vertical"))
    assert out_v.shape == (N, C, H, W), out_v.shape
    assert jnp.allclose(out_v, ref_nchw, atol=1e-4, rtol=1e-4), \
        "vertical mismatch vs reference conv"

    print("KERNEL_OK")
</pallas_src>

<mosaic_0001>
module attributes {stable_mosaic.version = 11 : i64} {
  func.func @_dwconv9x9_kernel(%arg0: memref<24x384xf32, #tpu.memory_space<vmem>>, %arg1: memref<81x16x256xf32, #tpu.memory_space<vmem>>, %arg2: memref<16x256xf32, #tpu.memory_space<vmem>>) attributes {dimension_semantics = [], scalar_prefetch = 0 : i64, scratch_operands = 0 : i64, tpu.core_type = #tpu.core_type<tc>} {
    %cst = arith.constant 0.000000e+00 : f32
    %0 = vector.broadcast %cst : f32 to vector<16x256xf32>
    %cst_0 = arith.constant 0.000000e+00 : f32
    %1 = vector.broadcast %cst_0 : f32 to vector<16x256xf32>
    %cst_1 = arith.constant 0.000000e+00 : f32
    %2 = vector.broadcast %cst_1 : f32 to vector<16x256xf32>
    %cst_2 = arith.constant 0.000000e+00 : f32
    %3 = vector.broadcast %cst_2 : f32 to vector<16x256xf32>
    %c0 = arith.constant 0 : index
    %c0_3 = arith.constant 0 : index
    %4 = vector.load %arg0[%c0, %c0_3] : memref<24x384xf32, #tpu.memory_space<vmem>>, vector<16x384xf32>
    %5 = vector.extract_strided_slice %4 {offsets = [0, 0], sizes = [16, 256], strides = [1, 1]} : vector<16x384xf32> to vector<16x256xf32>
    %c0_4 = arith.constant 0 : index
    %c0_5 = arith.constant 0 : index
    %c0_6 = arith.constant 0 : index
    %6 = vector.load %arg1[%c0_4, %c0_5, %c0_6] : memref<81x16x256xf32, #tpu.memory_space<vmem>>, vector<1x16x256xf32>
    %7 = vector.shape_cast %6 : vector<1x16x256xf32> to vector<16x256xf32>
    %8 = arith.mulf %5, %7 : vector<16x256xf32>
    %9 = arith.addf %0, %8 : vector<16x256xf32>
    %10 = vector.extract_strided_slice %4 {offsets = [0, 1], sizes = [16, 256], strides = [1, 1]} : vector<16x384xf32> to vector<16x256xf32>
    %c1 = arith.constant 1 : index
    %c0_7 = arith.constant 0 : index
    %c0_8 = arith.constant 0 : index
    %11 = vector.load %arg1[%c1, %c0_7, %c0_8] : memref<81x16x256xf32, #tpu.memory_space<vmem>>, vector<1x16x256xf32>
    %12 = vector.shape_cast %11 : vector<1x16x256xf32> to vector<16x256xf32>
    %13 = arith.mulf %10, %12 : vector<16x256xf32>
    %14 = arith.addf %1, %13 : vector<16x256xf32>
    %15 = vector.extract_strided_slice %4 {offsets = [0, 2], sizes = [16, 256], strides = [1, 1]} : vector<16x384xf32> to vector<16x256xf32>
    %c2 = arith.constant 2 : index
    %c0_9 = arith.constant 0 : index
    %c0_10 = arith.constant 0 : index
    %16 = vector.load %arg1[%c2, %c0_9, %c0_10] : memref<81x16x256xf32, #tpu.memory_space<vmem>>, vector<1x16x256xf32>
    %17 = vector.shape_cast %16 : vector<1x16x256xf32> to vector<16x256xf32>
    %18 = arith.mulf %15, %17 : vector<16x256xf32>
    %19 = arith.addf %2, %18 : vector<16x256xf32>
    %20 = vector.extract_strided_slice %4 {offsets = [0, 3], sizes = [16, 256], strides = [1, 1]} : vector<16x384xf32> to vector<16x256xf32>
    %c3 = arith.constant 3 : index
    %c0_11 = arith.constant 0 : index
    %c0_12 = arith.constant 0 : index
    %21 = vector.load %arg1[%c3, %c0_11, %c0_12] : memref<81x16x256xf32, #tpu.memory_space<vmem>>, vector<1x16x256xf32>
    %22 = vector.shape_cast %21 : vector<1x16x256xf32> to vector<16x256xf32>
    %23 = arith.mulf %20, %22 : vector<16x256xf32>
    %24 = arith.addf %3, %23 : vector<16x256xf32>
    %25 = vector.extract_strided_slice %4 {offsets = [0, 4], sizes = [16, 256], strides = [1, 1]} : vector<16x384xf32> to vector<16x256xf32>
    %c4 = arith.constant 4 : index
    %c0_13 = arith.constant 0 : index
    %c0_14 = arith.constant 0 : index
    %26 = vector.load %arg1[%c4, %c0_13, %c0_14] : memref<81x16x256xf32, #tpu.memory_space<vmem>>, vector<1x16x256xf32>
    %27 = vector.shape_cast %26 : vector<1x16x256xf32> to vector<16x256xf32>
    %28 = arith.mulf %25, %27 : vector<16x256xf32>
    %29 = arith.addf %9, %28 : vector<16x256xf32>
    %30 = vector.extract_strided_slice %4 {offsets = [0, 5], sizes = [16, 256], strides = [1, 1]} : vector<16x384xf32> to vector<16x256xf32>
    %c5 = arith.constant 5 : index
    %c0_15 = arith.constant 0 : index
    %c0_16 = arith.constant 0 : index
    %31 = vector.load %arg1[%c5, %c0_15, %c0_16] : memref<81x16x256xf32, #tpu.memory_space<vmem>>, vector<1x16x256xf32>
    %32 = vector.shape_cast %31 : vector<1x16x256xf32> to vector<16x256xf32>
    %33 = arith.mulf %30, %32 : vector<16x256xf32>
    %34 = arith.addf %14, %33 : vector<16x256xf32>
    %35 = vector.extract_strided_slice %4 {offsets = [0, 6], sizes = [16, 256], strides = [1, 1]} : vector<16x384xf32> to vector<16x256xf32>
    %c6 = arith.constant 6 : index
    %c0_17 = arith.constant 0 : index
    %c0_18 = arith.constant 0 : index
    %36 = vector.load %arg1[%c6, %c0_17, %c0_18] : memref<81x16x256xf32, #tpu.memory_space<vmem>>, vector<1x16x256xf32>
    %37 = vector.shape_cast %36 : vector<1x16x256xf32> to vector<16x256xf32>
    %38 = arith.mulf %35, %37 : vector<16x256xf32>
    %39 = arith.addf %19, %38 : vector<16x256xf32>
    %40 = vector.extract_strided_slice %4 {offsets = [0, 7], sizes = [16, 256], strides = [1, 1]} : vector<16x384xf32> to vector<16x256xf32>
    %c7 = arith.constant 7 : index
    %c0_19 = arith.constant 0 : index
    %c0_20 = arith.constant 0 : index
    %41 = vector.load %arg1[%c7, %c0_19, %c0_20] : memref<81x16x256xf32, #tpu.memory_space<vmem>>, vector<1x16x256xf32>
    %42 = vector.shape_cast %41 : vector<1x16x256xf32> to vector<16x256xf32>
    %43 = arith.mulf %40, %42 : vector<16x256xf32>
    %44 = arith.addf %24, %43 : vector<16x256xf32>
    %45 = vector.extract_strided_slice %4 {offsets = [0, 8], sizes = [16, 256], strides = [1, 1]} : vector<16x384xf32> to vector<16x256xf32>
    %c8 = arith.constant 8 : index
    %c0_21 = arith.constant 0 : index
    %c0_22 = arith.constant 0 : index
    %46 = vector.load %arg1[%c8, %c0_21, %c0_22] : memref<81x16x256xf32, #tpu.memory_space<vmem>>, vector<1x16x256xf32>
    %47 = vector.shape_cast %46 : vector<1x16x256xf32> to vector<16x256xf32>
    %48 = arith.mulf %45, %47 : vector<16x256xf32>
    %49 = arith.addf %29, %48 : vector<16x256xf32>
    %c1_23 = arith.constant 1 : index
    %c0_24 = arith.constant 0 : index
    %50 = vector.load %arg0[%c1_23, %c0_24] : memref<24x384xf32, #tpu.memory_space<vmem>>, vector<16x384xf32>
    %51 = vector.extract_strided_slice %50 {offsets = [0, 0], sizes = [16, 256], strides = [1, 1]} : vector<16x384xf32> to vector<16x256xf32>
    %c9 = arith.constant 9 : index
    %c0_25 = arith.constant 0 : index
    %c0_26 = arith.constant 0 : index
    %52 = vector.load %arg1[%c9, %c0_25, %c0_26] : memref<81x16x256xf32, #tpu.memory_space<vmem>>, vector<1x16x256xf32>
    %53 = vector.shape_cast %52 : vector<1x16x256xf32> to vector<16x256xf32>
    %54 = arith.mulf %51, %53 : vector<16x256xf32>
    %55 = arith.addf %34, %54 : vector<16x256xf32>
    %56 = vector.extract_strided_slice %50 {offsets = [0, 1], sizes = [16, 256], strides = [1, 1]} : vector<16x384xf32> to vector<16x256xf32>
    %c10 = arith.constant 10 : index
    %c0_27 = arith.constant 0 : index
    %c0_28 = arith.constant 0 : index
    %57 = vector.load %arg1[%c10, %c0_27, %c0_28] : memref<81x16x256xf32, #tpu.memory_space<vmem>>, vector<1x16x256xf32>
    %58 = vector.shape_cast %57 : vector<1x16x256xf32> to vector<16x256xf32>
    %59 = arith.mulf %56, %58 : vector<16x256xf32>
    %60 = arith.addf %39, %59 : vector<16x256xf32>
    %61 = vector.extract_strided_slice %50 {offsets = [0, 2], sizes = [16, 256], strides = [1, 1]} : vector<16x384xf32> to vector<16x256xf32>
    %c11 = arith.constant 11 : index
    %c0_29 = arith.constant 0 : index
    %c0_30 = arith.constant 0 : index
    %62 = vector.load %arg1[%c11, %c0_29, %c0_30] : memref<81x16x256xf32, #tpu.memory_space<vmem>>, vector<1x16x256xf32>
    %63 = vector.shape_cast %62 : vector<1x16x256xf32> to vector<16x256xf32>
    %64 = arith.mulf %61, %63 : vector<16x256xf32>
    %65 = arith.addf %44, %64 : vector<16x256xf32>
    %66 = vector.extract_strided_slice %50 {offsets = [0, 3], sizes = [16, 256], strides = [1, 1]} : vector<16x384xf32> to vector<16x256xf32>
    %c12 = arith.constant 12 : index
    %c0_31 = arith.constant 0 : index
    %c0_32 = arith.constant 0 : index
    %67 = vector.load %arg1[%c12, %c0_31, %c0_32] : memref<81x16x256xf32, #tpu.memory_space<vmem>>, vector<1x16x256xf32>
    %68 = vector.shape_cast %67 : vector<1x16x256xf32> to vector<16x256xf32>
    %69 = arith.mulf %66, %68 : vector<16x256xf32>
    %70 = arith.addf %49, %69 : vector<16x256xf32>
    %71 = vector.extract_strided_slice %50 {offsets = [0, 4], sizes = [16, 256], strides = [1, 1]} : vector<16x384xf32> to vector<16x256xf32>
    %c13 = arith.constant 13 : index
    %c0_33 = arith.constant 0 : index
    %c0_34 = arith.constant 0 : index
    %72 = vector.load %arg1[%c13, %c0_33, %c0_34] : memref<81x16x256xf32, #tpu.memory_space<vmem>>, vector<1x16x256xf32>
    %73 = vector.shape_cast %72 : vector<1x16x256xf32> to vector<16x256xf32>
    %74 = arith.mulf %71, %73 : vector<16x256xf32>
    %75 = arith.addf %55, %74 : vector<16x256xf32>
    %76 = vector.extract_strided_slice %50 {offsets = [0, 5], sizes = [16, 256], strides = [1, 1]} : vector<16x384xf32> to vector<16x256xf32>
    %c14 = arith.constant 14 : index
    %c0_35 = arith.constant 0 : index
    %c0_36 = arith.constant 0 : index
    %77 = vector.load %arg1[%c14, %c0_35, %c0_36] : memref<81x16x256xf32, #tpu.memory_space<vmem>>, vector<1x16x256xf32>
    %78 = vector.shape_cast %77 : vector<1x16x256xf32> to vector<16x256xf32>
    %79 = arith.mulf %76, %78 : vector<16x256xf32>
    %80 = arith.addf %60, %79 : vector<16x256xf32>
    %81 = vector.extract_strided_slice %50 {offsets = [0, 6], sizes = [16, 256], strides = [1, 1]} : vector<16x384xf32> to vector<16x256xf32>
    %c15 = arith.constant 15 : index
    %c0_37 = arith.constant 0 : index
    %c0_38 = arith.constant 0 : index
    %82 = vector.load %arg1[%c15, %c0_37, %c0_38] : memref<81x16x256xf32, #tpu.memory_space<vmem>>, vector<1x16x256xf32>
    %83 = vector.shape_cast %82 : vector<1x16x256xf32> to vector<16x256xf32>
    %84 = arith.mulf %81, %83 : vector<16x256xf32>
    %85 = arith.addf %65, %84 : vector<16x256xf32>
    %86 = vector.extract_strided_slice %50 {offsets = [0, 7], sizes = [16, 256], strides = [1, 1]} : vector<16x384xf32> to vector<16x256xf32>
    %c16 = arith.constant 16 : index
    %c0_39 = arith.constant 0 : index
    %c0_40 = arith.constant 0 : index
    %87 = vector.load %arg1[%c16, %c0_39, %c0_40] : memref<81x16x256xf32, #tpu.memory_space<vmem>>, vector<1x16x256xf32>
    %88 = vector.shape_cast %87 : vector<1x16x256xf32> to vector<16x256xf32>
    %89 = arith.mulf %86, %88 : vector<16x256xf32>
    %90 = arith.addf %70, %89 : vector<16x256xf32>
    %91 = vector.extract_strided_slice %50 {offsets = [0, 8], sizes = [16, 256], strides = [1, 1]} : vector<16x384xf32> to vector<16x256xf32>
    %c17 = arith.constant 17 : index
    %c0_41 = arith.constant 0 : index
    %c0_42 = arith.constant 0 : index
    %92 = vector.load %arg1[%c17, %c0_41, %c0_42] : memref<81x16x256xf32, #tpu.memory_space<vmem>>, vector<1x16x256xf32>
    %93 = vector.shape_cast %92 : vector<1x16x256xf32> to vector<16x256xf32>
    %94 = arith.mulf %91, %93 : vector<16x256xf32>
    %95 = arith.addf %75, %94 : vector<16x256xf32>
    %c2_43 = arith.constant 2 : index
    %c0_44 = arith.constant 0 : index
    %96 = vector.load %arg0[%c2_43, %c0_44] : memref<24x384xf32, #tpu.memory_space<vmem>>, vector<16x384xf32>
    %97 = vector.extract_strided_slice %96 {offsets = [0, 0], sizes = [16, 256], strides = [1, 1]} : vector<16x384xf32> to vector<16x256xf32>
    %c18 = arith.constant 18 : index
    %c0_45 = arith.constant 0 : index
    %c0_46 = arith.constant 0 : index
    %98 = vector.load %arg1[%c18, %c0_45, %c0_46] : memref<81x16x256xf32, #tpu.memory_space<vmem>>, vector<1x16x256xf32>
    %99 = vector.shape_cast %98 : vector<1x16x256xf32> to vector<16x256xf32>
    %100 = arith.mulf %97, %99 : vector<16x256xf32>
    %101 = arith.addf %80, %100 : vector<16x256xf32>
    %102 = vector.extract_strided_slice %96 {offsets = [0, 1], sizes = [16, 256], strides = [1, 1]} : vector<16x384xf32> to vector<16x256xf32>
    %c19 = arith.constant 19 : index
    %c0_47 = arith.constant 0 : index
    %c0_48 = arith.constant 0 : index
    %103 = vector.load %arg1[%c19, %c0_47, %c0_48] : memref<81x16x256xf32, #tpu.memory_space<vmem>>, vector<1x16x256xf32>
    %104 = vector.shape_cast %103 : vector<1x16x256xf32> to vector<16x256xf32>
    %105 = arith.mulf %102, %104 : vector<16x256xf32>
    %106 = arith.addf %85, %105 : vector<16x256xf32>
    %107 = vector.extract_strided_slice %96 {offsets = [0, 2], sizes = [16, 256], strides = [1, 1]} : vector<16x384xf32> to vector<16x256xf32>
    %c20 = arith.constant 20 : index
    %c0_49 = arith.constant 0 : index
    %c0_50 = arith.constant 0 : index
    %108 = vector.load %arg1[%c20, %c0_49, %c0_50] : memref<81x16x256xf32, #tpu.memory_space<vmem>>, vector<1x16x256xf32>
    %109 = vector.shape_cast %108 : vector<1x16x256xf32> to vector<16x256xf32>
    %110 = arith.mulf %107, %109 : vector<16x256xf32>
    %111 = arith.addf %90, %110 : vector<16x256xf32>
    %112 = vector.extract_strided_slice %96 {offsets = [0, 3], sizes = [16, 256], strides = [1, 1]} : vector<16x384xf32> to vector<16x256xf32>
    %c21 = arith.constant 21 : index
    %c0_51 = arith.constant 0 : index
    %c0_52 = arith.constant 0 : index
    %113 = vector.load %arg1[%c21, %c0_51, %c0_52] : memref<81x16x256xf32, #tpu.memory_space<vmem>>, vector<1x16x256xf32>
    %114 = vector.shape_cast %113 : vector<1x16x256xf32> to vector<16x256xf32>
    %115 = arith.mulf %112, %114 : vector<16x256xf32>
    %116 = arith.addf %95, %115 : vector<16x256xf32>
    %117 = vector.extract_strided_slice %96 {offsets = [0, 4], sizes = [16, 256], strides = [1, 1]} : vector<16x384xf32> to vector<16x256xf32>
    %c22 = arith.constant 22 : index
    %c0_53 = arith.constant 0 : index
    %c0_54 = arith.constant 0 : index
    %118 = vector.load %arg1[%c22, %c0_53, %c0_54] : memref<81x16x256xf32, #tpu.memory_space<vmem>>, vector<1x16x256xf32>
    %119 = vector.shape_cast %118 : vector<1x16x256xf32> to vector<16x256xf32>
    %120 = arith.mulf %117, %119 : vector<16x256xf32>
    %121 = arith.addf %101, %120 : vector<16x256xf32>
    %122 = vector.extract_strided_slice %96 {offsets = [0, 5], sizes = [16, 256], strides = [1, 1]} : vector<16x384xf32> to vector<16x256xf32>
    %c23 = arith.constant 23 : index
    %c0_55 = arith.constant 0 : index
    %c0_56 = arith.constant 0 : index
    %123 = vector.load %arg1[%c23, %c0_55, %c0_56] : memref<81x16x256xf32, #tpu.memory_space<vmem>>, vector<1x16x256xf32>
    %124 = vector.shape_cast %123 : vector<1x16x256xf32> to vector<16x256xf32>
    %125 = arith.mulf %122, %124 : vector<16x256xf32>
    %126 = arith.addf %106, %125 : vector<16x256xf32>
    %127 = vector.extract_strided_slice %96 {offsets = [0, 6], sizes = [16, 256], strides = [1, 1]} : vector<16x384xf32> to vector<16x256xf32>
    %c24 = arith.constant 24 : index
    %c0_57 = arith.constant 0 : index
    %c0_58 = arith.constant 0 : index
    %128 = vector.load %arg1[%c24, %c0_57, %c0_58] : memref<81x16x256xf32, #tpu.memory_space<vmem>>, vector<1x16x256xf32>
    %129 = vector.shape_cast %128 : vector<1x16x256xf32> to vector<16x256xf32>
    %130 = arith.mulf %127, %129 : vector<16x256xf32>
    %131 = arith.addf %111, %130 : vector<16x256xf32>
    %132 = vector.extract_strided_slice %96 {offsets = [0, 7], sizes = [16, 256], strides = [1, 1]} : vector<16x384xf32> to vector<16x256xf32>
    %c25 = arith.constant 25 : index
    %c0_59 = arith.constant 0 : index
    %c0_60 = arith.constant 0 : index
    %133 = vector.load %arg1[%c25, %c0_59, %c0_60] : memref<81x16x256xf32, #tpu.memory_space<vmem>>, vector<1x16x256xf32>
    %134 = vector.shape_cast %133 : vector<1x16x256xf32> to vector<16x256xf32>
    %135 = arith.mulf %132, %134 : vector<16x256xf32>
    %136 = arith.addf %116, %135 : vector<16x256xf32>
    %137 = vector.extract_strided_slice %96 {offsets = [0, 8], sizes = [16, 256], strides = [1, 1]} : vector<16x384xf32> to vector<16x256xf32>
    %c26 = arith.constant 26 : index
    %c0_61 = arith.constant 0 : index
    %c0_62 = arith.constant 0 : index
    %138 = vector.load %arg1[%c26, %c0_61, %c0_62] : memref<81x16x256xf32, #tpu.memory_space<vmem>>, vector<1x16x256xf32>
    %139 = vector.shape_cast %138 : vector<1x16x256xf32> to vector<16x256xf32>
    %140 = arith.mulf %137, %139 : vector<16x256xf32>
    %141 = arith.addf %121, %140 : vector<16x256xf32>
    %c3_63 = arith.constant 3 : index
    %c0_64 = arith.constant 0 : index
    %142 = vector.load %arg0[%c3_63, %c0_64] : memref<24x384xf32, #tpu.memory_space<vmem>>, vector<16x384xf32>
    %143 = vector.extract_strided_slice %142 {offsets = [0, 0], sizes = [16, 256], strides = [1, 1]} : vector<16x384xf32> to vector<16x256xf32>
    %c27 = arith.constant 27 : index
    %c0_65 = arith.constant 0 : index
    %c0_66 = arith.constant 0 : index
    %144 = vector.load %arg1[%c27, %c0_65, %c0_66] : memref<81x16x256xf32, #tpu.memory_space<vmem>>, vector<1x16x256xf32>
    %145 = vector.shape_cast %144 : vector<1x16x256xf32> to vector<16x256xf32>
    %146 = arith.mulf %143, %145 : vector<16x256xf32>
    %147 = arith.addf %126, %146 : vector<16x256xf32>
    %148 = vector.extract_strided_slice %142 {offsets = [0, 1], sizes = [16, 256], strides = [1, 1]} : vector<16x384xf32> to vector<16x256xf32>
    %c28 = arith.constant 28 : index
    %c0_67 = arith.constant 0 : index
    %c0_68 = arith.constant 0 : index
    %149 = vector.load %arg1[%c28, %c0_67, %c0_68] : memref<81x16x256xf32, #tpu.memory_space<vmem>>, vector<1x16x256xf32>
    %150 = vector.shape_cast %149 : vector<1x16x256xf32> to vector<16x256xf32>
    %151 = arith.mulf %148, %150 : vector<16x256xf32>
    %152 = arith.addf %131, %151 : vector<16x256xf32>
    %153 = vector.extract_strided_slice %142 {offsets = [0, 2], sizes = [16, 256], strides = [1, 1]} : vector<16x384xf32> to vector<16x256xf32>
    %c29 = arith.constant 29 : index
    %c0_69 = arith.constant 0 : index
    %c0_70 = arith.constant 0 : index
    %154 = vector.load %arg1[%c29, %c0_69, %c0_70] : memref<81x16x256xf32, #tpu.memory_space<vmem>>, vector<1x16x256xf32>
    %155 = vector.shape_cast %154 : vector<1x16x256xf32> to vector<16x256xf32>
    %156 = arith.mulf %153, %155 : vector<16x256xf32>
    %157 = arith.addf %136, %156 : vector<16x256xf32>
    %158 = vector.extract_strided_slice %142 {offsets = [0, 3], sizes = [16, 256], strides = [1, 1]} : vector<16x384xf32> to vector<16x256xf32>
    %c30 = arith.constant 30 : index
    %c0_71 = arith.constant 0 : index
    %c0_72 = arith.constant 0 : index
    %159 = vector.load %arg1[%c30, %c0_71, %c0_72] : memref<81x16x256xf32, #tpu.memory_space<vmem>>, vector<1x16x256xf32>
    %160 = vector.shape_cast %159 : vector<1x16x256xf32> to vector<16x256xf32>
    %161 = arith.mulf %158, %160 : vector<16x256xf32>
    %162 = arith.addf %141, %161 : vector<16x256xf32>
    %163 = vector.extract_strided_slice %142 {offsets = [0, 4], sizes = [16, 256], strides = [1, 1]} : vector<16x384xf32> to vector<16x256xf32>
    %c31 = arith.constant 31 : index
    %c0_73 = arith.constant 0 : index
    %c0_74 = arith.constant 0 : index
    %164 = vector.load %arg1[%c31, %c0_73, %c0_74] : memref<81x16x256xf32, #tpu.memory_space<vmem>>, vector<1x16x256xf32>
    %165 = vector.shape_cast %164 : vector<1x16x256xf32> to vector<16x256xf32>
    %166 = arith.mulf %163, %165 : vector<16x256xf32>
    %167 = arith.addf %147, %166 : vector<16x256xf32>
    %168 = vector.extract_strided_slice %142 {offsets = [0, 5], sizes = [16, 256], strides = [1, 1]} : vector<16x384xf32> to vector<16x256xf32>
    %c32 = arith.constant 32 : index
    %c0_75 = arith.constant 0 : index
    %c0_76 = arith.constant 0 : index
    %169 = vector.load %arg1[%c32, %c0_75, %c0_76] : memref<81x16x256xf32, #tpu.memory_space<vmem>>, vector<1x16x256xf32>
    %170 = vector.shape_cast %169 : vector<1x16x256xf32> to vector<16x256xf32>
    %171 = arith.mulf %168, %170 : vector<16x256xf32>
    %172 = arith.addf %152, %171 : vector<16x256xf32>
    %173 = vector.extract_strided_slice %142 {offsets = [0, 6], sizes = [16, 256], strides = [1, 1]} : vector<16x384xf32> to vector<16x256xf32>
    %c33 = arith.constant 33 : index
    %c0_77 = arith.constant 0 : index
    %c0_78 = arith.constant 0 : index
    %174 = vector.load %arg1[%c33, %c0_77, %c0_78] : memref<81x16x256xf32, #tpu.memory_space<vmem>>, vector<1x16x256xf32>
    %175 = vector.shape_cast %174 : vector<1x16x256xf32> to vector<16x256xf32>
    %176 = arith.mulf %173, %175 : vector<16x256xf32>
    %177 = arith.addf %157, %176 : vector<16x256xf32>
    %178 = vector.extract_strided_slice %142 {offsets = [0, 7], sizes = [16, 256], strides = [1, 1]} : vector<16x384xf32> to vector<16x256xf32>
    %c34 = arith.constant 34 : index
    %c0_79 = arith.constant 0 : index
    %c0_80 = arith.constant 0 : index
    %179 = vector.load %arg1[%c34, %c0_79, %c0_80] : memref<81x16x256xf32, #tpu.memory_space<vmem>>, vector<1x16x256xf32>
    %180 = vector.shape_cast %179 : vector<1x16x256xf32> to vector<16x256xf32>
    %181 = arith.mulf %178, %180 : vector<16x256xf32>
    %182 = arith.addf %162, %181 : vector<16x256xf32>
    %183 = vector.extract_strided_slice %142 {offsets = [0, 8], sizes = [16, 256], strides = [1, 1]} : vector<16x384xf32> to vector<16x256xf32>
    %c35 = arith.constant 35 : index
    %c0_81 = arith.constant 0 : index
    %c0_82 = arith.constant 0 : index
    %184 = vector.load %arg1[%c35, %c0_81, %c0_82] : memref<81x16x256xf32, #tpu.memory_space<vmem>>, vector<1x16x256xf32>
    %185 = vector.shape_cast %184 : vector<1x16x256xf32> to vector<16x256xf32>
    %186 = arith.mulf %183, %185 : vector<16x256xf32>
    %187 = arith.addf %167, %186 : vector<16x256xf32>
    %c4_83 = arith.constant 4 : index
    %c0_84 = arith.constant 0 : index
    %188 = vector.load %arg0[%c4_83, %c0_84] : memref<24x384xf32, #tpu.memory_space<vmem>>, vector<16x384xf32>
    %189 = vector.extract_strided_slice %188 {offsets = [0, 0], sizes = [16, 256], strides = [1, 1]} : vector<16x384xf32> to vector<16x256xf32>
    %c36 = arith.constant 36 : index
    %c0_85 = arith.constant 0 : index
    %c0_86 = arith.constant 0 : index
    %190 = vector.load %arg1[%c36, %c0_85, %c0_86] : memref<81x16x256xf32, #tpu.memory_space<vmem>>, vector<1x16x256xf32>
    %191 = vector.shape_cast %190 : vector<1x16x256xf32> to vector<16x256xf32>
    %192 = arith.mulf %189, %191 : vector<16x256xf32>
    %193 = arith.addf %172, %192 : vector<16x256xf32>
    %194 = vector.extract_strided_slice %188 {offsets = [0, 1], sizes = [16, 256], strides = [1, 1]} : vector<16x384xf32> to vector<16x256xf32>
    %c37 = arith.constant 37 : index
    %c0_87 = arith.constant 0 : index
    %c0_88 = arith.constant 0 : index
    %195 = vector.load %arg1[%c37, %c0_87, %c0_88] : memref<81x16x256xf32, #tpu.memory_space<vmem>>, vector<1x16x256xf32>
    %196 = vector.shape_cast %195 : vector<1x16x256xf32> to vector<16x256xf32>
    %197 = arith.mulf %194, %196 : vector<16x256xf32>
    %198 = arith.addf %177, %197 : vector<16x256xf32>
    %199 = vector.extract_strided_slice %188 {offsets = [0, 2], sizes = [16, 256], strides = [1, 1]} : vector<16x384xf32> to vector<16x256xf32>
    %c38 = arith.constant 38 : index
    %c0_89 = arith.constant 0 : index
    %c0_90 = arith.constant 0 : index
    %200 = vector.load %arg1[%c38, %c0_89, %c0_90] : memref<81x16x256xf32, #tpu.memory_space<vmem>>, vector<1x16x256xf32>
    %201 = vector.shape_cast %200 : vector<1x16x256xf32> to vector<16x256xf32>
    %202 = arith.mulf %199, %201 : vector<16x256xf32>
    %203 = arith.addf %182, %202 : vector<16x256xf32>
    %204 = vector.extract_strided_slice %188 {offsets = [0, 3], sizes = [16, 256], strides = [1, 1]} : vector<16x384xf32> to vector<16x256xf32>
    %c39 = arith.constant 39 : index
    %c0_91 = arith.constant 0 : index
    %c0_92 = arith.constant 0 : index
    %205 = vector.load %arg1[%c39, %c0_91, %c0_92] : memref<81x16x256xf32, #tpu.memory_space<vmem>>, vector<1x16x256xf32>
    %206 = vector.shape_cast %205 : vector<1x16x256xf32> to vector<16x256xf32>
    %207 = arith.mulf %204, %206 : vector<16x256xf32>
    %208 = arith.addf %187, %207 : vector<16x256xf32>
    %209 = vector.extract_strided_slice %188 {offsets = [0, 4], sizes = [16, 256], strides = [1, 1]} : vector<16x384xf32> to vector<16x256xf32>
    %c40 = arith.constant 40 : index
    %c0_93 = arith.constant 0 : index
    %c0_94 = arith.constant 0 : index
    %210 = vector.load %arg1[%c40, %c0_93, %c0_94] : memref<81x16x256xf32, #tpu.memory_space<vmem>>, vector<1x16x256xf32>
    %211 = vector.shape_cast %210 : vector<1x16x256xf32> to vector<16x256xf32>
    %212 = arith.mulf %209, %211 : vector<16x256xf32>
    %213 = arith.addf %193, %212 : vector<16x256xf32>
    %214 = vector.extract_strided_slice %188 {offsets = [0, 5], sizes = [16, 256], strides = [1, 1]} : vector<16x384xf32> to vector<16x256xf32>
    %c41 = arith.constant 41 : index
    %c0_95 = arith.constant 0 : index
    %c0_96 = arith.constant 0 : index
    %215 = vector.load %arg1[%c41, %c0_95, %c0_96] : memref<81x16x256xf32, #tpu.memory_space<vmem>>, vector<1x16x256xf32>
    %216 = vector.shape_cast %215 : vector<1x16x256xf32> to vector<16x256xf32>
    %217 = arith.mulf %214, %216 : vector<16x256xf32>
    %218 = arith.addf %198, %217 : vector<16x256xf32>
    %219 = vector.extract_strided_slice %188 {offsets = [0, 6], sizes = [16, 256], strides = [1, 1]} : vector<16x384xf32> to vector<16x256xf32>
    %c42 = arith.constant 42 : index
    %c0_97 = arith.constant 0 : index
    %c0_98 = arith.constant 0 : index
    %220 = vector.load %arg1[%c42, %c0_97, %c0_98] : memref<81x16x256xf32, #tpu.memory_space<vmem>>, vector<1x16x256xf32>
    %221 = vector.shape_cast %220 : vector<1x16x256xf32> to vector<16x256xf32>
    %222 = arith.mulf %219, %221 : vector<16x256xf32>
    %223 = arith.addf %203, %222 : vector<16x256xf32>
    %224 = vector.extract_strided_slice %188 {offsets = [0, 7], sizes = [16, 256], strides = [1, 1]} : vector<16x384xf32> to vector<16x256xf32>
    %c43 = arith.constant 43 : index
    %c0_99 = arith.constant 0 : index
    %c0_100 = arith.constant 0 : index
    %225 = vector.load %arg1[%c43, %c0_99, %c0_100] : memref<81x16x256xf32, #tpu.memory_space<vmem>>, vector<1x16x256xf32>
    %226 = vector.shape_cast %225 : vector<1x16x256xf32> to vector<16x256xf32>
    %227 = arith.mulf %224, %226 : vector<16x256xf32>
    %228 = arith.addf %208, %227 : vector<16x256xf32>
    %229 = vector.extract_strided_slice %188 {offsets = [0, 8], sizes = [16, 256], strides = [1, 1]} : vector<16x384xf32> to vector<16x256xf32>
    %c44 = arith.constant 44 : index
    %c0_101 = arith.constant 0 : index
    %c0_102 = arith.constant 0 : index
    %230 = vector.load %arg1[%c44, %c0_101, %c0_102] : memref<81x16x256xf32, #tpu.memory_space<vmem>>, vector<1x16x256xf32>
    %231 = vector.shape_cast %230 : vector<1x16x256xf32> to vector<16x256xf32>
    %232 = arith.mulf %229, %231 : vector<16x256xf32>
    %233 = arith.addf %213, %232 : vector<16x256xf32>
    %c5_103 = arith.constant 5 : index
    %c0_104 = arith.constant 0 : index
    %234 = vector.load %arg0[%c5_103, %c0_104] : memref<24x384xf32, #tpu.memory_space<vmem>>, vector<16x384xf32>
    %235 = vector.extract_strided_slice %234 {offsets = [0, 0], sizes = [16, 256], strides = [1, 1]} : vector<16x384xf32> to vector<16x256xf32>
    %c45 = arith.constant 45 : index
    %c0_105 = arith.constant 0 : index
    %c0_106 = arith.constant 0 : index
    %236 = vector.load %arg1[%c45, %c0_105, %c0_106] : memref<81x16x256xf32, #tpu.memory_space<vmem>>, vector<1x16x256xf32>
    %237 = vector.shape_cast %236 : vector<1x16x256xf32> to vector<16x256xf32>
    %238 = arith.mulf %235, %237 : vector<16x256xf32>
    %239 = arith.addf %218, %238 : vector<16x256xf32>
    %240 = vector.extract_strided_slice %234 {offsets = [0, 1], sizes = [16, 256], strides = [1, 1]} : vector<16x384xf32> to vector<16x256xf32>
    %c46 = arith.constant 46 : index
    %c0_107 = arith.constant 0 : index
    %c0_108 = arith.constant 0 : index
    %241 = vector.load %arg1[%c46, %c0_107, %c0_108] : memref<81x16x256xf32, #tpu.memory_space<vmem>>, vector<1x16x256xf32>
    %242 = vector.shape_cast %241 : vector<1x16x256xf32> to vector<16x256xf32>
    %243 = arith.mulf %240, %242 : vector<16x256xf32>
    %244 = arith.addf %223, %243 : vector<16x256xf32>
    %245 = vector.extract_strided_slice %234 {offsets = [0, 2], sizes = [16, 256], strides = [1, 1]} : vector<16x384xf32> to vector<16x256xf32>
    %c47 = arith.constant 47 : index
    %c0_109 = arith.constant 0 : index
    %c0_110 = arith.constant 0 : index
    %246 = vector.load %arg1[%c47, %c0_109, %c0_110] : memref<81x16x256xf32, #tpu.memory_space<vmem>>, vector<1x16x256xf32>
    %247 = vector.shape_cast %246 : vector<1x16x256xf32> to vector<16x256xf32>
    %248 = arith.mulf %245, %247 : vector<16x256xf32>
    %249 = arith.addf %228, %248 : vector<16x256xf32>
    %250 = vector.extract_strided_slice %234 {offsets = [0, 3], sizes = [16, 256], strides = [1, 1]} : vector<16x384xf32> to vector<16x256xf32>
    %c48 = arith.constant 48 : index
    %c0_111 = arith.constant 0 : index
    %c0_112 = arith.constant 0 : index
    %251 = vector.load %arg1[%c48, %c0_111, %c0_112] : memref<81x16x256xf32, #tpu.memory_space<vmem>>, vector<1x16x256xf32>
    %252 = vector.shape_cast %251 : vector<1x16x256xf32> to vector<16x256xf32>
    %253 = arith.mulf %250, %252 : vector<16x256xf32>
    %254 = arith.addf %233, %253 : vector<16x256xf32>
    %255 = vector.extract_strided_slice %234 {offsets = [0, 4], sizes = [16, 256], strides = [1, 1]} : vector<16x384xf32> to vector<16x256xf32>
    %c49 = arith.constant 49 : index
    %c0_113 = arith.constant 0 : index
    %c0_114 = arith.constant 0 : index
    %256 = vector.load %arg1[%c49, %c0_113, %c0_114] : memref<81x16x256xf32, #tpu.memory_space<vmem>>, vector<1x16x256xf32>
    %257 = vector.shape_cast %256 : vector<1x16x256xf32> to vector<16x256xf32>
    %258 = arith.mulf %255, %257 : vector<16x256xf32>
    %259 = arith.addf %239, %258 : vector<16x256xf32>
    %260 = vector.extract_strided_slice %234 {offsets = [0, 5], sizes = [16, 256], strides = [1, 1]} : vector<16x384xf32> to vector<16x256xf32>
    %c50 = arith.constant 50 : index
    %c0_115 = arith.constant 0 : index
    %c0_116 = arith.constant 0 : index
    %261 = vector.load %arg1[%c50, %c0_115, %c0_116] : memref<81x16x256xf32, #tpu.memory_space<vmem>>, vector<1x16x256xf32>
    %262 = vector.shape_cast %261 : vector<1x16x256xf32> to vector<16x256xf32>
    %263 = arith.mulf %260, %262 : vector<16x256xf32>
    %264 = arith.addf %244, %263 : vector<16x256xf32>
    %265 = vector.extract_strided_slice %234 {offsets = [0, 6], sizes = [16, 256], strides = [1, 1]} : vector<16x384xf32> to vector<16x256xf32>
    %c51 = arith.constant 51 : index
    %c0_117 = arith.constant 0 : index
    %c0_118 = arith.constant 0 : index
    %266 = vector.load %arg1[%c51, %c0_117, %c0_118] : memref<81x16x256xf32, #tpu.memory_space<vmem>>, vector<1x16x256xf32>
    %267 = vector.shape_cast %266 : vector<1x16x256xf32> to vector<16x256xf32>
    %268 = arith.mulf %265, %267 : vector<16x256xf32>
    %269 = arith.addf %249, %268 : vector<16x256xf32>
    %270 = vector.extract_strided_slice %234 {offsets = [0, 7], sizes = [16, 256], strides = [1, 1]} : vector<16x384xf32> to vector<16x256xf32>
    %c52 = arith.constant 52 : index
    %c0_119 = arith.constant 0 : index
    %c0_120 = arith.constant 0 : index
    %271 = vector.load %arg1[%c52, %c0_119, %c0_120] : memref<81x16x256xf32, #tpu.memory_space<vmem>>, vector<1x16x256xf32>
    %272 = vector.shape_cast %271 : vector<1x16x256xf32> to vector<16x256xf32>
    %273 = arith.mulf %270, %272 : vector<16x256xf32>
    %274 = arith.addf %254, %273 : vector<16x256xf32>
    %275 = vector.extract_strided_slice %234 {offsets = [0, 8], sizes = [16, 256], strides = [1, 1]} : vector<16x384xf32> to vector<16x256xf32>
    %c53 = arith.constant 53 : index
    %c0_121 = arith.constant 0 : index
    %c0_122 = arith.constant 0 : index
    %276 = vector.load %arg1[%c53, %c0_121, %c0_122] : memref<81x16x256xf32, #tpu.memory_space<vmem>>, vector<1x16x256xf32>
    %277 = vector.shape_cast %276 : vector<1x16x256xf32> to vector<16x256xf32>
    %278 = arith.mulf %275, %277 : vector<16x256xf32>
    %279 = arith.addf %259, %278 : vector<16x256xf32>
    %c6_123 = arith.constant 6 : index
    %c0_124 = arith.constant 0 : index
    %280 = vector.load %arg0[%c6_123, %c0_124] : memref<24x384xf32, #tpu.memory_space<vmem>>, vector<16x384xf32>
    %281 = vector.extract_strided_slice %280 {offsets = [0, 0], sizes = [16, 256], strides = [1, 1]} : vector<16x384xf32> to vector<16x256xf32>
    %c54 = arith.constant 54 : index
    %c0_125 = arith.constant 0 : index
    %c0_126 = arith.constant 0 : index
    %282 = vector.load %arg1[%c54, %c0_125, %c0_126] : memref<81x16x256xf32, #tpu.memory_space<vmem>>, vector<1x16x256xf32>
    %283 = vector.shape_cast %282 : vector<1x16x256xf32> to vector<16x256xf32>
    %284 = arith.mulf %281, %283 : vector<16x256xf32>
    %285 = arith.addf %264, %284 : vector<16x256xf32>
    %286 = vector.extract_strided_slice %280 {offsets = [0, 1], sizes = [16, 256], strides = [1, 1]} : vector<16x384xf32> to vector<16x256xf32>
    %c55 = arith.constant 55 : index
    %c0_127 = arith.constant 0 : index
    %c0_128 = arith.constant 0 : index
    %287 = vector.load %arg1[%c55, %c0_127, %c0_128] : memref<81x16x256xf32, #tpu.memory_space<vmem>>, vector<1x16x256xf32>
    %288 = vector.shape_cast %287 : vector<1x16x256xf32> to vector<16x256xf32>
    %289 = arith.mulf %286, %288 : vector<16x256xf32>
    %290 = arith.addf %269, %289 : vector<16x256xf32>
    %291 = vector.extract_strided_slice %280 {offsets = [0, 2], sizes = [16, 256], strides = [1, 1]} : vector<16x384xf32> to vector<16x256xf32>
    %c56 = arith.constant 56 : index
    %c0_129 = arith.constant 0 : index
    %c0_130 = arith.constant 0 : index
    %292 = vector.load %arg1[%c56, %c0_129, %c0_130] : memref<81x16x256xf32, #tpu.memory_space<vmem>>, vector<1x16x256xf32>
    %293 = vector.shape_cast %292 : vector<1x16x256xf32> to vector<16x256xf32>
    %294 = arith.mulf %291, %293 : vector<16x256xf32>
    %295 = arith.addf %274, %294 : vector<16x256xf32>
    %296 = vector.extract_strided_slice %280 {offsets = [0, 3], sizes = [16, 256], strides = [1, 1]} : vector<16x384xf32> to vector<16x256xf32>
    %c57 = arith.constant 57 : index
    %c0_131 = arith.constant 0 : index
    %c0_132 = arith.constant 0 : index
    %297 = vector.load %arg1[%c57, %c0_131, %c0_132] : memref<81x16x256xf32, #tpu.memory_space<vmem>>, vector<1x16x256xf32>
    %298 = vector.shape_cast %297 : vector<1x16x256xf32> to vector<16x256xf32>
    %299 = arith.mulf %296, %298 : vector<16x256xf32>
    %300 = arith.addf %279, %299 : vector<16x256xf32>
    %301 = vector.extract_strided_slice %280 {offsets = [0, 4], sizes = [16, 256], strides = [1, 1]} : vector<16x384xf32> to vector<16x256xf32>
    %c58 = arith.constant 58 : index
    %c0_133 = arith.constant 0 : index
    %c0_134 = arith.constant 0 : index
    %302 = vector.load %arg1[%c58, %c0_133, %c0_134] : memref<81x16x256xf32, #tpu.memory_space<vmem>>, vector<1x16x256xf32>
    %303 = vector.shape_cast %302 : vector<1x16x256xf32> to vector<16x256xf32>
    %304 = arith.mulf %301, %303 : vector<16x256xf32>
    %305 = arith.addf %285, %304 : vector<16x256xf32>
    %306 = vector.extract_strided_slice %280 {offsets = [0, 5], sizes = [16, 256], strides = [1, 1]} : vector<16x384xf32> to vector<16x256xf32>
    %c59 = arith.constant 59 : index
    %c0_135 = arith.constant 0 : index
    %c0_136 = arith.constant 0 : index
    %307 = vector.load %arg1[%c59, %c0_135, %c0_136] : memref<81x16x256xf32, #tpu.memory_space<vmem>>, vector<1x16x256xf32>
    %308 = vector.shape_cast %307 : vector<1x16x256xf32> to vector<16x256xf32>
    %309 = arith.mulf %306, %308 : vector<16x256xf32>
    %310 = arith.addf %290, %309 : vector<16x256xf32>
    %311 = vector.extract_strided_slice %280 {offsets = [0, 6], sizes = [16, 256], strides = [1, 1]} : vector<16x384xf32> to vector<16x256xf32>
    %c60 = arith.constant 60 : index
    %c0_137 = arith.constant 0 : index
    %c0_138 = arith.constant 0 : index
    %312 = vector.load %arg1[%c60, %c0_137, %c0_138] : memref<81x16x256xf32, #tpu.memory_space<vmem>>, vector<1x16x256xf32>
    %313 = vector.shape_cast %312 : vector<1x16x256xf32> to vector<16x256xf32>
    %314 = arith.mulf %311, %313 : vector<16x256xf32>
    %315 = arith.addf %295, %314 : vector<16x256xf32>
    %316 = vector.extract_strided_slice %280 {offsets = [0, 7], sizes = [16, 256], strides = [1, 1]} : vector<16x384xf32> to vector<16x256xf32>
    %c61 = arith.constant 61 : index
    %c0_139 = arith.constant 0 : index
    %c0_140 = arith.constant 0 : index
    %317 = vector.load %arg1[%c61, %c0_139, %c0_140] : memref<81x16x256xf32, #tpu.memory_space<vmem>>, vector<1x16x256xf32>
    %318 = vector.shape_cast %317 : vector<1x16x256xf32> to vector<16x256xf32>
    %319 = arith.mulf %316, %318 : vector<16x256xf32>
    %320 = arith.addf %300, %319 : vector<16x256xf32>
    %321 = vector.extract_strided_slice %280 {offsets = [0, 8], sizes = [16, 256], strides = [1, 1]} : vector<16x384xf32> to vector<16x256xf32>
    %c62 = arith.constant 62 : index
    %c0_141 = arith.constant 0 : index
    %c0_142 = arith.constant 0 : index
    %322 = vector.load %arg1[%c62, %c0_141, %c0_142] : memref<81x16x256xf32, #tpu.memory_space<vmem>>, vector<1x16x256xf32>
    %323 = vector.shape_cast %322 : vector<1x16x256xf32> to vector<16x256xf32>
    %324 = arith.mulf %321, %323 : vector<16x256xf32>
    %325 = arith.addf %305, %324 : vector<16x256xf32>
    %c7_143 = arith.constant 7 : index
    %c0_144 = arith.constant 0 : index
    %326 = vector.load %arg0[%c7_143, %c0_144] : memref<24x384xf32, #tpu.memory_space<vmem>>, vector<16x384xf32>
    %327 = vector.extract_strided_slice %326 {offsets = [0, 0], sizes = [16, 256], strides = [1, 1]} : vector<16x384xf32> to vector<16x256xf32>
    %c63 = arith.constant 63 : index
    %c0_145 = arith.constant 0 : index
    %c0_146 = arith.constant 0 : index
    %328 = vector.load %arg1[%c63, %c0_145, %c0_146] : memref<81x16x256xf32, #tpu.memory_space<vmem>>, vector<1x16x256xf32>
    %329 = vector.shape_cast %328 : vector<1x16x256xf32> to vector<16x256xf32>
    %330 = arith.mulf %327, %329 : vector<16x256xf32>
    %331 = arith.addf %310, %330 : vector<16x256xf32>
    %332 = vector.extract_strided_slice %326 {offsets = [0, 1], sizes = [16, 256], strides = [1, 1]} : vector<16x384xf32> to vector<16x256xf32>
    %c64 = arith.constant 64 : index
    %c0_147 = arith.constant 0 : index
    %c0_148 = arith.constant 0 : index
    %333 = vector.load %arg1[%c64, %c0_147, %c0_148] : memref<81x16x256xf32, #tpu.memory_space<vmem>>, vector<1x16x256xf32>
    %334 = vector.shape_cast %333 : vector<1x16x256xf32> to vector<16x256xf32>
    %335 = arith.mulf %332, %334 : vector<16x256xf32>
    %336 = arith.addf %315, %335 : vector<16x256xf32>
    %337 = vector.extract_strided_slice %326 {offsets = [0, 2], sizes = [16, 256], strides = [1, 1]} : vector<16x384xf32> to vector<16x256xf32>
    %c65 = arith.constant 65 : index
    %c0_149 = arith.constant 0 : index
    %c0_150 = arith.constant 0 : index
    %338 = vector.load %arg1[%c65, %c0_149, %c0_150] : memref<81x16x256xf32, #tpu.memory_space<vmem>>, vector<1x16x256xf32>
    %339 = vector.shape_cast %338 : vector<1x16x256xf32> to vector<16x256xf32>
    %340 = arith.mulf %337, %339 : vector<16x256xf32>
    %341 = arith.addf %320, %340 : vector<16x256xf32>
    %342 = vector.extract_strided_slice %326 {offsets = [0, 3], sizes = [16, 256], strides = [1, 1]} : vector<16x384xf32> to vector<16x256xf32>
    %c66 = arith.constant 66 : index
    %c0_151 = arith.constant 0 : index
    %c0_152 = arith.constant 0 : index
    %343 = vector.load %arg1[%c66, %c0_151, %c0_152] : memref<81x16x256xf32, #tpu.memory_space<vmem>>, vector<1x16x256xf32>
    %344 = vector.shape_cast %343 : vector<1x16x256xf32> to vector<16x256xf32>
    %345 = arith.mulf %342, %344 : vector<16x256xf32>
    %346 = arith.addf %325, %345 : vector<16x256xf32>
    %347 = vector.extract_strided_slice %326 {offsets = [0, 4], sizes = [16, 256], strides = [1, 1]} : vector<16x384xf32> to vector<16x256xf32>
    %c67 = arith.constant 67 : index
    %c0_153 = arith.constant 0 : index
    %c0_154 = arith.constant 0 : index
    %348 = vector.load %arg1[%c67, %c0_153, %c0_154] : memref<81x16x256xf32, #tpu.memory_space<vmem>>, vector<1x16x256xf32>
    %349 = vector.shape_cast %348 : vector<1x16x256xf32> to vector<16x256xf32>
    %350 = arith.mulf %347, %349 : vector<16x256xf32>
    %351 = arith.addf %331, %350 : vector<16x256xf32>
    %352 = vector.extract_strided_slice %326 {offsets = [0, 5], sizes = [16, 256], strides = [1, 1]} : vector<16x384xf32> to vector<16x256xf32>
    %c68 = arith.constant 68 : index
    %c0_155 = arith.constant 0 : index
    %c0_156 = arith.constant 0 : index
    %353 = vector.load %arg1[%c68, %c0_155, %c0_156] : memref<81x16x256xf32, #tpu.memory_space<vmem>>, vector<1x16x256xf32>
    %354 = vector.shape_cast %353 : vector<1x16x256xf32> to vector<16x256xf32>
    %355 = arith.mulf %352, %354 : vector<16x256xf32>
    %356 = arith.addf %336, %355 : vector<16x256xf32>
    %357 = vector.extract_strided_slice %326 {offsets = [0, 6], sizes = [16, 256], strides = [1, 1]} : vector<16x384xf32> to vector<16x256xf32>
    %c69 = arith.constant 69 : index
    %c0_157 = arith.constant 0 : index
    %c0_158 = arith.constant 0 : index
    %358 = vector.load %arg1[%c69, %c0_157, %c0_158] : memref<81x16x256xf32, #tpu.memory_space<vmem>>, vector<1x16x256xf32>
    %359 = vector.shape_cast %358 : vector<1x16x256xf32> to vector<16x256xf32>
    %360 = arith.mulf %357, %359 : vector<16x256xf32>
    %361 = arith.addf %341, %360 : vector<16x256xf32>
    %362 = vector.extract_strided_slice %326 {offsets = [0, 7], sizes = [16, 256], strides = [1, 1]} : vector<16x384xf32> to vector<16x256xf32>
    %c70 = arith.constant 70 : index
    %c0_159 = arith.constant 0 : index
    %c0_160 = arith.constant 0 : index
    %363 = vector.load %arg1[%c70, %c0_159, %c0_160] : memref<81x16x256xf32, #tpu.memory_space<vmem>>, vector<1x16x256xf32>
    %364 = vector.shape_cast %363 : vector<1x16x256xf32> to vector<16x256xf32>
    %365 = arith.mulf %362, %364 : vector<16x256xf32>
    %366 = arith.addf %346, %365 : vector<16x256xf32>
    %367 = vector.extract_strided_slice %326 {offsets = [0, 8], sizes = [16, 256], strides = [1, 1]} : vector<16x384xf32> to vector<16x256xf32>
    %c71 = arith.constant 71 : index
    %c0_161 = arith.constant 0 : index
    %c0_162 = arith.constant 0 : index
    %368 = vector.load %arg1[%c71, %c0_161, %c0_162] : memref<81x16x256xf32, #tpu.memory_space<vmem>>, vector<1x16x256xf32>
    %369 = vector.shape_cast %368 : vector<1x16x256xf32> to vector<16x256xf32>
    %370 = arith.mulf %367, %369 : vector<16x256xf32>
    %371 = arith.addf %351, %370 : vector<16x256xf32>
    %c8_163 = arith.constant 8 : index
    %c0_164 = arith.constant 0 : index
    %372 = vector.load %arg0[%c8_163, %c0_164] : memref<24x384xf32, #tpu.memory_space<vmem>>, vector<16x384xf32>
    %373 = vector.extract_strided_slice %372 {offsets = [0, 0], sizes = [16, 256], strides = [1, 1]} : vector<16x384xf32> to vector<16x256xf32>
    %c72 = arith.constant 72 : index
    %c0_165 = arith.constant 0 : index
    %c0_166 = arith.constant 0 : index
    %374 = vector.load %arg1[%c72, %c0_165, %c0_166] : memref<81x16x256xf32, #tpu.memory_space<vmem>>, vector<1x16x256xf32>
    %375 = vector.shape_cast %374 : vector<1x16x256xf32> to vector<16x256xf32>
    %376 = arith.mulf %373, %375 : vector<16x256xf32>
    %377 = arith.addf %356, %376 : vector<16x256xf32>
    %378 = vector.extract_strided_slice %372 {offsets = [0, 1], sizes = [16, 256], strides = [1, 1]} : vector<16x384xf32> to vector<16x256xf32>
    %c73 = arith.constant 73 : index
    %c0_167 = arith.constant 0 : index
    %c0_168 = arith.constant 0 : index
    %379 = vector.load %arg1[%c73, %c0_167, %c0_168] : memref<81x16x256xf32, #tpu.memory_space<vmem>>, vector<1x16x256xf32>
    %380 = vector.shape_cast %379 : vector<1x16x256xf32> to vector<16x256xf32>
    %381 = arith.mulf %378, %380 : vector<16x256xf32>
    %382 = arith.addf %361, %381 : vector<16x256xf32>
    %383 = vector.extract_strided_slice %372 {offsets = [0, 2], sizes = [16, 256], strides = [1, 1]} : vector<16x384xf32> to vector<16x256xf32>
    %c74 = arith.constant 74 : index
    %c0_169 = arith.constant 0 : index
    %c0_170 = arith.constant 0 : index
    %384 = vector.load %arg1[%c74, %c0_169, %c0_170] : memref<81x16x256xf32, #tpu.memory_space<vmem>>, vector<1x16x256xf32>
    %385 = vector.shape_cast %384 : vector<1x16x256xf32> to vector<16x256xf32>
    %386 = arith.mulf %383, %385 : vector<16x256xf32>
    %387 = arith.addf %366, %386 : vector<16x256xf32>
    %388 = vector.extract_strided_slice %372 {offsets = [0, 3], sizes = [16, 256], strides = [1, 1]} : vector<16x384xf32> to vector<16x256xf32>
    %c75 = arith.constant 75 : index
    %c0_171 = arith.constant 0 : index
    %c0_172 = arith.constant 0 : index
    %389 = vector.load %arg1[%c75, %c0_171, %c0_172] : memref<81x16x256xf32, #tpu.memory_space<vmem>>, vector<1x16x256xf32>
    %390 = vector.shape_cast %389 : vector<1x16x256xf32> to vector<16x256xf32>
    %391 = arith.mulf %388, %390 : vector<16x256xf32>
    %392 = arith.addf %371, %391 : vector<16x256xf32>
    %393 = vector.extract_strided_slice %372 {offsets = [0, 4], sizes = [16, 256], strides = [1, 1]} : vector<16x384xf32> to vector<16x256xf32>
    %c76 = arith.constant 76 : index
    %c0_173 = arith.constant 0 : index
    %c0_174 = arith.constant 0 : index
    %394 = vector.load %arg1[%c76, %c0_173, %c0_174] : memref<81x16x256xf32, #tpu.memory_space<vmem>>, vector<1x16x256xf32>
    %395 = vector.shape_cast %394 : vector<1x16x256xf32> to vector<16x256xf32>
    %396 = arith.mulf %393, %395 : vector<16x256xf32>
    %397 = arith.addf %377, %396 : vector<16x256xf32>
    %398 = vector.extract_strided_slice %372 {offsets = [0, 5], sizes = [16, 256], strides = [1, 1]} : vector<16x384xf32> to vector<16x256xf32>
    %c77 = arith.constant 77 : index
    %c0_175 = arith.constant 0 : index
    %c0_176 = arith.constant 0 : index
    %399 = vector.load %arg1[%c77, %c0_175, %c0_176] : memref<81x16x256xf32, #tpu.memory_space<vmem>>, vector<1x16x256xf32>
    %400 = vector.shape_cast %399 : vector<1x16x256xf32> to vector<16x256xf32>
    %401 = arith.mulf %398, %400 : vector<16x256xf32>
    %402 = arith.addf %382, %401 : vector<16x256xf32>
    %403 = vector.extract_strided_slice %372 {offsets = [0, 6], sizes = [16, 256], strides = [1, 1]} : vector<16x384xf32> to vector<16x256xf32>
    %c78 = arith.constant 78 : index
    %c0_177 = arith.constant 0 : index
    %c0_178 = arith.constant 0 : index
    %404 = vector.load %arg1[%c78, %c0_177, %c0_178] : memref<81x16x256xf32, #tpu.memory_space<vmem>>, vector<1x16x256xf32>
    %405 = vector.shape_cast %404 : vector<1x16x256xf32> to vector<16x256xf32>
    %406 = arith.mulf %403, %405 : vector<16x256xf32>
    %407 = arith.addf %387, %406 : vector<16x256xf32>
    %408 = vector.extract_strided_slice %372 {offsets = [0, 7], sizes = [16, 256], strides = [1, 1]} : vector<16x384xf32> to vector<16x256xf32>
    %c79 = arith.constant 79 : index
    %c0_179 = arith.constant 0 : index
    %c0_180 = arith.constant 0 : index
    %409 = vector.load %arg1[%c79, %c0_179, %c0_180] : memref<81x16x256xf32, #tpu.memory_space<vmem>>, vector<1x16x256xf32>
    %410 = vector.shape_cast %409 : vector<1x16x256xf32> to vector<16x256xf32>
    %411 = arith.mulf %408, %410 : vector<16x256xf32>
    %412 = arith.addf %392, %411 : vector<16x256xf32>
    %413 = vector.extract_strided_slice %372 {offsets = [0, 8], sizes = [16, 256], strides = [1, 1]} : vector<16x384xf32> to vector<16x256xf32>
    %c80 = arith.constant 80 : index
    %c0_181 = arith.constant 0 : index
    %c0_182 = arith.constant 0 : index
    %414 = vector.load %arg1[%c80, %c0_181, %c0_182] : memref<81x16x256xf32, #tpu.memory_space<vmem>>, vector<1x16x256xf32>
    %415 = vector.shape_cast %414 : vector<1x16x256xf32> to vector<16x256xf32>
    %416 = arith.mulf %413, %415 : vector<16x256xf32>
    %417 = arith.addf %397, %416 : vector<16x256xf32>
    %418 = arith.addf %417, %402 : vector<16x256xf32>
    %419 = arith.addf %407, %412 : vector<16x256xf32>
    %420 = arith.addf %418, %419 : vector<16x256xf32>
    %c0_183 = arith.constant 0 : index
    %c0_184 = arith.constant 0 : index
    %421 = vector.load %arg2[%c0_183, %c0_184] : memref<16x256xf32, #tpu.memory_space<vmem>>, vector<16x256xf32>
    tpu.vector_store %arg2[%c0_183, %c0_184], %420 {strides = array<i32>} : memref<16x256xf32, #tpu.memory_space<vmem>>, vector<16x256xf32>,
    return
  }
}

</mosaic_0001>

<llo_original>
// kernel: tpu_custom_call.1
$region0: #{tpu_custom_call.1}
  #allocation0 [shape = 'u32[]', space=smem, size = 0x4, offset = 0x4, fixed_abs, tag = 'smem constant byte address 0x4 - core index']
  #allocation1 [shape = 'u32[72,128]{1,0:T(1,128)}', space=vmem, size = 0x9000, scoped, tag = 'internal scratch']
  %s0 = inlined_call_operand.hbm [shape: f32[24,384], index: 0, kind: input, shape index: {}]
  %s1 = inlined_call_operand.hbm [shape: f32[81,16,256], index: 1, kind: input, shape index: {}]
  %s2 = inlined_call_operand.hbm [shape: f32[16,256], index: 2, kind: output, shape index: {}]
  %s3 = sld [smem:[#allocation0]]
  $region26: #{tpu_custom_call.1} parent=0
    _
  %s5 = ssub.s32 1, %s3
  %s6 = scalar_select 0, %s5, %s3
  $region1: #{tpu_custom_call.1} parent=0
    #allocation2 [shape = 'u8[36864]{0}', space=vmem, size = 0x9000, scoped, tag = 'input window, operand 0, single buffered']
    #allocation3 [shape = 's32[1]{0}', space=sflag, size = 0x4, scoped, tag = 'scoped memory for tpu_custom_call.1']
    #allocation4 [shape = 's32[1]{0}', space=sflag, size = 0x4, scoped, tag = 'scoped memory for tpu_custom_call.1']
    #allocation5 [shape = 'u8[1327104]{0}', space=vmem, size = 0x144000, scoped, tag = 'input window, operand 1, single buffered']
    #allocation6 [shape = 's32[1]{0}', space=sflag, size = 0x4, scoped, tag = 'scoped memory for tpu_custom_call.1']
    #allocation7 [shape = 'u8[16384]{0}', space=vmem, size = 0x4000, scoped, tag = 'output window, operand 0, single buffered']
    %7 = vsyncpa [#allocation3], 0
    %8 = vsyncpa [#allocation6], 0
    %9 = vsyncpa [#allocation4], 0
    // Predicated region
    $region2: #{tpu_custom_call.1} parent=1 // pred_check
      _
    $region3: #{tpu_custom_call.1} parent=1 // pred_check_branch
      %11 = sbr.rel (0) target = $region5
    $region4: #{tpu_custom_call.1} parent=1 // pred_region
      %13 = vsyncadd [#allocation3], 0
      %s14 = sshll.u32 %s0, 4
      %s15 = int_to_ptr.hbm [resolvable:$true] %s14
      %s16 = sshll.u32 [#allocation2], 4
      %s17 = int_to_ptr.vmem [resolvable:$true] %s16
      %22 = dma.hbm_to_vmem [thread:$0]  %s15, 1152, %s17, [#allocation3], 384, 384, 24
    $region5: #{tpu_custom_call.1} parent=1 // pred_fallthru
      _
    // Predicated region
    $region6: #{tpu_custom_call.1} parent=1 // pred_check
      _
    $region7: #{tpu_custom_call.1} parent=1 // pred_check_branch
      %24 = sbr.rel (0) target = $region9
    $region8: #{tpu_custom_call.1} parent=1 // pred_region
      %26 = vsyncadd [#allocation6], 0
      %s27 = sshll.u32 %s1, 4
      %s28 = int_to_ptr.hbm [resolvable:$true] %s27
      %s29 = sshll.u32 [#allocation5], 4
      %s30 = int_to_ptr.vmem [resolvable:$true] %s29
      %35 = dma.hbm_to_vmem [thread:$0]  %s28, 41472, %s30, [#allocation6], 256, 256, 16
    $region9: #{tpu_custom_call.1} parent=1 // pred_fallthru
      _
    // Predicated region
    $region10: #{tpu_custom_call.1} parent=1 // pred_check
      _
    $region11: #{tpu_custom_call.1} parent=1 // pred_check_branch
      %37 = sbr.rel (0) target = $region13
    $region12: #{tpu_custom_call.1} parent=1 // pred_region
      %39 = dma.done [#allocation3], 1152
    $region13: #{tpu_custom_call.1} parent=1 // pred_fallthru
      _
    // Predicated region
    $region14: #{tpu_custom_call.1} parent=1 // pred_check
      _
    $region15: #{tpu_custom_call.1} parent=1 // pred_check_branch
      %41 = sbr.rel (0) target = $region17
    $region16: #{tpu_custom_call.1} parent=1 // pred_region
      %43 = dma.done [#allocation6], 41472
    $region17: #{tpu_custom_call.1} parent=1 // pred_fallthru
      _
    %v44 = vld [vmem:[#allocation2] sm:$0xff]
    %v45 = vld [vmem:[#allocation2 + $0x8] sm:$0xff]
    %v46 = vld [vmem:[#allocation2 + $0x10] sm:$0xff]
    %v47 = vld [vmem:[#allocation2 + $0x18] sm:$0xff]
    %v48 = vld [vmem:[#allocation2 + $0x20] sm:$0xff]
    %v49 = vld [vmem:[#allocation2 + $0x28] sm:$0xff]
    %v50 = vld [vmem:[#allocation5] sm:$0xff]
    %v51 = vld [vmem:[#allocation5 + $0x8] sm:$0xff]
    %v52 = vld [vmem:[#allocation5 + $0x10] sm:$0xff]
    %v53 = vld [vmem:[#allocation5 + $0x18] sm:$0xff]
    %v54 = vmul.f32 %v44, %v50
    %v55 = vmul.f32 %v45, %v51
    %v56 = vmul.f32 %v47, %v52
    %v57 = vmul.f32 %v48, %v53
    %v58 = vadd.f32 %v54, 0.0
    %v59 = vadd.f32 %v55, 0.0
    %v60 = vadd.f32 %v56, 0.0
    %v61 = vadd.f32 %v57, 0.0
    %s62 = scalar_lea.vmem [#allocation5], 32
    %v63 = vld [vmem:[%s62] sm:$0xff]
    %v64 = vld [vmem:[%s62 + $0x8] sm:$0xff]
    %v65 = vld [vmem:[%s62 + $0x10] sm:$0xff]
    %v66 = vld [vmem:[%s62 + $0x18] sm:$0xff]
    %71 = vrot.lane.b32.xlu0 %v63, 1
    %v72 = vpop.permute.xlu0 %71
    %73 = vrot.lane.b32.xlu0 %v64, 1
    %v74 = vpop.permute.xlu0 %73
    %75 = vrot.lane.b32.xlu0 %v65, 1
    %v76 = vpop.permute.xlu0 %75
    %77 = vrot.lane.b32.xlu0 %v66, 1
    %v78 = vpop.permute.xlu0 %77
    %vm79 = vcmask 7168
    %v80 = vsel %vm79, %v72, %v74
    %v81 = vsel %vm79, %v76, %v78
    %v88 = vmul.f32 %v44, %v72
    %v89 = vmul.f32 %v45, %v80
    %v90 = vmul.f32 %v46, %v74
    %v91 = vmul.f32 %v47, %v76
    %v92 = vmul.f32 %v48, %v81
    %v93 = vmul.f32 %v49, %v78
    %v94 = vadd.f32 %v88, 0.0
    %v95 = vadd.f32 %v89, 0.0
    %v96 = vadd.f32 %v90, 0.0
    %v97 = vadd.f32 %v91, 0.0
    %v98 = vadd.f32 %v92, 0.0
    %v99 = vadd.f32 %v93, 0.0
    %s100 = scalar_lea.vmem [#allocation5], 64
    %v101 = vld [vmem:[%s100] sm:$0xff]
    %v102 = vld [vmem:[%s100 + $0x8] sm:$0xff]
    %v103 = vld [vmem:[%s100 + $0x10] sm:$0xff]
    %v104 = vld [vmem:[%s100 + $0x18] sm:$0xff]
    %109 = vrot.lane.b32.xlu0 %v101, 2
    %v110 = vpop.permute.xlu0 %109
    %111 = vrot.lane.b32.xlu0 %v102, 2
    %v112 = vpop.permute.xlu0 %111
    %113 = vrot.lane.b32.xlu0 %v103, 2
    %v114 = vpop.permute.xlu0 %113
    %115 = vrot.lane.b32.xlu0 %v104, 2
    %v116 = vpop.permute.xlu0 %115
    %vm117 = vcmask 15360
    %v118 = vsel %vm117, %v110, %v112
    %v119 = vsel %vm117, %v114, %v116
    %v126 = vmul.f32 %v44, %v110
    %v127 = vmul.f32 %v45, %v118
    %v128 = vmul.f32 %v46, %v112
    %v129 = vmul.f32 %v47, %v114
    %v130 = vmul.f32 %v48, %v119
    %v131 = vmul.f32 %v49, %v116
    %v132 = vadd.f32 %v126, 0.0
    %v133 = vadd.f32 %v127, 0.0
    %v134 = vadd.f32 %v128, 0.0
    %v135 = vadd.f32 %v129, 0.0
    %v136 = vadd.f32 %v130, 0.0
    %v137 = vadd.f32 %v131, 0.0
    %s138 = scalar_lea.vmem [#allocation5], 96
    %v139 = vld [vmem:[%s138] sm:$0xff]
    %v140 = vld [vmem:[%s138 + $0x8] sm:$0xff]
    %v141 = vld [vmem:[%s138 + $0x10] sm:$0xff]
    %v142 = vld [vmem:[%s138 + $0x18] sm:$0xff]
    %147 = vrot.lane.b32.xlu0 %v139, 3
    %v148 = vpop.permute.xlu0 %147
    %149 = vrot.lane.b32.xlu0 %v140, 3
    %v150 = vpop.permute.xlu0 %149
    %151 = vrot.lane.b32.xlu0 %v141, 3
    %v152 = vpop.permute.xlu0 %151
    %153 = vrot.lane.b32.xlu0 %v142, 3
    %v154 = vpop.permute.xlu0 %153
    %vm155 = vcmask 23552
    %v156 = vsel %vm155, %v148, %v150
    %v157 = vsel %vm155, %v152, %v154
    %v164 = vmul.f32 %v44, %v148
    %v165 = vmul.f32 %v45, %v156
    %v166 = vmul.f32 %v46, %v150
    %v167 = vmul.f32 %v47, %v152
    %v168 = vmul.f32 %v48, %v157
    %v169 = vmul.f32 %v49, %v154
    %v170 = vadd.f32 %v164, 0.0
    %v171 = vadd.f32 %v165, 0.0
    %v172 = vadd.f32 %v166, 0.0
    %v173 = vadd.f32 %v167, 0.0
    %v174 = vadd.f32 %v168, 0.0
    %v175 = vadd.f32 %v169, 0.0
    %s176 = scalar_lea.vmem [#allocation5], 128
    %v177 = vld [vmem:[%s176] sm:$0xff]
    %v178 = vld [vmem:[%s176 + $0x8] sm:$0xff]
    %v179 = vld [vmem:[%s176 + $0x10] sm:$0xff]
    %v180 = vld [vmem:[%s176 + $0x18] sm:$0xff]
    %185 = vrot.lane.b32.xlu0 %v177, 4
    %v186 = vpop.permute.xlu0 %185
    %187 = vrot.lane.b32.xlu0 %v178, 4
    %v188 = vpop.permute.xlu0 %187
    %189 = vrot.lane.b32.xlu0 %v179, 4
    %v190 = vpop.permute.xlu0 %189
    %191 = vrot.lane.b32.xlu0 %v180, 4
    %v192 = vpop.permute.xlu0 %191
    %vm193 = vcmask 31744
    %v194 = vsel %vm193, %v186, %v188
    %v195 = vsel %vm193, %v190, %v192
    %v202 = vmul.f32 %v44, %v186
    %v203 = vmul.f32 %v45, %v194
    %v204 = vmul.f32 %v46, %v188
    %v205 = vmul.f32 %v47, %v190
    %v206 = vmul.f32 %v48, %v195
    %v207 = vmul.f32 %v49, %v192
    %214 = vrot.lane.b32.xlu0 %v202, 124
    %v215 = vpop.permute.xlu0 %214
    %216 = vrot.lane.b32.xlu0 %v203, 124
    %v217 = vpop.permute.xlu0 %216
    %218 = vrot.lane.b32.xlu0 %v204, 124
    %v219 = vpop.permute.xlu0 %218
    %220 = vrot.lane.b32.xlu0 %v205, 124
    %v221 = vpop.permute.xlu0 %220
    %222 = vrot.lane.b32.xlu0 %v206, 124
    %v223 = vpop.permute.xlu0 %222
    %224 = vrot.lane.b32.xlu0 %v207, 124
    %v225 = vpop.permute.xlu0 %224
    %vm226 = vcmask 1014784
    %v227 = vsel %vm226, %v215, %v217
    %v228 = vsel %vm226, %v217, %v219
    %v229 = vsel %vm226, %v221, %v223
    %v230 = vsel %vm226, %v223, %v225
    %v235 = vadd.f32 %v58, %v227
    %v236 = vadd.f32 %v59, %v228
    %v237 = vadd.f32 %v60, %v229
    %v238 = vadd.f32 %v61, %v230
    %s239 = scalar_lea.vmem [#allocation5], 160
    %v240 = vld [vmem:[%s239] sm:$0xff]
    %v241 = vld [vmem:[%s239 + $0x8] sm:$0xff]
    %v242 = vld [vmem:[%s239 + $0x10] sm:$0xff]
    %v243 = vld [vmem:[%s239 + $0x18] sm:$0xff]
    %248 = vrot.lane.b32.xlu0 %v240, 5
    %v249 = vpop.permute.xlu0 %248
    %250 = vrot.lane.b32.xlu0 %v241, 5
    %v251 = vpop.permute.xlu0 %250
    %252 = vrot.lane.b32.xlu0 %v242, 5
    %v253 = vpop.permute.xlu0 %252
    %254 = vrot.lane.b32.xlu0 %v243, 5
    %v255 = vpop.permute.xlu0 %254
    %vm256 = vcmask 39936
    %v257 = vsel %vm256, %v249, %v251
    %v258 = vsel %vm256, %v253, %v255
    %v265 = vmul.f32 %v44, %v249
    %v266 = vmul.f32 %v45, %v257
    %v267 = vmul.f32 %v46, %v251
    %v268 = vmul.f32 %v47, %v253
    %v269 = vmul.f32 %v48, %v258
    %v270 = vmul.f32 %v49, %v255
    %277 = vrot.lane.b32.xlu0 %v265, 124
    %v278 = vpop.permute.xlu0 %277
    %279 = vrot.lane.b32.xlu0 %v266, 124
    %v280 = vpop.permute.xlu0 %279
    %281 = vrot.lane.b32.xlu0 %v267, 124
    %v282 = vpop.permute.xlu0 %281
    %283 = vrot.lane.b32.xlu0 %v268, 124
    %v284 = vpop.permute.xlu0 %283
    %285 = vrot.lane.b32.xlu0 %v269, 124
    %v286 = vpop.permute.xlu0 %285
    %287 = vrot.lane.b32.xlu0 %v270, 124
    %v288 = vpop.permute.xlu0 %287
    %v289 = vsel %vm226, %v278, %v280
    %v290 = vsel %vm226, %v280, %v282
    %v291 = vsel %vm226, %v284, %v286
    %v292 = vsel %vm226, %v286, %v288
    %v299 = vadd.f32 %v94, %v289
    %v300 = vadd.f32 %v95, %v290
    %v301 = vadd.f32 %v96, %v282
    %v302 = vadd.f32 %v97, %v291
    %v303 = vadd.f32 %v98, %v292
    %v304 = vadd.f32 %v99, %v288
    %s305 = scalar_lea.vmem [#allocation5], 192
    %v306 = vld [vmem:[%s305] sm:$0xff]
    %v307 = vld [vmem:[%s305 + $0x8] sm:$0xff]
    %v308 = vld [vmem:[%s305 + $0x10] sm:$0xff]
    %v309 = vld [vmem:[%s305 + $0x18] sm:$0xff]
    %314 = vrot.lane.b32.xlu0 %v306, 6
    %v315 = vpop.permute.xlu0 %314
    %316 = vrot.lane.b32.xlu0 %v307, 6
    %v317 = vpop.permute.xlu0 %316
    %318 = vrot.lane.b32.xlu0 %v308, 6
    %v319 = vpop.permute.xlu0 %318
    %320 = vrot.lane.b32.xlu0 %v309, 6
    %v321 = vpop.permute.xlu0 %320
    %vm322 = vcmask 48128
    %v323 = vsel %vm322, %v315, %v317
    %v324 = vsel %vm322, %v319, %v321
    %v331 = vmul.f32 %v44, %v315
    %v332 = vmul.f32 %v45, %v323
    %v333 = vmul.f32 %v46, %v317
    %v334 = vmul.f32 %v47, %v319
    %v335 = vmul.f32 %v48, %v324
    %v336 = vmul.f32 %v49, %v321
    %343 = vrot.lane.b32.xlu0 %v331, 124
    %v344 = vpop.permute.xlu0 %343
    %345 = vrot.lane.b32.xlu0 %v332, 124
    %v346 = vpop.permute.xlu0 %345
    %347 = vrot.lane.b32.xlu0 %v333, 124
    %v348 = vpop.permute.xlu0 %347
    %349 = vrot.lane.b32.xlu0 %v334, 124
    %v350 = vpop.permute.xlu0 %349
    %351 = vrot.lane.b32.xlu0 %v335, 124
    %v352 = vpop.permute.xlu0 %351
    %353 = vrot.lane.b32.xlu0 %v336, 124
    %v354 = vpop.permute.xlu0 %353
    %v355 = vsel %vm226, %v344, %v346
    %v356 = vsel %vm226, %v346, %v348
    %v357 = vsel %vm226, %v350, %v352
    %v358 = vsel %vm226, %v352, %v354
    %v365 = vadd.f32 %v132, %v355
    %v366 = vadd.f32 %v133, %v356
    %v367 = vadd.f32 %v134, %v348
    %v368 = vadd.f32 %v135, %v357
    %v369 = vadd.f32 %v136, %v358
    %v370 = vadd.f32 %v137, %v354
    %s371 = scalar_lea.vmem [#allocation5], 224
    %v372 = vld [vmem:[%s371] sm:$0xff]
    %v373 = vld [vmem:[%s371 + $0x8] sm:$0xff]
    %v374 = vld [vmem:[%s371 + $0x10] sm:$0xff]
    %v375 = vld [vmem:[%s371 + $0x18] sm:$0xff]
    %380 = vrot.lane.b32.xlu0 %v372, 7
    %v381 = vpop.permute.xlu0 %380
    %382 = vrot.lane.b32.xlu0 %v373, 7
    %v383 = vpop.permute.xlu0 %382
    %384 = vrot.lane.b32.xlu0 %v374, 7
    %v385 = vpop.permute.xlu0 %384
    %386 = vrot.lane.b32.xlu0 %v375, 7
    %v387 = vpop.permute.xlu0 %386
    %vm388 = vcmask 56320
    %v389 = vsel %vm388, %v381, %v383
    %v390 = vsel %vm388, %v385, %v387
    %v397 = vmul.f32 %v44, %v381
    %v398 = vmul.f32 %v45, %v389
    %v399 = vmul.f32 %v46, %v383
    %v400 = vmul.f32 %v47, %v385
    %v401 = vmul.f32 %v48, %v390
    %v402 = vmul.f32 %v49, %v387
    %409 = vrot.lane.b32.xlu0 %v397, 124
    %v410 = vpop.permute.xlu0 %409
    %411 = vrot.lane.b32.xlu0 %v398, 124
    %v412 = vpop.permute.xlu0 %411
    %413 = vrot.lane.b32.xlu0 %v399, 124
    %v414 = vpop.permute.xlu0 %413
    %415 = vrot.lane.b32.xlu0 %v400, 124
    %v416 = vpop.permute.xlu0 %415
    %417 = vrot.lane.b32.xlu0 %v401, 124
    %v418 = vpop.permute.xlu0 %417
    %419 = vrot.lane.b32.xlu0 %v402, 124
    %v420 = vpop.permute.xlu0 %419
    %v421 = vsel %vm226, %v410, %v412
    %v422 = vsel %vm226, %v412, %v414
    %v423 = vsel %vm226, %v416, %v418
    %v424 = vsel %vm226, %v418, %v420
    %v431 = vadd.f32 %v170, %v421
    %v432 = vadd.f32 %v171, %v422
    %v433 = vadd.f32 %v172, %v414
    %v434 = vadd.f32 %v173, %v423
    %v435 = vadd.f32 %v174, %v424
    %v436 = vadd.f32 %v175, %v420
    %s437 = scalar_lea.vmem [#allocation5], 256
    %v438 = vld [vmem:[%s437] sm:$0xff]
    %v439 = vld [vmem:[%s437 + $0x8] sm:$0xff]
    %v440 = vld [vmem:[%s437 + $0x10] sm:$0xff]
    %v441 = vld [vmem:[%s437 + $0x18] sm:$0xff]
    %446 = vrot.lane.b32.xlu0 %v438, 8
    %v447 = vpop.permute.xlu0 %446
    %448 = vrot.lane.b32.xlu0 %v439, 8
    %v449 = vpop.permute.xlu0 %448
    %450 = vrot.lane.b32.xlu0 %v440, 8
    %v451 = vpop.permute.xlu0 %450
    %452 = vrot.lane.b32.xlu0 %v441, 8
    %v453 = vpop.permute.xlu0 %452
    %vm454 = vcmask 64512
    %v455 = vsel %vm454, %v447, %v449
    %v456 = vsel %vm454, %v451, %v453
    %v463 = vmul.f32 %v44, %v447
    %v464 = vmul.f32 %v45, %v455
    %v465 = vmul.f32 %v46, %v449
    %v466 = vmul.f32 %v47, %v451
    %v467 = vmul.f32 %v48, %v456
    %v468 = vmul.f32 %v49, %v453
    %475 = vrot.lane.b32.xlu0 %v463, 120
    %v476 = vpop.permute.xlu0 %475
    %477 = vrot.lane.b32.xlu0 %v464, 120
    %v478 = vpop.permute.xlu0 %477
    %479 = vrot.lane.b32.xlu0 %v465, 120
    %v480 = vpop.permute.xlu0 %479
    %481 = vrot.lane.b32.xlu0 %v466, 120
    %v482 = vpop.permute.xlu0 %481
    %483 = vrot.lane.b32.xlu0 %v467, 120
    %v484 = vpop.permute.xlu0 %483
    %485 = vrot.lane.b32.xlu0 %v468, 120
    %v486 = vpop.permute.xlu0 %485
    %vm487 = vcmask 982016
    %v488 = vsel %vm487, %v476, %v478
    %v489 = vsel %vm487, %v478, %v480
    %v490 = vsel %vm487, %v482, %v484
    %v491 = vsel %vm487, %v484, %v486
    %v496 = vadd.f32 %v235, %v488
    %v497 = vadd.f32 %v236, %v489
    %v498 = vadd.f32 %v237, %v490
    %v499 = vadd.f32 %v238, %v491
    %v500 = vld [vmem:[#allocation2] sm:$0xfe]
    %v501 = vld [vmem:[#allocation2 + $0x8] sm:$0xfe]
    %v502 = vld [vmem:[#allocation2 + $0x10] sm:$0xfe]
    %v503 = vld [vmem:[#allocation2 + $0x18] sm:$0xff]
    %v504 = vld [vmem:[#allocation2 + $0x20] sm:$0xff]
    %v505 = vld [vmem:[#allocation2 + $0x28] sm:$0xff]
    %v506 = vld [vmem:[#allocation2 + $0x30] sm:$0x1]
    %v507 = vld [vmem:[#allocation2 + $0x38] sm:$0x1]
    %v508 = vld [vmem:[#allocation2 + $0x40] sm:$0x1]
    %s509 = scalar_lea.vmem [#allocation5], 288
    %v510 = vld [vmem:[%s509] sm:$0xff]
    %v511 = vld [vmem:[%s509 + $0x8] sm:$0xff]
    %v512 = vld [vmem:[%s509 + $0x10] sm:$0xff]
    %v513 = vld [vmem:[%s509 + $0x18] sm:$0xff]
    %vm518 = vcmask 1040384
    %v519 = vrot.slane %v510, 7
    %v520 = vrot.slane %v511, 7
    %v521 = vrot.slane %v512, 7
    %v522 = vsel %vm518, %v519, %v521
    %v523 = vrot.slane %v513, 7
    %v524 = vsel %vm518, %v520, %v523
    %v531 = vmul.f32 %v500, %v519
    %v532 = vmul.f32 %v501, %v520
    %v533 = vmul.f32 %v503, %v522
    %v534 = vmul.f32 %v504, %v524
    %v535 = vmul.f32 %v506, %v521
    %v536 = vmul.f32 %v507, %v523
    %vm543 = vcmask 1046528
    %v544 = vrot.slane %v531, 1
    %v545 = vrot.slane %v533, 1
    %v546 = vsel %vm543, %v544, %v545
    %v547 = vrot.slane %v532, 1
    %v548 = vrot.slane %v534, 1
    %v549 = vsel %vm543, %v547, %v548
    %v550 = vrot.slane %v535, 1
    %v551 = vsel %vm543, %v545, %v550
    %v552 = vrot.slane %v536, 1
    %v553 = vsel %vm543, %v548, %v552
    %554 = vrot.lane.b32.xlu0 %v546, 1
    %v555 = vpop.permute.xlu0 %554
    %556 = vrot.lane.b32.xlu0 %v549, 1
    %v557 = vpop.permute.xlu0 %556
    %558 = vrot.lane.b32.xlu0 %v551, 1
    %v559 = vpop.permute.xlu0 %558
    %560 = vrot.lane.b32.xlu0 %v553, 1
    %v561 = vpop.permute.xlu0 %560
    %v562 = vsel %vm79, %v555, %v557
    %v563 = vsel %vm79, %v559, %v561
    %v570 = vadd.f32 %v299, %v555
    %v571 = vadd.f32 %v300, %v562
    %v572 = vadd.f32 %v301, %v557
    %v573 = vadd.f32 %v302, %v559
    %v574 = vadd.f32 %v303, %v563
    %v575 = vadd.f32 %v304, %v561
    %s576 = scalar_lea.vmem [#allocation5], 320
    %v577 = vld [vmem:[%s576] sm:$0xff]
    %v578 = vld [vmem:[%s576 + $0x8] sm:$0xff]
    %v579 = vld [vmem:[%s576 + $0x10] sm:$0xff]
    %v580 = vld [vmem:[%s576 + $0x18] sm:$0xff]
    %v585 = vrot.slane %v577, 7
    %v586 = vrot.slane %v578, 7
    %v587 = vrot.slane %v579, 7
    %v588 = vsel %vm518, %v585, %v587
    %v589 = vrot.slane %v580, 7
    %v590 = vsel %vm518, %v586, %v589
    %591 = vrot.lane.b32.xlu0 %v585, 1
    %v592 = vpop.permute.xlu0 %591
    %593 = vrot.lane.b32.xlu0 %v586, 1
    %v594 = vpop.permute.xlu0 %593
    %595 = vrot.lane.b32.xlu0 %v588, 1
    %v596 = vpop.permute.xlu0 %595
    %597 = vrot.lane.b32.xlu0 %v590, 1
    %v598 = vpop.permute.xlu0 %597
    %599 = vrot.lane.b32.xlu0 %v587, 1
    %v600 = vpop.permute.xlu0 %599
    %601 = vrot.lane.b32.xlu0 %v589, 1
    %v602 = vpop.permute.xlu0 %601
    %v603 = vsel %vm79, %v592, %v594
    %v604 = vsel %vm79, %v596, %v598
    %v605 = vsel %vm79, %v600, %v602
    %v615 = vmul.f32 %v500, %v592
    %v616 = vmul.f32 %v501, %v603
    %v617 = vmul.f32 %v502, %v594
    %v618 = vmul.f32 %v503, %v596
    %v619 = vmul.f32 %v504, %v604
    %v620 = vmul.f32 %v505, %v598
    %v621 = vmul.f32 %v506, %v600
    %v622 = vmul.f32 %v507, %v605
    %v623 = vmul.f32 %v508, %v602
    %v633 = vrot.slane %v615, 1
    %v634 = vrot.slane %v618, 1
    %v635 = vsel %vm543, %v633, %v634
    %v636 = vrot.slane %v616, 1
    %v637 = vrot.slane %v619, 1
    %v638 = vsel %vm543, %v636, %v637
    %v639 = vrot.slane %v617, 1
    %v640 = vrot.slane %v620, 1
    %v641 = vsel %vm543, %v639, %v640
    %v642 = vrot.slane %v621, 1
    %v643 = vsel %vm543, %v634, %v642
    %v644 = vrot.slane %v622, 1
    %v645 = vsel %vm543, %v637, %v644
    %v646 = vrot.slane %v623, 1
    %v647 = vsel %vm543, %v640, %v646
    %648 = vrot.lane.b32.xlu0 %v635, 1
    %v649 = vpop.permute.xlu0 %648
    %650 = vrot.lane.b32.xlu0 %v638, 1
    %v651 = vpop.permute.xlu0 %650
    %652 = vrot.lane.b32.xlu0 %v641, 1
    %v653 = vpop.permute.xlu0 %652
    %654 = vrot.lane.b32.xlu0 %v643, 1
    %v655 = vpop.permute.xlu0 %654
    %656 = vrot.lane.b32.xlu0 %v645, 1
    %v657 = vpop.permute.xlu0 %656
    %658 = vrot.lane.b32.xlu0 %v647, 1
    %v659 = vpop.permute.xlu0 %658
    %v660 = vsel %vm79, %v649, %v651
    %v661 = vsel %vm79, %v651, %v653
    %v662 = vsel %vm79, %v655, %v657
    %v663 = vsel %vm79, %v657, %v659
    %v670 = vadd.f32 %v365, %v649
    %v671 = vadd.f32 %v366, %v660
    %v672 = vadd.f32 %v367, %v661
    %v673 = vadd.f32 %v368, %v655
    %v674 = vadd.f32 %v369, %v662
    %v675 = vadd.f32 %v370, %v663
    %s676 = scalar_lea.vmem [#allocation5], 352
    %v677 = vld [vmem:[%s676] sm:$0xff]
    %v678 = vld [vmem:[%s676 + $0x8] sm:$0xff]
    %v679 = vld [vmem:[%s676 + $0x10] sm:$0xff]
    %v680 = vld [vmem:[%s676 + $0x18] sm:$0xff]
    %v685 = vrot.slane %v677, 7
    %v686 = vrot.slane %v678, 7
    %v687 = vrot.slane %v679, 7
    %v688 = vsel %vm518, %v685, %v687
    %v689 = vrot.slane %v680, 7
    %v690 = vsel %vm518, %v686, %v689
    %691 = vrot.lane.b32.xlu0 %v685, 2
    %v692 = vpop.permute.xlu0 %691
    %693 = vrot.lane.b32.xlu0 %v686, 2
    %v694 = vpop.permute.xlu0 %693
    %695 = vrot.lane.b32.xlu0 %v688, 2
    %v696 = vpop.permute.xlu0 %695
    %697 = vrot.lane.b32.xlu0 %v690, 2
    %v698 = vpop.permute.xlu0 %697
    %699 = vrot.lane.b32.xlu0 %v687, 2
    %v700 = vpop.permute.xlu0 %699
    %701 = vrot.lane.b32.xlu0 %v689, 2
    %v702 = vpop.permute.xlu0 %701
    %v703 = vsel %vm117, %v692, %v694
    %v704 = vsel %vm117, %v696, %v698
    %v705 = vsel %vm117, %v700, %v702
    %v715 = vmul.f32 %v500, %v692
    %v716 = vmul.f32 %v501, %v703
    %v717 = vmul.f32 %v502, %v694
    %v718 = vmul.f32 %v503, %v696
    %v719 = vmul.f32 %v504, %v704
    %v720 = vmul.f32 %v505, %v698
    %v721 = vmul.f32 %v506, %v700
    %v722 = vmul.f32 %v507, %v705
    %v723 = vmul.f32 %v508, %v702
    %v733 = vrot.slane %v715, 1
    %v734 = vrot.slane %v718, 1
    %v735 = vsel %vm543, %v733, %v734
    %v736 = vrot.slane %v716, 1
    %v737 = vrot.slane %v719, 1
    %v738 = vsel %vm543, %v736, %v737
    %v739 = vrot.slane %v717, 1
    %v740 = vrot.slane %v720, 1
    %v741 = vsel %vm543, %v739, %v740
    %v742 = vrot.slane %v721, 1
    %v743 = vsel %vm543, %v734, %v742
    %v744 = vrot.slane %v722, 1
    %v745 = vsel %vm543, %v737, %v744
    %v746 = vrot.slane %v723, 1
    %v747 = vsel %vm543, %v740, %v746
    %748 = vrot.lane.b32.xlu0 %v735, 1
    %v749 = vpop.permute.xlu0 %748
    %750 = vrot.lane.b32.xlu0 %v738, 1
    %v751 = vpop.permute.xlu0 %750
    %752 = vrot.lane.b32.xlu0 %v741, 1
    %v753 = vpop.permute.xlu0 %752
    %754 = vrot.lane.b32.xlu0 %v743, 1
    %v755 = vpop.permute.xlu0 %754
    %756 = vrot.lane.b32.xlu0 %v745, 1
    %v757 = vpop.permute.xlu0 %756
    %758 = vrot.lane.b32.xlu0 %v747, 1
    %v759 = vpop.permute.xlu0 %758
    %v760 = vsel %vm79, %v749, %v751
    %v761 = vsel %vm79, %v751, %v753
    %v762 = vsel %vm79, %v755, %v757
    %v763 = vsel %vm79, %v757, %v759
    %v770 = vadd.f32 %v431, %v749
    %v771 = vadd.f32 %v432, %v760
    %v772 = vadd.f32 %v433, %v761
    %v773 = vadd.f32 %v434, %v755
    %v774 = vadd.f32 %v435, %v762
    %v775 = vadd.f32 %v436, %v763
    %s776 = scalar_lea.vmem [#allocation5], 384
    %v777 = vld [vmem:[%s776] sm:$0xff]
    %v778 = vld [vmem:[%s776 + $0x8] sm:$0xff]
    %v779 = vld [vmem:[%s776 + $0x10] sm:$0xff]
    %v780 = vld [vmem:[%s776 + $0x18] sm:$0xff]
    %v785 = vrot.slane %v777, 7
    %v786 = vrot.slane %v778, 7
    %v787 = vrot.slane %v779, 7
    %v788 = vsel %vm518, %v785, %v787
    %v789 = vrot.slane %v780, 7
    %v790 = vsel %vm518, %v786, %v789
    %791 = vrot.lane.b32.xlu0 %v785, 3
    %v792 = vpop.permute.xlu0 %791
    %793 = vrot.lane.b32.xlu0 %v786, 3
    %v794 = vpop.permute.xlu0 %793
    %795 = vrot.lane.b32.xlu0 %v788, 3
    %v796 = vpop.permute.xlu0 %795
    %797 = vrot.lane.b32.xlu0 %v790, 3
    %v798 = vpop.permute.xlu0 %797
    %799 = vrot.lane.b32.xlu0 %v787, 3
    %v800 = vpop.permute.xlu0 %799
    %801 = vrot.lane.b32.xlu0 %v789, 3
    %v802 = vpop.permute.xlu0 %801
    %v803 = vsel %vm155, %v792, %v794
    %v804 = vsel %vm155, %v796, %v798
    %v805 = vsel %vm155, %v800, %v802
    %v815 = vmul.f32 %v500, %v792
    %v816 = vmul.f32 %v501, %v803
    %v817 = vmul.f32 %v502, %v794
    %v818 = vmul.f32 %v503, %v796
    %v819 = vmul.f32 %v504, %v804
    %v820 = vmul.f32 %v505, %v798
    %v821 = vmul.f32 %v506, %v800
    %v822 = vmul.f32 %v507, %v805
    %v823 = vmul.f32 %v508, %v802
    %v833 = vrot.slane %v815, 1
    %v834 = vrot.slane %v818, 1
    %v835 = vsel %vm543, %v833, %v834
    %v836 = vrot.slane %v816, 1
    %v837 = vrot.slane %v819, 1
    %v838 = vsel %vm543, %v836, %v837
    %v839 = vrot.slane %v817, 1
    %v840 = vrot.slane %v820, 1
    %v841 = vsel %vm543, %v839, %v840
    %v842 = vrot.slane %v821, 1
    %v843 = vsel %vm543, %v834, %v842
    %v844 = vrot.slane %v822, 1
    %v845 = vsel %vm543, %v837, %v844
    %v846 = vrot.slane %v823, 1
    %v847 = vsel %vm543, %v840, %v846
    %848 = vrot.lane.b32.xlu0 %v835, 125
    %v849 = vpop.permute.xlu0 %848
    %850 = vrot.lane.b32.xlu0 %v838, 125
    %v851 = vpop.permute.xlu0 %850
    %852 = vrot.lane.b32.xlu0 %v841, 125
    %v853 = vpop.permute.xlu0 %852
    %854 = vrot.lane.b32.xlu0 %v843, 125
    %v855 = vpop.permute.xlu0 %854
    %856 = vrot.lane.b32.xlu0 %v845, 125
    %v857 = vpop.permute.xlu0 %856
    %858 = vrot.lane.b32.xlu0 %v847, 125
    %v859 = vpop.permute.xlu0 %858
    %vm860 = vcmask 1022976
    %v861 = vsel %vm860, %v849, %v851
    %v862 = vsel %vm860, %v851, %v853
    %v863 = vsel %vm860, %v855, %v857
    %v864 = vsel %vm860, %v857, %v859
    %v869 = vadd.f32 %v496, %v861
    %v870 = vadd.f32 %v497, %v862
    %v871 = vadd.f32 %v498, %v863
    %v872 = vadd.f32 %v499, %v864
    %s873 = scalar_lea.vmem [#allocation5], 416
    %v874 = vld [vmem:[%s873] sm:$0xff]
    %v875 = vld [vmem:[%s873 + $0x8] sm:$0xff]
    %v876 = vld [vmem:[%s873 + $0x10] sm:$0xff]
    %v877 = vld [vmem:[%s873 + $0x18] sm:$0xff]
    %v882 = vrot.slane %v874, 7
    %v883 = vrot.slane %v875, 7
    %v884 = vrot.slane %v876, 7
    %v885 = vsel %vm518, %v882, %v884
    %v886 = vrot.slane %v877, 7
    %v887 = vsel %vm518, %v883, %v886
    %888 = vrot.lane.b32.xlu0 %v882, 4
    %v889 = vpop.permute.xlu0 %888
    %890 = vrot.lane.b32.xlu0 %v883, 4
    %v891 = vpop.permute.xlu0 %890
    %892 = vrot.lane.b32.xlu0 %v885, 4
    %v893 = vpop.permute.xlu0 %892
    %894 = vrot.lane.b32.xlu0 %v887, 4
    %v895 = vpop.permute.xlu0 %894
    %896 = vrot.lane.b32.xlu0 %v884, 4
    %v897 = vpop.permute.xlu0 %896
    %898 = vrot.lane.b32.xlu0 %v886, 4
    %v899 = vpop.permute.xlu0 %898
    %v900 = vsel %vm193, %v889, %v891
    %v901 = vsel %vm193, %v893, %v895
    %v902 = vsel %vm193, %v897, %v899
    %v912 = vmul.f32 %v500, %v889
    %v913 = vmul.f32 %v501, %v900
    %v914 = vmul.f32 %v502, %v891
    %v915 = vmul.f32 %v503, %v893
    %v916 = vmul.f32 %v504, %v901
    %v917 = vmul.f32 %v505, %v895
    %v918 = vmul.f32 %v506, %v897
    %v919 = vmul.f32 %v507, %v902
    %v920 = vmul.f32 %v508, %v899
    %v930 = vrot.slane %v912, 1
    %v931 = vrot.slane %v915, 1
    %v932 = vsel %vm543, %v930, %v931
    %v933 = vrot.slane %v913, 1
    %v934 = vrot.slane %v916, 1
    %v935 = vsel %vm543, %v933, %v934
    %v936 = vrot.slane %v914, 1
    %v937 = vrot.slane %v917, 1
    %v938 = vsel %vm543, %v936, %v937
    %v939 = vrot.slane %v918, 1
    %v940 = vsel %vm543, %v931, %v939
    %v941 = vrot.slane %v919, 1
    %v942 = vsel %vm543, %v934, %v941
    %v943 = vrot.slane %v920, 1
    %v944 = vsel %vm543, %v937, %v943
    %945 = vrot.lane.b32.xlu0 %v932, 125
    %v946 = vpop.permute.xlu0 %945
    %947 = vrot.lane.b32.xlu0 %v935, 125
    %v948 = vpop.permute.xlu0 %947
    %949 = vrot.lane.b32.xlu0 %v938, 125
    %v950 = vpop.permute.xlu0 %949
    %951 = vrot.lane.b32.xlu0 %v940, 125
    %v952 = vpop.permute.xlu0 %951
    %953 = vrot.lane.b32.xlu0 %v942, 125
    %v954 = vpop.permute.xlu0 %953
    %955 = vrot.lane.b32.xlu0 %v944, 125
    %v956 = vpop.permute.xlu0 %955
    %v957 = vsel %vm860, %v946, %v948
    %v958 = vsel %vm860, %v948, %v950
    %v959 = vsel %vm860, %v952, %v954
    %v960 = vsel %vm860, %v954, %v956
    %v967 = vadd.f32 %v570, %v957
    %v968 = vadd.f32 %v571, %v958
    %v969 = vadd.f32 %v572, %v950
    %v970 = vadd.f32 %v573, %v959
    %v971 = vadd.f32 %v574, %v960
    %v972 = vadd.f32 %v575, %v956
    %s973 = scalar_lea.vmem [#allocation5], 448
    %v974 = vld [vmem:[%s973] sm:$0xff]
    %v975 = vld [vmem:[%s973 + $0x8] sm:$0xff]
    %v976 = vld [vmem:[%s973 + $0x10] sm:$0xff]
    %v977 = vld [vmem:[%s973 + $0x18] sm:$0xff]
    %v982 = vrot.slane %v974, 7
    %v983 = vrot.slane %v975, 7
    %v984 = vrot.slane %v976, 7
    %v985 = vsel %vm518, %v982, %v984
    %v986 = vrot.slane %v977, 7
    %v987 = vsel %vm518, %v983, %v986
    %988 = vrot.lane.b32.xlu0 %v982, 5
    %v989 = vpop.permute.xlu0 %988
    %990 = vrot.lane.b32.xlu0 %v983, 5
    %v991 = vpop.permute.xlu0 %990
    %992 = vrot.lane.b32.xlu0 %v985, 5
    %v993 = vpop.permute.xlu0 %992
    %994 = vrot.lane.b32.xlu0 %v987, 5
    %v995 = vpop.permute.xlu0 %994
    %996 = vrot.lane.b32.xlu0 %v984, 5
    %v997 = vpop.permute.xlu0 %996
    %998 = vrot.lane.b32.xlu0 %v986, 5
    %v999 = vpop.permute.xlu0 %998
    %v1000 = vsel %vm256, %v989, %v991
    %v1001 = vsel %vm256, %v993, %v995
    %v1002 = vsel %vm256, %v997, %v999
    %v1012 = vmul.f32 %v500, %v989
    %v1013 = vmul.f32 %v501, %v1000
    %v1014 = vmul.f32 %v502, %v991
    %v1015 = vmul.f32 %v503, %v993
    %v1016 = vmul.f32 %v504, %v1001
    %v1017 = vmul.f32 %v505, %v995
    %v1018 = vmul.f32 %v506, %v997
    %v1019 = vmul.f32 %v507, %v1002
    %v1020 = vmul.f32 %v508, %v999
    %v1030 = vrot.slane %v1012, 1
    %v1031 = vrot.slane %v1015, 1
    %v1032 = vsel %vm543, %v1030, %v1031
    %v1033 = vrot.slane %v1013, 1
    %v1034 = vrot.slane %v1016, 1
    %v1035 = vsel %vm543, %v1033, %v1034
    %v1036 = vrot.slane %v1014, 1
    %v1037 = vrot.slane %v1017, 1
    %v1038 = vsel %vm543, %v1036, %v1037
    %v1039 = vrot.slane %v1018, 1
    %v1040 = vsel %vm543, %v1031, %v1039
    %v1041 = vrot.slane %v1019, 1
    %v1042 = vsel %vm543, %v1034, %v1041
    %v1043 = vrot.slane %v1020, 1
    %v1044 = vsel %vm543, %v1037, %v1043
    %1045 = vrot.lane.b32.xlu0 %v1032, 125
    %v1046 = vpop.permute.xlu0 %1045
    %1047 = vrot.lane.b32.xlu0 %v1035, 125
    %v1048 = vpop.permute.xlu0 %1047
    %1049 = vrot.lane.b32.xlu0 %v1038, 125
    %v1050 = vpop.permute.xlu0 %1049
    %1051 = vrot.lane.b32.xlu0 %v1040, 125
    %v1052 = vpop.permute.xlu0 %1051
    %1053 = vrot.lane.b32.xlu0 %v1042, 125
    %v1054 = vpop.permute.xlu0 %1053
    %1055 = vrot.lane.b32.xlu0 %v1044, 125
    %v1056 = vpop.permute.xlu0 %1055
    %v1057 = vsel %vm860, %v1046, %v1048
    %v1058 = vsel %vm860, %v1048, %v1050
    %v1059 = vsel %vm860, %v1052, %v1054
    %v1060 = vsel %vm860, %v1054, %v1056
    %v1067 = vadd.f32 %v670, %v1057
    %v1068 = vadd.f32 %v671, %v1058
    %v1069 = vadd.f32 %v672, %v1050
    %v1070 = vadd.f32 %v673, %v1059
    %v1071 = vadd.f32 %v674, %v1060
    %v1072 = vadd.f32 %v675, %v1056
    %s1073 = scalar_lea.vmem [#allocation5], 480
    %v1074 = vld [vmem:[%s1073] sm:$0xff]
    %v1075 = vld [vmem:[%s1073 + $0x8] sm:$0xff]
    %v1076 = vld [vmem:[%s1073 + $0x10] sm:$0xff]
    %v1077 = vld [vmem:[%s1073 + $0x18] sm:$0xff]
    %v1082 = vrot.slane %v1074, 7
    %v1083 = vrot.slane %v1075, 7
    %v1084 = vrot.slane %v1076, 7
    %v1085 = vsel %vm518, %v1082, %v1084
    %v1086 = vrot.slane %v1077, 7
    %v1087 = vsel %vm518, %v1083, %v1086
    %1088 = vrot.lane.b32.xlu0 %v1082, 6
    %v1089 = vpop.permute.xlu0 %1088
    %1090 = vrot.lane.b32.xlu0 %v1083, 6
    %v1091 = vpop.permute.xlu0 %1090
    %1092 = vrot.lane.b32.xlu0 %v1085, 6
    %v1093 = vpop.permute.xlu0 %1092
    %1094 = vrot.lane.b32.xlu0 %v1087, 6
    %v1095 = vpop.permute.xlu0 %1094
    %1096 = vrot.lane.b32.xlu0 %v1084, 6
    %v1097 = vpop.permute.xlu0 %1096
    %1098 = vrot.lane.b32.xlu0 %v1086, 6
    %v1099 = vpop.permute.xlu0 %1098
    %v1100 = vsel %vm322, %v1089, %v1091
    %v1101 = vsel %vm322, %v1093, %v1095
    %v1102 = vsel %vm322, %v1097, %v1099
    %v1112 = vmul.f32 %v500, %v1089
    %v1113 = vmul.f32 %v501, %v1100
    %v1114 = vmul.f32 %v502, %v1091
    %v1115 = vmul.f32 %v503, %v1093
    %v1116 = vmul.f32 %v504, %v1101
    %v1117 = vmul.f32 %v505, %v1095
    %v1118 = vmul.f32 %v506, %v1097
    %v1119 = vmul.f32 %v507, %v1102
    %v1120 = vmul.f32 %v508, %v1099
    %v1130 = vrot.slane %v1112, 1
    %v1131 = vrot.slane %v1115, 1
    %v1132 = vsel %vm543, %v1130, %v1131
    %v1133 = vrot.slane %v1113, 1
    %v1134 = vrot.slane %v1116, 1
    %v1135 = vsel %vm543, %v1133, %v1134
    %v1136 = vrot.slane %v1114, 1
    %v1137 = vrot.slane %v1117, 1
    %v1138 = vsel %vm543, %v1136, %v1137
    %v1139 = vrot.slane %v1118, 1
    %v1140 = vsel %vm543, %v1131, %v1139
    %v1141 = vrot.slane %v1119, 1
    %v1142 = vsel %vm543, %v1134, %v1141
    %v1143 = vrot.slane %v1120, 1
    %v1144 = vsel %vm543, %v1137, %v1143
    %1145 = vrot.lane.b32.xlu0 %v1132, 125
    %v1146 = vpop.permute.xlu0 %1145
    %1147 = vrot.lane.b32.xlu0 %v1135, 125
    %v1148 = vpop.permute.xlu0 %1147
    %1149 = vrot.lane.b32.xlu0 %v1138, 125
    %v1150 = vpop.permute.xlu0 %1149
    %1151 = vrot.lane.b32.xlu0 %v1140, 125
    %v1152 = vpop.permute.xlu0 %1151
    %1153 = vrot.lane.b32.xlu0 %v1142, 125
    %v1154 = vpop.permute.xlu0 %1153
    %1155 = vrot.lane.b32.xlu0 %v1144, 125
    %v1156 = vpop.permute.xlu0 %1155
    %v1157 = vsel %vm860, %v1146, %v1148
    %v1158 = vsel %vm860, %v1148, %v1150
    %v1159 = vsel %vm860, %v1152, %v1154
    %v1160 = vsel %vm860, %v1154, %v1156
    %v1167 = vadd.f32 %v770, %v1157
    %v1168 = vadd.f32 %v771, %v1158
    %v1169 = vadd.f32 %v772, %v1150
    %v1170 = vadd.f32 %v773, %v1159
    %v1171 = vadd.f32 %v774, %v1160
    %v1172 = vadd.f32 %v775, %v1156
    %s1173 = scalar_lea.vmem [#allocation5], 512
    %v1174 = vld [vmem:[%s1173] sm:$0xff]
    %v1175 = vld [vmem:[%s1173 + $0x8] sm:$0xff]
    %v1176 = vld [vmem:[%s1173 + $0x10] sm:$0xff]
    %v1177 = vld [vmem:[%s1173 + $0x18] sm:$0xff]
    %v1182 = vrot.slane %v1174, 7
    %v1183 = vrot.slane %v1175, 7
    %v1184 = vrot.slane %v1176, 7
    %v1185 = vsel %vm518, %v1182, %v1184
    %v1186 = vrot.slane %v1177, 7
    %v1187 = vsel %vm518, %v1183, %v1186
    %1188 = vrot.lane.b32.xlu0 %v1182, 7
    %v1189 = vpop.permute.xlu0 %1188
    %1190 = vrot.lane.b32.xlu0 %v1183, 7
    %v1191 = vpop.permute.xlu0 %1190
    %1192 = vrot.lane.b32.xlu0 %v1185, 7
    %v1193 = vpop.permute.xlu0 %1192
    %1194 = vrot.lane.b32.xlu0 %v1187, 7
    %v1195 = vpop.permute.xlu0 %1194
    %1196 = vrot.lane.b32.xlu0 %v1184, 7
    %v1197 = vpop.permute.xlu0 %1196
    %1198 = vrot.lane.b32.xlu0 %v1186, 7
    %v1199 = vpop.permute.xlu0 %1198
    %v1200 = vsel %vm388, %v1189, %v1191
    %v1201 = vsel %vm388, %v1193, %v1195
    %v1202 = vsel %vm388, %v1197, %v1199
    %v1212 = vmul.f32 %v500, %v1189
    %v1213 = vmul.f32 %v501, %v1200
    %v1214 = vmul.f32 %v502, %v1191
    %v1215 = vmul.f32 %v503, %v1193
    %v1216 = vmul.f32 %v504, %v1201
    %v1217 = vmul.f32 %v505, %v1195
    %v1218 = vmul.f32 %v506, %v1197
    %v1219 = vmul.f32 %v507, %v1202
    %v1220 = vmul.f32 %v508, %v1199
    %v1230 = vrot.slane %v1212, 1
    %v1231 = vrot.slane %v1215, 1
    %v1232 = vsel %vm543, %v1230, %v1231
    %v1233 = vrot.slane %v1213, 1
    %v1234 = vrot.slane %v1216, 1
    %v1235 = vsel %vm543, %v1233, %v1234
    %v1236 = vrot.slane %v1214, 1
    %v1237 = vrot.slane %v1217, 1
    %v1238 = vsel %vm543, %v1236, %v1237
    %v1239 = vrot.slane %v1218, 1
    %v1240 = vsel %vm543, %v1231, %v1239
    %v1241 = vrot.slane %v1219, 1
    %v1242 = vsel %vm543, %v1234, %v1241
    %v1243 = vrot.slane %v1220, 1
    %v1244 = vsel %vm543, %v1237, %v1243
    %1245 = vrot.lane.b32.xlu0 %v1232, 121
    %v1246 = vpop.permute.xlu0 %1245
    %1247 = vrot.lane.b32.xlu0 %v1235, 121
    %v1248 = vpop.permute.xlu0 %1247
    %1249 = vrot.lane.b32.xlu0 %v1238, 121
    %v1250 = vpop.permute.xlu0 %1249
    %1251 = vrot.lane.b32.xlu0 %v1240, 121
    %v1252 = vpop.permute.xlu0 %1251
    %1253 = vrot.lane.b32.xlu0 %v1242, 121
    %v1254 = vpop.permute.xlu0 %1253
    %1255 = vrot.lane.b32.xlu0 %v1244, 121
    %v1256 = vpop.permute.xlu0 %1255
    %vm1257 = vcmask 990208
    %v1258 = vsel %vm1257, %v1246, %v1248
    %v1259 = vsel %vm1257, %v1248, %v1250
    %v1260 = vsel %vm1257, %v1252, %v1254
    %v1261 = vsel %vm1257, %v1254, %v1256
    %v1266 = vadd.f32 %v869, %v1258
    %v1267 = vadd.f32 %v870, %v1259
    %v1268 = vadd.f32 %v871, %v1260
    %v1269 = vadd.f32 %v872, %v1261
    %s1270 = scalar_lea.vmem [#allocation5], 544
    %v1271 = vld [vmem:[%s1270] sm:$0xff]
    %v1272 = vld [vmem:[%s1270 + $0x8] sm:$0xff]
    %v1273 = vld [vmem:[%s1270 + $0x10] sm:$0xff]
    %v1274 = vld [vmem:[%s1270 + $0x18] sm:$0xff]
    %v1279 = vrot.slane %v1271, 7
    %v1280 = vrot.slane %v1272, 7
    %v1281 = vrot.slane %v1273, 7
    %v1282 = vsel %vm518, %v1279, %v1281
    %v1283 = vrot.slane %v1274, 7
    %v1284 = vsel %vm518, %v1280, %v1283
    %1285 = vrot.lane.b32.xlu0 %v1279, 8
    %v1286 = vpop.permute.xlu0 %1285
    %1287 = vrot.lane.b32.xlu0 %v1280, 8
    %v1288 = vpop.permute.xlu0 %1287
    %1289 = vrot.lane.b32.xlu0 %v1282, 8
    %v1290 = vpop.permute.xlu0 %1289
    %1291 = vrot.lane.b32.xlu0 %v1284, 8
    %v1292 = vpop.permute.xlu0 %1291
    %1293 = vrot.lane.b32.xlu0 %v1281, 8
    %v1294 = vpop.permute.xlu0 %1293
    %1295 = vrot.lane.b32.xlu0 %v1283, 8
    %v1296 = vpop.permute.xlu0 %1295
    %v1297 = vsel %vm454, %v1286, %v1288
    %v1298 = vsel %vm454, %v1290, %v1292
    %v1299 = vsel %vm454, %v1294, %v1296
    %v1309 = vmul.f32 %v500, %v1286
    %v1310 = vmul.f32 %v501, %v1297
    %v1311 = vmul.f32 %v502, %v1288
    %v1312 = vmul.f32 %v503, %v1290
    %v1313 = vmul.f32 %v504, %v1298
    %v1314 = vmul.f32 %v505, %v1292
    %v1315 = vmul.f32 %v506, %v1294
    %v1316 = vmul.f32 %v507, %v1299
    %v1317 = vmul.f32 %v508, %v1296
    %v1327 = vrot.slane %v1309, 1
    %v1328 = vrot.slane %v1312, 1
    %v1329 = vsel %vm543, %v1327, %v1328
    %v1330 = vrot.slane %v1310, 1
    %v1331 = vrot.slane %v1313, 1
    %v1332 = vsel %vm543, %v1330, %v1331
    %v1333 = vrot.slane %v1311, 1
    %v1334 = vrot.slane %v1314, 1
    %v1335 = vsel %vm543, %v1333, %v1334
    %v1336 = vrot.slane %v1315, 1
    %v1337 = vsel %vm543, %v1328, %v1336
    %v1338 = vrot.slane %v1316, 1
    %v1339 = vsel %vm543, %v1331, %v1338
    %v1340 = vrot.slane %v1317, 1
    %v1341 = vsel %vm543, %v1334, %v1340
    %1342 = vrot.lane.b32.xlu0 %v1329, 121
    %v1343 = vpop.permute.xlu0 %1342
    %1344 = vrot.lane.b32.xlu0 %v1332, 121
    %v1345 = vpop.permute.xlu0 %1344
    %1346 = vrot.lane.b32.xlu0 %v1335, 121
    %v1347 = vpop.permute.xlu0 %1346
    %1348 = vrot.lane.b32.xlu0 %v1337, 121
    %v1349 = vpop.permute.xlu0 %1348
    %1350 = vrot.lane.b32.xlu0 %v1339, 121
    %v1351 = vpop.permute.xlu0 %1350
    %1352 = vrot.lane.b32.xlu0 %v1341, 121
    %v1353 = vpop.permute.xlu0 %1352
    %v1354 = vsel %vm1257, %v1343, %v1345
    %v1355 = vsel %vm1257, %v1345, %v1347
    %v1356 = vsel %vm1257, %v1349, %v1351
    %v1357 = vsel %vm1257, %v1351, %v1353
    %v1364 = vadd.f32 %v967, %v1354
    %v1365 = vadd.f32 %v968, %v1355
    %v1366 = vadd.f32 %v969, %v1347
    %v1367 = vadd.f32 %v970, %v1356
    %v1368 = vadd.f32 %v971, %v1357
    %v1369 = vadd.f32 %v972, %v1353
    %v1370 = vld [vmem:[#allocation2] sm:$0xfc]
    %v1371 = vld [vmem:[#allocation2 + $0x8] sm:$0xfc]
    %v1372 = vld [vmem:[#allocation2 + $0x10] sm:$0xfc]
    %v1373 = vld [vmem:[#allocation2 + $0x30] sm:$0x3]
    %v1374 = vld [vmem:[#allocation2 + $0x38] sm:$0x3]
    %v1375 = vld [vmem:[#allocation2 + $0x40] sm:$0x3]
    %s1376 = scalar_lea.vmem [#allocation5], 576
    %v1377 = vld [vmem:[%s1376] sm:$0xff]
    %v1378 = vld [vmem:[%s1376 + $0x8] sm:$0xff]
    %v1379 = vld [vmem:[%s1376 + $0x10] sm:$0xff]
    %v1380 = vld [vmem:[%s1376 + $0x18] sm:$0xff]
    %vm1385 = vcmask 1041408
    %v1386 = vrot.slane %v1377, 6
    %v1387 = vrot.slane %v1378, 6
    %v1388 = vrot.slane %v1379, 6
    %v1389 = vsel %vm1385, %v1386, %v1388
    %v1390 = vrot.slane %v1380, 6
    %v1391 = vsel %vm1385, %v1387, %v1390
    %v1398 = vmul.f32 %v1370, %v1386
    %v1399 = vmul.f32 %v1371, %v1387
    %v1400 = vmul.f32 %v503, %v1389
    %v1401 = vmul.f32 %v504, %v1391
    %v1402 = vmul.f32 %v1373, %v1388
    %v1403 = vmul.f32 %v1374, %v1390
    %vm1410 = vcmask 1045504
    %v1411 = vrot.slane %v1398, 2
    %v1412 = vrot.slane %v1400, 2
    %v1413 = vsel %vm1410, %v1411, %v1412
    %v1414 = vrot.slane %v1399, 2
    %v1415 = vrot.slane %v1401, 2
    %v1416 = vsel %vm1410, %v1414, %v1415
    %v1417 = vrot.slane %v1402, 2
    %v1418 = vsel %vm1410, %v1412, %v1417
    %v1419 = vrot.slane %v1403, 2
    %v1420 = vsel %vm1410, %v1415, %v1419
    %1421 = vrot.lane.b32.xlu0 %v1413, 2
    %v1422 = vpop.permute.xlu0 %1421
    %1423 = vrot.lane.b32.xlu0 %v1416, 2
    %v1424 = vpop.permute.xlu0 %1423
    %1425 = vrot.lane.b32.xlu0 %v1418, 2
    %v1426 = vpop.permute.xlu0 %1425
    %1427 = vrot.lane.b32.xlu0 %v1420, 2
    %v1428 = vpop.permute.xlu0 %1427
    %v1429 = vsel %vm117, %v1422, %v1424
    %v1430 = vsel %vm117, %v1426, %v1428
    %v1437 = vadd.f32 %v1067, %v1422
    %v1438 = vadd.f32 %v1068, %v1429
    %v1439 = vadd.f32 %v1069, %v1424
    %v1440 = vadd.f32 %v1070, %v1426
    %v1441 = vadd.f32 %v1071, %v1430
    %v1442 = vadd.f32 %v1072, %v1428
    %s1443 = scalar_lea.vmem [#allocation5], 608
    %v1444 = vld [vmem:[%s1443] sm:$0xff]
    %v1445 = vld [vmem:[%s1443 + $0x8] sm:$0xff]
    %v1446 = vld [vmem:[%s1443 + $0x10] sm:$0xff]
    %v1447 = vld [vmem:[%s1443 + $0x18] sm:$0xff]
    %v1452 = vrot.slane %v1444, 6
    %v1453 = vrot.slane %v1445, 6
    %v1454 = vrot.slane %v1446, 6
    %v1455 = vsel %vm1385, %v1452, %v1454
    %v1456 = vrot.slane %v1447, 6
    %v1457 = vsel %vm1385, %v1453, %v1456
    %1458 = vrot.lane.b32.xlu0 %v1452, 1
    %v1459 = vpop.permute.xlu0 %1458
    %1460 = vrot.lane.b32.xlu0 %v1453, 1
    %v1461 = vpop.permute.xlu0 %1460
    %1462 = vrot.lane.b32.xlu0 %v1455, 1
    %v1463 = vpop.permute.xlu0 %1462
    %1464 = vrot.lane.b32.xlu0 %v1457, 1
    %v1465 = vpop.permute.xlu0 %1464
    %1466 = vrot.lane.b32.xlu0 %v1454, 1
    %v1467 = vpop.permute.xlu0 %1466
    %1468 = vrot.lane.b32.xlu0 %v1456, 1
    %v1469 = vpop.permute.xlu0 %1468
    %v1470 = vsel %vm79, %v1459, %v1461
    %v1471 = vsel %vm79, %v1463, %v1465
    %v1472 = vsel %vm79, %v1467, %v1469
    %v1482 = vmul.f32 %v1370, %v1459
    %v1483 = vmul.f32 %v1371, %v1470
    %v1484 = vmul.f32 %v1372, %v1461
    %v1485 = vmul.f32 %v503, %v1463
    %v1486 = vmul.f32 %v504, %v1471
    %v1487 = vmul.f32 %v505, %v1465
    %v1488 = vmul.f32 %v1373, %v1467
    %v1489 = vmul.f32 %v1374, %v1472
    %v1490 = vmul.f32 %v1375, %v1469
    %v1500 = vrot.slane %v1482, 2
    %v1501 = vrot.slane %v1485, 2
    %v1502 = vsel %vm1410, %v1500, %v1501
    %v1503 = vrot.slane %v1483, 2
    %v1504 = vrot.slane %v1486, 2
    %v1505 = vsel %vm1410, %v1503, %v1504
    %v1506 = vrot.slane %v1484, 2
    %v1507 = vrot.slane %v1487, 2
    %v1508 = vsel %vm1410, %v1506, %v1507
    %v1509 = vrot.slane %v1488, 2
    %v1510 = vsel %vm1410, %v1501, %v1509
    %v1511 = vrot.slane %v1489, 2
    %v1512 = vsel %vm1410, %v1504, %v1511
    %v1513 = vrot.slane %v1490, 2
    %v1514 = vsel %vm1410, %v1507, %v1513
    %1515 = vrot.lane.b32.xlu0 %v1502, 2
    %v1516 = vpop.permute.xlu0 %1515
    %1517 = vrot.lane.b32.xlu0 %v1505, 2
    %v1518 = vpop.permute.xlu0 %1517
    %1519 = vrot.lane.b32.xlu0 %v1508, 2
    %v1520 = vpop.permute.xlu0 %1519
    %1521 = vrot.lane.b32.xlu0 %v1510, 2
    %v1522 = vpop.permute.xlu0 %1521
    %1523 = vrot.lane.b32.xlu0 %v1512, 2
    %v1524 = vpop.permute.xlu0 %1523
    %1525 = vrot.lane.b32.xlu0 %v1514, 2
    %v1526 = vpop.permute.xlu0 %1525
    %v1527 = vsel %vm117, %v1516, %v1518
    %v1528 = vsel %vm117, %v1518, %v1520
    %v1529 = vsel %vm117, %v1522, %v1524
    %v1530 = vsel %vm117, %v1524, %v1526
    %v1537 = vadd.f32 %v1167, %v1516
    %v1538 = vadd.f32 %v1168, %v1527
    %v1539 = vadd.f32 %v1169, %v1528
    %v1540 = vadd.f32 %v1170, %v1522
    %v1541 = vadd.f32 %v1171, %v1529
    %v1542 = vadd.f32 %v1172, %v1530
    %s1543 = scalar_lea.vmem [#allocation5], 640
    %v1544 = vld [vmem:[%s1543] sm:$0xff]
    %v1545 = vld [vmem:[%s1543 + $0x8] sm:$0xff]
    %v1546 = vld [vmem:[%s1543 + $0x10] sm:$0xff]
    %v1547 = vld [vmem:[%s1543 + $0x18] sm:$0xff]
    %v1552 = vrot.slane %v1544, 6
    %v1553 = vrot.slane %v1545, 6
    %v1554 = vrot.slane %v1546, 6
    %v1555 = vsel %vm1385, %v1552, %v1554
    %v1556 = vrot.slane %v1547, 6
    %v1557 = vsel %vm1385, %v1553, %v1556
    %1558 = vrot.lane.b32.xlu0 %v1552, 2
    %v1559 = vpop.permute.xlu0 %1558
    %1560 = vrot.lane.b32.xlu0 %v1553, 2
    %v1561 = vpop.permute.xlu0 %1560
    %1562 = vrot.lane.b32.xlu0 %v1555, 2
    %v1563 = vpop.permute.xlu0 %1562
    %1564 = vrot.lane.b32.xlu0 %v1557, 2
    %v1565 = vpop.permute.xlu0 %1564
    %1566 = vrot.lane.b32.xlu0 %v1554, 2
    %v1567 = vpop.permute.xlu0 %1566
    %1568 = vrot.lane.b32.xlu0 %v1556, 2
    %v1569 = vpop.permute.xlu0 %1568
    %v1570 = vsel %vm117, %v1559, %v1561
    %v1571 = vsel %vm117, %v1563, %v1565
    %v1572 = vsel %vm117, %v1567, %v1569
    %v1582 = vmul.f32 %v1370, %v1559
    %v1583 = vmul.f32 %v1371, %v1570
    %v1584 = vmul.f32 %v1372, %v1561
    %v1585 = vmul.f32 %v503, %v1563
    %v1586 = vmul.f32 %v504, %v1571
    %v1587 = vmul.f32 %v505, %v1565
    %v1588 = vmul.f32 %v1373, %v1567
    %v1589 = vmul.f32 %v1374, %v1572
    %v1590 = vmul.f32 %v1375, %v1569
    %v1600 = vrot.slane %v1582, 2
    %v1601 = vrot.slane %v1585, 2
    %v1602 = vsel %vm1410, %v1600, %v1601
    %v1603 = vrot.slane %v1583, 2
    %v1604 = vrot.slane %v1586, 2
    %v1605 = vsel %vm1410, %v1603, %v1604
    %v1606 = vrot.slane %v1584, 2
    %v1607 = vrot.slane %v1587, 2
    %v1608 = vsel %vm1410, %v1606, %v1607
    %v1609 = vrot.slane %v1588, 2
    %v1610 = vsel %vm1410, %v1601, %v1609
    %v1611 = vrot.slane %v1589, 2
    %v1612 = vsel %vm1410, %v1604, %v1611
    %v1613 = vrot.slane %v1590, 2
    %v1614 = vsel %vm1410, %v1607, %v1613
    %1615 = vrot.lane.b32.xlu0 %v1602, 126
    %v1616 = vpop.permute.xlu0 %1615
    %1617 = vrot.lane.b32.xlu0 %v1605, 126
    %v1618 = vpop.permute.xlu0 %1617
    %1619 = vrot.lane.b32.xlu0 %v1608, 126
    %v1620 = vpop.permute.xlu0 %1619
    %1621 = vrot.lane.b32.xlu0 %v1610, 126
    %v1622 = vpop.permute.xlu0 %1621
    %1623 = vrot.lane.b32.xlu0 %v1612, 126
    %v1624 = vpop.permute.xlu0 %1623
    %1625 = vrot.lane.b32.xlu0 %v1614, 126
    %v1626 = vpop.permute.xlu0 %1625
    %vm1627 = vcmask 1031168
    %v1628 = vsel %vm1627, %v1616, %v1618
    %v1629 = vsel %vm1627, %v1618, %v1620
    %v1630 = vsel %vm1627, %v1622, %v1624
    %v1631 = vsel %vm1627, %v1624, %v1626
    %v1636 = vadd.f32 %v1266, %v1628
    %v1637 = vadd.f32 %v1267, %v1629
    %v1638 = vadd.f32 %v1268, %v1630
    %v1639 = vadd.f32 %v1269, %v1631
    %s1640 = scalar_lea.vmem [#allocation5], 672
    %v1641 = vld [vmem:[%s1640] sm:$0xff]
    %v1642 = vld [vmem:[%s1640 + $0x8] sm:$0xff]
    %v1643 = vld [vmem:[%s1640 + $0x10] sm:$0xff]
    %v1644 = vld [vmem:[%s1640 + $0x18] sm:$0xff]
    %v1649 = vrot.slane %v1641, 6
    %v1650 = vrot.slane %v1642, 6
    %v1651 = vrot.slane %v1643, 6
    %v1652 = vsel %vm1385, %v1649, %v1651
    %v1653 = vrot.slane %v1644, 6
    %v1654 = vsel %vm1385, %v1650, %v1653
    %1655 = vrot.lane.b32.xlu0 %v1649, 3
    %v1656 = vpop.permute.xlu0 %1655
    %1657 = vrot.lane.b32.xlu0 %v1650, 3
    %v1658 = vpop.permute.xlu0 %1657
    %1659 = vrot.lane.b32.xlu0 %v1652, 3
    %v1660 = vpop.permute.xlu0 %1659
    %1661 = vrot.lane.b32.xlu0 %v1654, 3
    %v1662 = vpop.permute.xlu0 %1661
    %1663 = vrot.lane.b32.xlu0 %v1651, 3
    %v1664 = vpop.permute.xlu0 %1663
    %1665 = vrot.lane.b32.xlu0 %v1653, 3
    %v1666 = vpop.permute.xlu0 %1665
    %v1667 = vsel %vm155, %v1656, %v1658
    %v1668 = vsel %vm155, %v1660, %v1662
    %v1669 = vsel %vm155, %v1664, %v1666
    %v1679 = vmul.f32 %v1370, %v1656
    %v1680 = vmul.f32 %v1371, %v1667
    %v1681 = vmul.f32 %v1372, %v1658
    %v1682 = vmul.f32 %v503, %v1660
    %v1683 = vmul.f32 %v504, %v1668
    %v1684 = vmul.f32 %v505, %v1662
    %v1685 = vmul.f32 %v1373, %v1664
    %v1686 = vmul.f32 %v1374, %v1669
    %v1687 = vmul.f32 %v1375, %v1666
    %v1697 = vrot.slane %v1679, 2
    %v1698 = vrot.slane %v1682, 2
    %v1699 = vsel %vm1410, %v1697, %v1698
    %v1700 = vrot.slane %v1680, 2
    %v1701 = vrot.slane %v1683, 2
    %v1702 = vsel %vm1410, %v1700, %v1701
    %v1703 = vrot.slane %v1681, 2
    %v1704 = vrot.slane %v1684, 2
    %v1705 = vsel %vm1410, %v1703, %v1704
    %v1706 = vrot.slane %v1685, 2
    %v1707 = vsel %vm1410, %v1698, %v1706
    %v1708 = vrot.slane %v1686, 2
    %v1709 = vsel %vm1410, %v1701, %v1708
    %v1710 = vrot.slane %v1687, 2
    %v1711 = vsel %vm1410, %v1704, %v1710
    %1712 = vrot.lane.b32.xlu0 %v1699, 126
    %v1713 = vpop.permute.xlu0 %1712
    %1714 = vrot.lane.b32.xlu0 %v1702, 126
    %v1715 = vpop.permute.xlu0 %1714
    %1716 = vrot.lane.b32.xlu0 %v1705, 126
    %v1717 = vpop.permute.xlu0 %1716
    %1718 = vrot.lane.b32.xlu0 %v1707, 126
    %v1719 = vpop.permute.xlu0 %1718
    %1720 = vrot.lane.b32.xlu0 %v1709, 126
    %v1721 = vpop.permute.xlu0 %1720
    %1722 = vrot.lane.b32.xlu0 %v1711, 126
    %v1723 = vpop.permute.xlu0 %1722
    %v1724 = vsel %vm1627, %v1713, %v1715
    %v1725 = vsel %vm1627, %v1715, %v1717
    %v1726 = vsel %vm1627, %v1719, %v1721
    %v1727 = vsel %vm1627, %v1721, %v1723
    %v1734 = vadd.f32 %v1364, %v1724
    %v1735 = vadd.f32 %v1365, %v1725
    %v1736 = vadd.f32 %v1366, %v1717
    %v1737 = vadd.f32 %v1367, %v1726
    %v1738 = vadd.f32 %v1368, %v1727
    %v1739 = vadd.f32 %v1369, %v1723
    %s1740 = scalar_lea.vmem [#allocation5], 704
    %v1741 = vld [vmem:[%s1740] sm:$0xff]
    %v1742 = vld [vmem:[%s1740 + $0x8] sm:$0xff]
    %v1743 = vld [vmem:[%s1740 + $0x10] sm:$0xff]
    %v1744 = vld [vmem:[%s1740 + $0x18] sm:$0xff]
    %v1749 = vrot.slane %v1741, 6
    %v1750 = vrot.slane %v1742, 6
    %v1751 = vrot.slane %v1743, 6
    %v1752 = vsel %vm1385, %v1749, %v1751
    %v1753 = vrot.slane %v1744, 6
    %v1754 = vsel %vm1385, %v1750, %v1753
    %1755 = vrot.lane.b32.xlu0 %v1749, 4
    %v1756 = vpop.permute.xlu0 %1755
    %1757 = vrot.lane.b32.xlu0 %v1750, 4
    %v1758 = vpop.permute.xlu0 %1757
    %1759 = vrot.lane.b32.xlu0 %v1752, 4
    %v1760 = vpop.permute.xlu0 %1759
    %1761 = vrot.lane.b32.xlu0 %v1754, 4
    %v1762 = vpop.permute.xlu0 %1761
    %1763 = vrot.lane.b32.xlu0 %v1751, 4
    %v1764 = vpop.permute.xlu0 %1763
    %1765 = vrot.lane.b32.xlu0 %v1753, 4
    %v1766 = vpop.permute.xlu0 %1765
    %v1767 = vsel %vm193, %v1756, %v1758
    %v1768 = vsel %vm193, %v1760, %v1762
    %v1769 = vsel %vm193, %v1764, %v1766
    %v1779 = vmul.f32 %v1370, %v1756
    %v1780 = vmul.f32 %v1371, %v1767
    %v1781 = vmul.f32 %v1372, %v1758
    %v1782 = vmul.f32 %v503, %v1760
    %v1783 = vmul.f32 %v504, %v1768
    %v1784 = vmul.f32 %v505, %v1762
    %v1785 = vmul.f32 %v1373, %v1764
    %v1786 = vmul.f32 %v1374, %v1769
    %v1787 = vmul.f32 %v1375, %v1766
    %v1797 = vrot.slane %v1779, 2
    %v1798 = vrot.slane %v1782, 2
    %v1799 = vsel %vm1410, %v1797, %v1798
    %v1800 = vrot.slane %v1780, 2
    %v1801 = vrot.slane %v1783, 2
    %v1802 = vsel %vm1410, %v1800, %v1801
    %v1803 = vrot.slane %v1781, 2
    %v1804 = vrot.slane %v1784, 2
    %v1805 = vsel %vm1410, %v1803, %v1804
    %v1806 = vrot.slane %v1785, 2
    %v1807 = vsel %vm1410, %v1798, %v1806
    %v1808 = vrot.slane %v1786, 2
    %v1809 = vsel %vm1410, %v1801, %v1808
    %v1810 = vrot.slane %v1787, 2
    %v1811 = vsel %vm1410, %v1804, %v1810
    %1812 = vrot.lane.b32.xlu0 %v1799, 126
    %v1813 = vpop.permute.xlu0 %1812
    %1814 = vrot.lane.b32.xlu0 %v1802, 126
    %v1815 = vpop.permute.xlu0 %1814
    %1816 = vrot.lane.b32.xlu0 %v1805, 126
    %v1817 = vpop.permute.xlu0 %1816
    %1818 = vrot.lane.b32.xlu0 %v1807, 126
    %v1819 = vpop.permute.xlu0 %1818
    %1820 = vrot.lane.b32.xlu0 %v1809, 126
    %v1821 = vpop.permute.xlu0 %1820
    %1822 = vrot.lane.b32.xlu0 %v1811, 126
    %v1823 = vpop.permute.xlu0 %1822
    %v1824 = vsel %vm1627, %v1813, %v1815
    %v1825 = vsel %vm1627, %v1815, %v1817
    %v1826 = vsel %vm1627, %v1819, %v1821
    %v1827 = vsel %vm1627, %v1821, %v1823
    %v1834 = vadd.f32 %v1437, %v1824
    %v1835 = vadd.f32 %v1438, %v1825
    %v1836 = vadd.f32 %v1439, %v1817
    %v1837 = vadd.f32 %v1440, %v1826
    %v1838 = vadd.f32 %v1441, %v1827
    %v1839 = vadd.f32 %v1442, %v1823
    %s1840 = scalar_lea.vmem [#allocation5], 736
    %v1841 = vld [vmem:[%s1840] sm:$0xff]
    %v1842 = vld [vmem:[%s1840 + $0x8] sm:$0xff]
    %v1843 = vld [vmem:[%s1840 + $0x10] sm:$0xff]
    %v1844 = vld [vmem:[%s1840 + $0x18] sm:$0xff]
    %v1849 = vrot.slane %v1841, 6
    %v1850 = vrot.slane %v1842, 6
    %v1851 = vrot.slane %v1843, 6
    %v1852 = vsel %vm1385, %v1849, %v1851
    %v1853 = vrot.slane %v1844, 6
    %v1854 = vsel %vm1385, %v1850, %v1853
    %1855 = vrot.lane.b32.xlu0 %v1849, 5
    %v1856 = vpop.permute.xlu0 %1855
    %1857 = vrot.lane.b32.xlu0 %v1850, 5
    %v1858 = vpop.permute.xlu0 %1857
    %1859 = vrot.lane.b32.xlu0 %v1852, 5
    %v1860 = vpop.permute.xlu0 %1859
    %1861 = vrot.lane.b32.xlu0 %v1854, 5
    %v1862 = vpop.permute.xlu0 %1861
    %1863 = vrot.lane.b32.xlu0 %v1851, 5
    %v1864 = vpop.permute.xlu0 %1863
    %1865 = vrot.lane.b32.xlu0 %v1853, 5
    %v1866 = vpop.permute.xlu0 %1865
    %v1867 = vsel %vm256, %v1856, %v1858
    %v1868 = vsel %vm256, %v1860, %v1862
    %v1869 = vsel %vm256, %v1864, %v1866
    %v1879 = vmul.f32 %v1370, %v1856
    %v1880 = vmul.f32 %v1371, %v1867
    %v1881 = vmul.f32 %v1372, %v1858
    %v1882 = vmul.f32 %v503, %v1860
    %v1883 = vmul.f32 %v504, %v1868
    %v1884 = vmul.f32 %v505, %v1862
    %v1885 = vmul.f32 %v1373, %v1864
    %v1886 = vmul.f32 %v1374, %v1869
    %v1887 = vmul.f32 %v1375, %v1866
    %v1897 = vrot.slane %v1879, 2
    %v1898 = vrot.slane %v1882, 2
    %v1899 = vsel %vm1410, %v1897, %v1898
    %v1900 = vrot.slane %v1880, 2
    %v1901 = vrot.slane %v1883, 2
    %v1902 = vsel %vm1410, %v1900, %v1901
    %v1903 = vrot.slane %v1881, 2
    %v1904 = vrot.slane %v1884, 2
    %v1905 = vsel %vm1410, %v1903, %v1904
    %v1906 = vrot.slane %v1885, 2
    %v1907 = vsel %vm1410, %v1898, %v1906
    %v1908 = vrot.slane %v1886, 2
    %v1909 = vsel %vm1410, %v1901, %v1908
    %v1910 = vrot.slane %v1887, 2
    %v1911 = vsel %vm1410, %v1904, %v1910
    %1912 = vrot.lane.b32.xlu0 %v1899, 126
    %v1913 = vpop.permute.xlu0 %1912
    %1914 = vrot.lane.b32.xlu0 %v1902, 126
    %v1915 = vpop.permute.xlu0 %1914
    %1916 = vrot.lane.b32.xlu0 %v1905, 126
    %v1917 = vpop.permute.xlu0 %1916
    %1918 = vrot.lane.b32.xlu0 %v1907, 126
    %v1919 = vpop.permute.xlu0 %1918
    %1920 = vrot.lane.b32.xlu0 %v1909, 126
    %v1921 = vpop.permute.xlu0 %1920
    %1922 = vrot.lane.b32.xlu0 %v1911, 126
    %v1923 = vpop.permute.xlu0 %1922
    %v1924 = vsel %vm1627, %v1913, %v1915
    %v1925 = vsel %vm1627, %v1915, %v1917
    %v1926 = vsel %vm1627, %v1919, %v1921
    %v1927 = vsel %vm1627, %v1921, %v1923
    %v1934 = vadd.f32 %v1537, %v1924
    %v1935 = vadd.f32 %v1538, %v1925
    %v1936 = vadd.f32 %v1539, %v1917
    %v1937 = vadd.f32 %v1540, %v1926
    %v1938 = vadd.f32 %v1541, %v1927
    %v1939 = vadd.f32 %v1542, %v1923
    %s1940 = scalar_lea.vmem [#allocation5], 768
    %v1941 = vld [vmem:[%s1940] sm:$0xff]
    %v1942 = vld [vmem:[%s1940 + $0x8] sm:$0xff]
    %v1943 = vld [vmem:[%s1940 + $0x10] sm:$0xff]
    %v1944 = vld [vmem:[%s1940 + $0x18] sm:$0xff]
    %v1949 = vrot.slane %v1941, 6
    %v1950 = vrot.slane %v1942, 6
    %v1951 = vrot.slane %v1943, 6
    %v1952 = vsel %vm1385, %v1949, %v1951
    %v1953 = vrot.slane %v1944, 6
    %v1954 = vsel %vm1385, %v1950, %v1953
    %1955 = vrot.lane.b32.xlu0 %v1949, 6
    %v1956 = vpop.permute.xlu0 %1955
    %1957 = vrot.lane.b32.xlu0 %v1950, 6
    %v1958 = vpop.permute.xlu0 %1957
    %1959 = vrot.lane.b32.xlu0 %v1952, 6
    %v1960 = vpop.permute.xlu0 %1959
    %1961 = vrot.lane.b32.xlu0 %v1954, 6
    %v1962 = vpop.permute.xlu0 %1961
    %1963 = vrot.lane.b32.xlu0 %v1951, 6
    %v1964 = vpop.permute.xlu0 %1963
    %1965 = vrot.lane.b32.xlu0 %v1953, 6
    %v1966 = vpop.permute.xlu0 %1965
    %v1967 = vsel %vm322, %v1956, %v1958
    %v1968 = vsel %vm322, %v1960, %v1962
    %v1969 = vsel %vm322, %v1964, %v1966
    %v1979 = vmul.f32 %v1370, %v1956
    %v1980 = vmul.f32 %v1371, %v1967
    %v1981 = vmul.f32 %v1372, %v1958
    %v1982 = vmul.f32 %v503, %v1960
    %v1983 = vmul.f32 %v504, %v1968
    %v1984 = vmul.f32 %v505, %v1962
    %v1985 = vmul.f32 %v1373, %v1964
    %v1986 = vmul.f32 %v1374, %v1969
    %v1987 = vmul.f32 %v1375, %v1966
    %v1997 = vrot.slane %v1979, 2
    %v1998 = vrot.slane %v1982, 2
    %v1999 = vsel %vm1410, %v1997, %v1998
    %v2000 = vrot.slane %v1980, 2
    %v2001 = vrot.slane %v1983, 2
    %v2002 = vsel %vm1410, %v2000, %v2001
    %v2003 = vrot.slane %v1981, 2
    %v2004 = vrot.slane %v1984, 2
    %v2005 = vsel %vm1410, %v2003, %v2004
    %v2006 = vrot.slane %v1985, 2
    %v2007 = vsel %vm1410, %v1998, %v2006
    %v2008 = vrot.slane %v1986, 2
    %v2009 = vsel %vm1410, %v2001, %v2008
    %v2010 = vrot.slane %v1987, 2
    %v2011 = vsel %vm1410, %v2004, %v2010
    %2012 = vrot.lane.b32.xlu0 %v1999, 122
    %v2013 = vpop.permute.xlu0 %2012
    %2014 = vrot.lane.b32.xlu0 %v2002, 122
    %v2015 = vpop.permute.xlu0 %2014
    %2016 = vrot.lane.b32.xlu0 %v2005, 122
    %v2017 = vpop.permute.xlu0 %2016
    %2018 = vrot.lane.b32.xlu0 %v2007, 122
    %v2019 = vpop.permute.xlu0 %2018
    %2020 = vrot.lane.b32.xlu0 %v2009, 122
    %v2021 = vpop.permute.xlu0 %2020
    %2022 = vrot.lane.b32.xlu0 %v2011, 122
    %v2023 = vpop.permute.xlu0 %2022
    %vm2024 = vcmask 998400
    %v2025 = vsel %vm2024, %v2013, %v2015
    %v2026 = vsel %vm2024, %v2015, %v2017
    %v2027 = vsel %vm2024, %v2019, %v2021
    %v2028 = vsel %vm2024, %v2021, %v2023
    %v2033 = vadd.f32 %v1636, %v2025
    %v2034 = vadd.f32 %v1637, %v2026
    %v2035 = vadd.f32 %v1638, %v2027
    %v2036 = vadd.f32 %v1639, %v2028
    %s2037 = scalar_lea.vmem [#allocation5], 800
    %v2038 = vld [vmem:[%s2037] sm:$0xff]
    %v2039 = vld [vmem:[%s2037 + $0x8] sm:$0xff]
    %v2040 = vld [vmem:[%s2037 + $0x10] sm:$0xff]
    %v2041 = vld [vmem:[%s2037 + $0x18] sm:$0xff]
    %v2046 = vrot.slane %v2038, 6
    %v2047 = vrot.slane %v2039, 6
    %v2048 = vrot.slane %v2040, 6
    %v2049 = vsel %vm1385, %v2046, %v2048
    %v2050 = vrot.slane %v2041, 6
    %v2051 = vsel %vm1385, %v2047, %v2050
    %2052 = vrot.lane.b32.xlu0 %v2046, 7
    %v2053 = vpop.permute.xlu0 %2052
    %2054 = vrot.lane.b32.xlu0 %v2047, 7
    %v2055 = vpop.permute.xlu0 %2054
    %2056 = vrot.lane.b32.xlu0 %v2049, 7
    %v2057 = vpop.permute.xlu0 %2056
    %2058 = vrot.lane.b32.xlu0 %v2051, 7
    %v2059 = vpop.permute.xlu0 %2058
    %2060 = vrot.lane.b32.xlu0 %v2048, 7
    %v2061 = vpop.permute.xlu0 %2060
    %2062 = vrot.lane.b32.xlu0 %v2050, 7
    %v2063 = vpop.permute.xlu0 %2062
    %v2064 = vsel %vm388, %v2053, %v2055
    %v2065 = vsel %vm388, %v2057, %v2059
    %v2066 = vsel %vm388, %v2061, %v2063
    %v2076 = vmul.f32 %v1370, %v2053
    %v2077 = vmul.f32 %v1371, %v2064
    %v2078 = vmul.f32 %v1372, %v2055
    %v2079 = vmul.f32 %v503, %v2057
    %v2080 = vmul.f32 %v504, %v2065
    %v2081 = vmul.f32 %v505, %v2059
    %v2082 = vmul.f32 %v1373, %v2061
    %v2083 = vmul.f32 %v1374, %v2066
    %v2084 = vmul.f32 %v1375, %v2063
    %v2094 = vrot.slane %v2076, 2
    %v2095 = vrot.slane %v2079, 2
    %v2096 = vsel %vm1410, %v2094, %v2095
    %v2097 = vrot.slane %v2077, 2
    %v2098 = vrot.slane %v2080, 2
    %v2099 = vsel %vm1410, %v2097, %v2098
    %v2100 = vrot.slane %v2078, 2
    %v2101 = vrot.slane %v2081, 2
    %v2102 = vsel %vm1410, %v2100, %v2101
    %v2103 = vrot.slane %v2082, 2
    %v2104 = vsel %vm1410, %v2095, %v2103
    %v2105 = vrot.slane %v2083, 2
    %v2106 = vsel %vm1410, %v2098, %v2105
    %v2107 = vrot.slane %v2084, 2
    %v2108 = vsel %vm1410, %v2101, %v2107
    %2109 = vrot.lane.b32.xlu0 %v2096, 122
    %v2110 = vpop.permute.xlu0 %2109
    %2111 = vrot.lane.b32.xlu0 %v2099, 122
    %v2112 = vpop.permute.xlu0 %2111
    %2113 = vrot.lane.b32.xlu0 %v2102, 122
    %v2114 = vpop.permute.xlu0 %2113
    %2115 = vrot.lane.b32.xlu0 %v2104, 122
    %v2116 = vpop.permute.xlu0 %2115
    %2117 = vrot.lane.b32.xlu0 %v2106, 122
    %v2118 = vpop.permute.xlu0 %2117
    %2119 = vrot.lane.b32.xlu0 %v2108, 122
    %v2120 = vpop.permute.xlu0 %2119
    %v2121 = vsel %vm2024, %v2110, %v2112
    %v2122 = vsel %vm2024, %v2112, %v2114
    %v2123 = vsel %vm2024, %v2116, %v2118
    %v2124 = vsel %vm2024, %v2118, %v2120
    %v2131 = vadd.f32 %v1734, %v2121
    %v2132 = vadd.f32 %v1735, %v2122
    %v2133 = vadd.f32 %v1736, %v2114
    %v2134 = vadd.f32 %v1737, %v2123
    %v2135 = vadd.f32 %v1738, %v2124
    %v2136 = vadd.f32 %v1739, %v2120
    %s2137 = scalar_lea.vmem [#allocation5], 832
    %v2138 = vld [vmem:[%s2137] sm:$0xff]
    %v2139 = vld [vmem:[%s2137 + $0x8] sm:$0xff]
    %v2140 = vld [vmem:[%s2137 + $0x10] sm:$0xff]
    %v2141 = vld [vmem:[%s2137 + $0x18] sm:$0xff]
    %v2146 = vrot.slane %v2138, 6
    %v2147 = vrot.slane %v2139, 6
    %v2148 = vrot.slane %v2140, 6
    %v2149 = vsel %vm1385, %v2146, %v2148
    %v2150 = vrot.slane %v2141, 6
    %v2151 = vsel %vm1385, %v2147, %v2150
    %2152 = vrot.lane.b32.xlu0 %v2146, 8
    %v2153 = vpop.permute.xlu0 %2152
    %2154 = vrot.lane.b32.xlu0 %v2147, 8
    %v2155 = vpop.permute.xlu0 %2154
    %2156 = vrot.lane.b32.xlu0 %v2149, 8
    %v2157 = vpop.permute.xlu0 %2156
    %2158 = vrot.lane.b32.xlu0 %v2151, 8
    %v2159 = vpop.permute.xlu0 %2158
    %2160 = vrot.lane.b32.xlu0 %v2148, 8
    %v2161 = vpop.permute.xlu0 %2160
    %2162 = vrot.lane.b32.xlu0 %v2150, 8
    %v2163 = vpop.permute.xlu0 %2162
    %v2164 = vsel %vm454, %v2153, %v2155
    %v2165 = vsel %vm454, %v2157, %v2159
    %v2166 = vsel %vm454, %v2161, %v2163
    %v2176 = vmul.f32 %v1370, %v2153
    %v2177 = vmul.f32 %v1371, %v2164
    %v2178 = vmul.f32 %v1372, %v2155
    %v2179 = vmul.f32 %v503, %v2157
    %v2180 = vmul.f32 %v504, %v2165
    %v2181 = vmul.f32 %v505, %v2159
    %v2182 = vmul.f32 %v1373, %v2161
    %v2183 = vmul.f32 %v1374, %v2166
    %v2184 = vmul.f32 %v1375, %v2163
    %v2194 = vrot.slane %v2176, 2
    %v2195 = vrot.slane %v2179, 2
    %v2196 = vsel %vm1410, %v2194, %v2195
    %v2197 = vrot.slane %v2177, 2
    %v2198 = vrot.slane %v2180, 2
    %v2199 = vsel %vm1410, %v2197, %v2198
    %v2200 = vrot.slane %v2178, 2
    %v2201 = vrot.slane %v2181, 2
    %v2202 = vsel %vm1410, %v2200, %v2201
    %v2203 = vrot.slane %v2182, 2
    %v2204 = vsel %vm1410, %v2195, %v2203
    %v2205 = vrot.slane %v2183, 2
    %v2206 = vsel %vm1410, %v2198, %v2205
    %v2207 = vrot.slane %v2184, 2
    %v2208 = vsel %vm1410, %v2201, %v2207
    %2209 = vrot.lane.b32.xlu0 %v2196, 122
    %v2210 = vpop.permute.xlu0 %2209
    %2211 = vrot.lane.b32.xlu0 %v2199, 122
    %v2212 = vpop.permute.xlu0 %2211
    %2213 = vrot.lane.b32.xlu0 %v2202, 122
    %v2214 = vpop.permute.xlu0 %2213
    %2215 = vrot.lane.b32.xlu0 %v2204, 122
    %v2216 = vpop.permute.xlu0 %2215
    %2217 = vrot.lane.b32.xlu0 %v2206, 122
    %v2218 = vpop.permute.xlu0 %2217
    %2219 = vrot.lane.b32.xlu0 %v2208, 122
    %v2220 = vpop.permute.xlu0 %2219
    %v2221 = vsel %vm2024, %v2210, %v2212
    %v2222 = vsel %vm2024, %v2212, %v2214
    %v2223 = vsel %vm2024, %v2216, %v2218
    %v2224 = vsel %vm2024, %v2218, %v2220
    %v2231 = vadd.f32 %v1834, %v2221
    %v2232 = vadd.f32 %v1835, %v2222
    %v2233 = vadd.f32 %v1836, %v2214
    %v2234 = vadd.f32 %v1837, %v2223
    %v2235 = vadd.f32 %v1838, %v2224
    %v2236 = vadd.f32 %v1839, %v2220
    %v2237 = vld [vmem:[#allocation2] sm:$0xf8]
    %v2238 = vld [vmem:[#allocation2 + $0x8] sm:$0xf8]
    %v2239 = vld [vmem:[#allocation2 + $0x10] sm:$0xf8]
    %v2240 = vld [vmem:[#allocation2 + $0x30] sm:$0x7]
    %v2241 = vld [vmem:[#allocation2 + $0x38] sm:$0x7]
    %v2242 = vld [vmem:[#allocation2 + $0x40] sm:$0x7]
    %s2243 = scalar_lea.vmem [#allocation5], 864
    %v2244 = vld [vmem:[%s2243] sm:$0xff]
    %v2245 = vld [vmem:[%s2243 + $0x8] sm:$0xff]
    %v2246 = vld [vmem:[%s2243 + $0x10] sm:$0xff]
    %v2247 = vld [vmem:[%s2243 + $0x18] sm:$0xff]
    %vm2252 = vcmask 1042432
    %v2253 = vrot.slane %v2244, 5
    %v2254 = vrot.slane %v2245, 5
    %v2255 = vrot.slane %v2246, 5
    %v2256 = vsel %vm2252, %v2253, %v2255
    %v2257 = vrot.slane %v2247, 5
    %v2258 = vsel %vm2252, %v2254, %v2257
    %v2265 = vmul.f32 %v2237, %v2253
    %v2266 = vmul.f32 %v2238, %v2254
    %v2267 = vmul.f32 %v503, %v2256
    %v2268 = vmul.f32 %v504, %v2258
    %v2269 = vmul.f32 %v2240, %v2255
    %v2270 = vmul.f32 %v2241, %v2257
    %vm2277 = vcmask 1044480
    %v2278 = vrot.slane %v2265, 3
    %v2279 = vrot.slane %v2267, 3
    %v2280 = vsel %vm2277, %v2278, %v2279
    %v2281 = vrot.slane %v2266, 3
    %v2282 = vrot.slane %v2268, 3
    %v2283 = vsel %vm2277, %v2281, %v2282
    %v2284 = vrot.slane %v2269, 3
    %v2285 = vsel %vm2277, %v2279, %v2284
    %v2286 = vrot.slane %v2270, 3
    %v2287 = vsel %vm2277, %v2282, %v2286
    %2288 = vrot.lane.b32.xlu0 %v2280, 3
    %v2289 = vpop.permute.xlu0 %2288
    %2290 = vrot.lane.b32.xlu0 %v2283, 3
    %v2291 = vpop.permute.xlu0 %2290
    %2292 = vrot.lane.b32.xlu0 %v2285, 3
    %v2293 = vpop.permute.xlu0 %2292
    %2294 = vrot.lane.b32.xlu0 %v2287, 3
    %v2295 = vpop.permute.xlu0 %2294
    %v2296 = vsel %vm155, %v2289, %v2291
    %v2297 = vsel %vm155, %v2293, %v2295
    %v2304 = vadd.f32 %v1934, %v2289
    %v2305 = vadd.f32 %v1935, %v2296
    %v2306 = vadd.f32 %v1936, %v2291
    %v2307 = vadd.f32 %v1937, %v2293
    %v2308 = vadd.f32 %v1938, %v2297
    %v2309 = vadd.f32 %v1939, %v2295
    %s2310 = scalar_lea.vmem [#allocation5], 896
    %v2311 = vld [vmem:[%s2310] sm:$0xff]
    %v2312 = vld [vmem:[%s2310 + $0x8] sm:$0xff]
    %v2313 = vld [vmem:[%s2310 + $0x10] sm:$0xff]
    %v2314 = vld [vmem:[%s2310 + $0x18] sm:$0xff]
    %v2319 = vrot.slane %v2311, 5
    %v2320 = vrot.slane %v2312, 5
    %v2321 = vrot.slane %v2313, 5
    %v2322 = vsel %vm2252, %v2319, %v2321
    %v2323 = vrot.slane %v2314, 5
    %v2324 = vsel %vm2252, %v2320, %v2323
    %2325 = vrot.lane.b32.xlu0 %v2319, 1
    %v2326 = vpop.permute.xlu0 %2325
    %2327 = vrot.lane.b32.xlu0 %v2320, 1
    %v2328 = vpop.permute.xlu0 %2327
    %2329 = vrot.lane.b32.xlu0 %v2322, 1
    %v2330 = vpop.permute.xlu0 %2329
    %2331 = vrot.lane.b32.xlu0 %v2324, 1
    %v2332 = vpop.permute.xlu0 %2331
    %2333 = vrot.lane.b32.xlu0 %v2321, 1
    %v2334 = vpop.permute.xlu0 %2333
    %2335 = vrot.lane.b32.xlu0 %v2323, 1
    %v2336 = vpop.permute.xlu0 %2335
    %v2337 = vsel %vm79, %v2326, %v2328
    %v2338 = vsel %vm79, %v2330, %v2332
    %v2339 = vsel %vm79, %v2334, %v2336
    %v2349 = vmul.f32 %v2237, %v2326
    %v2350 = vmul.f32 %v2238, %v2337
    %v2351 = vmul.f32 %v2239, %v2328
    %v2352 = vmul.f32 %v503, %v2330
    %v2353 = vmul.f32 %v504, %v2338
    %v2354 = vmul.f32 %v505, %v2332
    %v2355 = vmul.f32 %v2240, %v2334
    %v2356 = vmul.f32 %v2241, %v2339
    %v2357 = vmul.f32 %v2242, %v2336
    %v2367 = vrot.slane %v2349, 3
    %v2368 = vrot.slane %v2352, 3
    %v2369 = vsel %vm2277, %v2367, %v2368
    %v2370 = vrot.slane %v2350, 3
    %v2371 = vrot.slane %v2353, 3
    %v2372 = vsel %vm2277, %v2370, %v2371
    %v2373 = vrot.slane %v2351, 3
    %v2374 = vrot.slane %v2354, 3
    %v2375 = vsel %vm2277, %v2373, %v2374
    %v2376 = vrot.slane %v2355, 3
    %v2377 = vsel %vm2277, %v2368, %v2376
    %v2378 = vrot.slane %v2356, 3
    %v2379 = vsel %vm2277, %v2371, %v2378
    %v2380 = vrot.slane %v2357, 3
    %v2381 = vsel %vm2277, %v2374, %v2380
    %2382 = vrot.lane.b32.xlu0 %v2369, 127
    %v2383 = vpop.permute.xlu0 %2382
    %2384 = vrot.lane.b32.xlu0 %v2372, 127
    %v2385 = vpop.permute.xlu0 %2384
    %2386 = vrot.lane.b32.xlu0 %v2375, 127
    %v2387 = vpop.permute.xlu0 %2386
    %2388 = vrot.lane.b32.xlu0 %v2377, 127
    %v2389 = vpop.permute.xlu0 %2388
    %2390 = vrot.lane.b32.xlu0 %v2379, 127
    %v2391 = vpop.permute.xlu0 %2390
    %2392 = vrot.lane.b32.xlu0 %v2381, 127
    %v2393 = vpop.permute.xlu0 %2392
    %vm2394 = vcmask 1039360
    %v2395 = vsel %vm2394, %v2383, %v2385
    %v2396 = vsel %vm2394, %v2385, %v2387
    %v2397 = vsel %vm2394, %v2389, %v2391
    %v2398 = vsel %vm2394, %v2391, %v2393
    %v2403 = vadd.f32 %v2033, %v2395
    %v2404 = vadd.f32 %v2034, %v2396
    %v2405 = vadd.f32 %v2035, %v2397
    %v2406 = vadd.f32 %v2036, %v2398
    %s2407 = scalar_lea.vmem [#allocation5], 928
    %v2408 = vld [vmem:[%s2407] sm:$0xff]
    %v2409 = vld [vmem:[%s2407 + $0x8] sm:$0xff]
    %v2410 = vld [vmem:[%s2407 + $0x10] sm:$0xff]
    %v2411 = vld [vmem:[%s2407 + $0x18] sm:$0xff]
    %v2416 = vrot.slane %v2408, 5
    %v2417 = vrot.slane %v2409, 5
    %v2418 = vrot.slane %v2410, 5
    %v2419 = vsel %vm2252, %v2416, %v2418
    %v2420 = vrot.slane %v2411, 5
    %v2421 = vsel %vm2252, %v2417, %v2420
    %2422 = vrot.lane.b32.xlu0 %v2416, 2
    %v2423 = vpop.permute.xlu0 %2422
    %2424 = vrot.lane.b32.xlu0 %v2417, 2
    %v2425 = vpop.permute.xlu0 %2424
    %2426 = vrot.lane.b32.xlu0 %v2419, 2
    %v2427 = vpop.permute.xlu0 %2426
    %2428 = vrot.lane.b32.xlu0 %v2421, 2
    %v2429 = vpop.permute.xlu0 %2428
    %2430 = vrot.lane.b32.xlu0 %v2418, 2
    %v2431 = vpop.permute.xlu0 %2430
    %2432 = vrot.lane.b32.xlu0 %v2420, 2
    %v2433 = vpop.permute.xlu0 %2432
    %v2434 = vsel %vm117, %v2423, %v2425
    %v2435 = vsel %vm117, %v2427, %v2429
    %v2436 = vsel %vm117, %v2431, %v2433
    %v2446 = vmul.f32 %v2237, %v2423
    %v2447 = vmul.f32 %v2238, %v2434
    %v2448 = vmul.f32 %v2239, %v2425
    %v2449 = vmul.f32 %v503, %v2427
    %v2450 = vmul.f32 %v504, %v2435
    %v2451 = vmul.f32 %v505, %v2429
    %v2452 = vmul.f32 %v2240, %v2431
    %v2453 = vmul.f32 %v2241, %v2436
    %v2454 = vmul.f32 %v2242, %v2433
    %v2464 = vrot.slane %v2446, 3
    %v2465 = vrot.slane %v2449, 3
    %v2466 = vsel %vm2277, %v2464, %v2465
    %v2467 = vrot.slane %v2447, 3
    %v2468 = vrot.slane %v2450, 3
    %v2469 = vsel %vm2277, %v2467, %v2468
    %v2470 = vrot.slane %v2448, 3
    %v2471 = vrot.slane %v2451, 3
    %v2472 = vsel %vm2277, %v2470, %v2471
    %v2473 = vrot.slane %v2452, 3
    %v2474 = vsel %vm2277, %v2465, %v2473
    %v2475 = vrot.slane %v2453, 3
    %v2476 = vsel %vm2277, %v2468, %v2475
    %v2477 = vrot.slane %v2454, 3
    %v2478 = vsel %vm2277, %v2471, %v2477
    %2479 = vrot.lane.b32.xlu0 %v2466, 127
    %v2480 = vpop.permute.xlu0 %2479
    %2481 = vrot.lane.b32.xlu0 %v2469, 127
    %v2482 = vpop.permute.xlu0 %2481
    %2483 = vrot.lane.b32.xlu0 %v2472, 127
    %v2484 = vpop.permute.xlu0 %2483
    %2485 = vrot.lane.b32.xlu0 %v2474, 127
    %v2486 = vpop.permute.xlu0 %2485
    %2487 = vrot.lane.b32.xlu0 %v2476, 127
    %v2488 = vpop.permute.xlu0 %2487
    %2489 = vrot.lane.b32.xlu0 %v2478, 127
    %v2490 = vpop.permute.xlu0 %2489
    %v2491 = vsel %vm2394, %v2480, %v2482
    %v2492 = vsel %vm2394, %v2482, %v2484
    %v2493 = vsel %vm2394, %v2486, %v2488
    %v2494 = vsel %vm2394, %v2488, %v2490
    %v2501 = vadd.f32 %v2131, %v2491
    %v2502 = vadd.f32 %v2132, %v2492
    %v2503 = vadd.f32 %v2133, %v2484
    %v2504 = vadd.f32 %v2134, %v2493
    %v2505 = vadd.f32 %v2135, %v2494
    %v2506 = vadd.f32 %v2136, %v2490
    %s2507 = scalar_lea.vmem [#allocation5], 960
    %v2508 = vld [vmem:[%s2507] sm:$0xff]
    %v2509 = vld [vmem:[%s2507 + $0x8] sm:$0xff]
    %v2510 = vld [vmem:[%s2507 + $0x10] sm:$0xff]
    %v2511 = vld [vmem:[%s2507 + $0x18] sm:$0xff]
    %v2516 = vrot.slane %v2508, 5
    %v2517 = vrot.slane %v2509, 5
    %v2518 = vrot.slane %v2510, 5
    %v2519 = vsel %vm2252, %v2516, %v2518
    %v2520 = vrot.slane %v2511, 5
    %v2521 = vsel %vm2252, %v2517, %v2520
    %2522 = vrot.lane.b32.xlu0 %v2516, 3
    %v2523 = vpop.permute.xlu0 %2522
    %2524 = vrot.lane.b32.xlu0 %v2517, 3
    %v2525 = vpop.permute.xlu0 %2524
    %2526 = vrot.lane.b32.xlu0 %v2519, 3
    %v2527 = vpop.permute.xlu0 %2526
    %2528 = vrot.lane.b32.xlu0 %v2521, 3
    %v2529 = vpop.permute.xlu0 %2528
    %2530 = vrot.lane.b32.xlu0 %v2518, 3
    %v2531 = vpop.permute.xlu0 %2530
    %2532 = vrot.lane.b32.xlu0 %v2520, 3
    %v2533 = vpop.permute.xlu0 %2532
    %v2534 = vsel %vm155, %v2523, %v2525
    %v2535 = vsel %vm155, %v2527, %v2529
    %v2536 = vsel %vm155, %v2531, %v2533
    %v2546 = vmul.f32 %v2237, %v2523
    %v2547 = vmul.f32 %v2238, %v2534
    %v2548 = vmul.f32 %v2239, %v2525
    %v2549 = vmul.f32 %v503, %v2527
    %v2550 = vmul.f32 %v504, %v2535
    %v2551 = vmul.f32 %v505, %v2529
    %v2552 = vmul.f32 %v2240, %v2531
    %v2553 = vmul.f32 %v2241, %v2536
    %v2554 = vmul.f32 %v2242, %v2533
    %v2564 = vrot.slane %v2546, 3
    %v2565 = vrot.slane %v2549, 3
    %v2566 = vsel %vm2277, %v2564, %v2565
    %v2567 = vrot.slane %v2547, 3
    %v2568 = vrot.slane %v2550, 3
    %v2569 = vsel %vm2277, %v2567, %v2568
    %v2570 = vrot.slane %v2548, 3
    %v2571 = vrot.slane %v2551, 3
    %v2572 = vsel %vm2277, %v2570, %v2571
    %v2573 = vrot.slane %v2552, 3
    %v2574 = vsel %vm2277, %v2565, %v2573
    %v2575 = vrot.slane %v2553, 3
    %v2576 = vsel %vm2277, %v2568, %v2575
    %v2577 = vrot.slane %v2554, 3
    %v2578 = vsel %vm2277, %v2571, %v2577
    %2579 = vrot.lane.b32.xlu0 %v2566, 127
    %v2580 = vpop.permute.xlu0 %2579
    %2581 = vrot.lane.b32.xlu0 %v2569, 127
    %v2582 = vpop.permute.xlu0 %2581
    %2583 = vrot.lane.b32.xlu0 %v2572, 127
    %v2584 = vpop.permute.xlu0 %2583
    %2585 = vrot.lane.b32.xlu0 %v2574, 127
    %v2586 = vpop.permute.xlu0 %2585
    %2587 = vrot.lane.b32.xlu0 %v2576, 127
    %v2588 = vpop.permute.xlu0 %2587
    %2589 = vrot.lane.b32.xlu0 %v2578, 127
    %v2590 = vpop.permute.xlu0 %2589
    %v2591 = vsel %vm2394, %v2580, %v2582
    %v2592 = vsel %vm2394, %v2582, %v2584
    %v2593 = vsel %vm2394, %v2586, %v2588
    %v2594 = vsel %vm2394, %v2588, %v2590
    %v2601 = vadd.f32 %v2231, %v2591
    %v2602 = vadd.f32 %v2232, %v2592
    %v2603 = vadd.f32 %v2233, %v2584
    %v2604 = vadd.f32 %v2234, %v2593
    %v2605 = vadd.f32 %v2235, %v2594
    %v2606 = vadd.f32 %v2236, %v2590
    %s2607 = scalar_lea.vmem [#allocation5], 992
    %v2608 = vld [vmem:[%s2607] sm:$0xff]
    %v2609 = vld [vmem:[%s2607 + $0x8] sm:$0xff]
    %v2610 = vld [vmem:[%s2607 + $0x10] sm:$0xff]
    %v2611 = vld [vmem:[%s2607 + $0x18] sm:$0xff]
    %v2616 = vrot.slane %v2608, 5
    %v2617 = vrot.slane %v2609, 5
    %v2618 = vrot.slane %v2610, 5
    %v2619 = vsel %vm2252, %v2616, %v2618
    %v2620 = vrot.slane %v2611, 5
    %v2621 = vsel %vm2252, %v2617, %v2620
    %2622 = vrot.lane.b32.xlu0 %v2616, 4
    %v2623 = vpop.permute.xlu0 %2622
    %2624 = vrot.lane.b32.xlu0 %v2617, 4
    %v2625 = vpop.permute.xlu0 %2624
    %2626 = vrot.lane.b32.xlu0 %v2619, 4
    %v2627 = vpop.permute.xlu0 %2626
    %2628 = vrot.lane.b32.xlu0 %v2621, 4
    %v2629 = vpop.permute.xlu0 %2628
    %2630 = vrot.lane.b32.xlu0 %v2618, 4
    %v2631 = vpop.permute.xlu0 %2630
    %2632 = vrot.lane.b32.xlu0 %v2620, 4
    %v2633 = vpop.permute.xlu0 %2632
    %v2634 = vsel %vm193, %v2623, %v2625
    %v2635 = vsel %vm193, %v2627, %v2629
    %v2636 = vsel %vm193, %v2631, %v2633
    %v2646 = vmul.f32 %v2237, %v2623
    %v2647 = vmul.f32 %v2238, %v2634
    %v2648 = vmul.f32 %v2239, %v2625
    %v2649 = vmul.f32 %v503, %v2627
    %v2650 = vmul.f32 %v504, %v2635
    %v2651 = vmul.f32 %v505, %v2629
    %v2652 = vmul.f32 %v2240, %v2631
    %v2653 = vmul.f32 %v2241, %v2636
    %v2654 = vmul.f32 %v2242, %v2633
    %v2664 = vrot.slane %v2646, 3
    %v2665 = vrot.slane %v2649, 3
    %v2666 = vsel %vm2277, %v2664, %v2665
    %v2667 = vrot.slane %v2647, 3
    %v2668 = vrot.slane %v2650, 3
    %v2669 = vsel %vm2277, %v2667, %v2668
    %v2670 = vrot.slane %v2648, 3
    %v2671 = vrot.slane %v2651, 3
    %v2672 = vsel %vm2277, %v2670, %v2671
    %v2673 = vrot.slane %v2652, 3
    %v2674 = vsel %vm2277, %v2665, %v2673
    %v2675 = vrot.slane %v2653, 3
    %v2676 = vsel %vm2277, %v2668, %v2675
    %v2677 = vrot.slane %v2654, 3
    %v2678 = vsel %vm2277, %v2671, %v2677
    %2679 = vrot.lane.b32.xlu0 %v2666, 127
    %v2680 = vpop.permute.xlu0 %2679
    %2681 = vrot.lane.b32.xlu0 %v2669, 127
    %v2682 = vpop.permute.xlu0 %2681
    %2683 = vrot.lane.b32.xlu0 %v2672, 127
    %v2684 = vpop.permute.xlu0 %2683
    %2685 = vrot.lane.b32.xlu0 %v2674, 127
    %v2686 = vpop.permute.xlu0 %2685
    %2687 = vrot.lane.b32.xlu0 %v2676, 127
    %v2688 = vpop.permute.xlu0 %2687
    %2689 = vrot.lane.b32.xlu0 %v2678, 127
    %v2690 = vpop.permute.xlu0 %2689
    %v2691 = vsel %vm2394, %v2680, %v2682
    %v2692 = vsel %vm2394, %v2682, %v2684
    %v2693 = vsel %vm2394, %v2686, %v2688
    %v2694 = vsel %vm2394, %v2688, %v2690
    %v2701 = vadd.f32 %v2304, %v2691
    %v2702 = vadd.f32 %v2305, %v2692
    %v2703 = vadd.f32 %v2306, %v2684
    %v2704 = vadd.f32 %v2307, %v2693
    %v2705 = vadd.f32 %v2308, %v2694
    %v2706 = vadd.f32 %v2309, %v2690
    %s2707 = scalar_lea.vmem [#allocation5], 1024
    %v2708 = vld [vmem:[%s2707] sm:$0xff]
    %v2709 = vld [vmem:[%s2707 + $0x8] sm:$0xff]
    %v2710 = vld [vmem:[%s2707 + $0x10] sm:$0xff]
    %v2711 = vld [vmem:[%s2707 + $0x18] sm:$0xff]
    %v2716 = vrot.slane %v2708, 5
    %v2717 = vrot.slane %v2709, 5
    %v2718 = vrot.slane %v2710, 5
    %v2719 = vsel %vm2252, %v2716, %v2718
    %v2720 = vrot.slane %v2711, 5
    %v2721 = vsel %vm2252, %v2717, %v2720
    %2722 = vrot.lane.b32.xlu0 %v2716, 5
    %v2723 = vpop.permute.xlu0 %2722
    %2724 = vrot.lane.b32.xlu0 %v2717, 5
    %v2725 = vpop.permute.xlu0 %2724
    %2726 = vrot.lane.b32.xlu0 %v2719, 5
    %v2727 = vpop.permute.xlu0 %2726
    %2728 = vrot.lane.b32.xlu0 %v2721, 5
    %v2729 = vpop.permute.xlu0 %2728
    %2730 = vrot.lane.b32.xlu0 %v2718, 5
    %v2731 = vpop.permute.xlu0 %2730
    %2732 = vrot.lane.b32.xlu0 %v2720, 5
    %v2733 = vpop.permute.xlu0 %2732
    %v2734 = vsel %vm256, %v2723, %v2725
    %v2735 = vsel %vm256, %v2727, %v2729
    %v2736 = vsel %vm256, %v2731, %v2733
    %v2746 = vmul.f32 %v2237, %v2723
    %v2747 = vmul.f32 %v2238, %v2734
    %v2748 = vmul.f32 %v2239, %v2725
    %v2749 = vmul.f32 %v503, %v2727
    %v2750 = vmul.f32 %v504, %v2735
    %v2751 = vmul.f32 %v505, %v2729
    %v2752 = vmul.f32 %v2240, %v2731
    %v2753 = vmul.f32 %v2241, %v2736
    %v2754 = vmul.f32 %v2242, %v2733
    %v2764 = vrot.slane %v2746, 3
    %v2765 = vrot.slane %v2749, 3
    %v2766 = vsel %vm2277, %v2764, %v2765
    %v2767 = vrot.slane %v2747, 3
    %v2768 = vrot.slane %v2750, 3
    %v2769 = vsel %vm2277, %v2767, %v2768
    %v2770 = vrot.slane %v2748, 3
    %v2771 = vrot.slane %v2751, 3
    %v2772 = vsel %vm2277, %v2770, %v2771
    %v2773 = vrot.slane %v2752, 3
    %v2774 = vsel %vm2277, %v2765, %v2773
    %v2775 = vrot.slane %v2753, 3
    %v2776 = vsel %vm2277, %v2768, %v2775
    %v2777 = vrot.slane %v2754, 3
    %v2778 = vsel %vm2277, %v2771, %v2777
    %2779 = vrot.lane.b32.xlu0 %v2766, 123
    %v2780 = vpop.permute.xlu0 %2779
    %2781 = vrot.lane.b32.xlu0 %v2769, 123
    %v2782 = vpop.permute.xlu0 %2781
    %2783 = vrot.lane.b32.xlu0 %v2772, 123
    %v2784 = vpop.permute.xlu0 %2783
    %2785 = vrot.lane.b32.xlu0 %v2774, 123
    %v2786 = vpop.permute.xlu0 %2785
    %2787 = vrot.lane.b32.xlu0 %v2776, 123
    %v2788 = vpop.permute.xlu0 %2787
    %2789 = vrot.lane.b32.xlu0 %v2778, 123
    %v2790 = vpop.permute.xlu0 %2789
    %vm2791 = vcmask 1006592
    %v2792 = vsel %vm2791, %v2780, %v2782
    %v2793 = vsel %vm2791, %v2782, %v2784
    %v2794 = vsel %vm2791, %v2786, %v2788
    %v2795 = vsel %vm2791, %v2788, %v2790
    %v2800 = vadd.f32 %v2403, %v2792
    %v2801 = vadd.f32 %v2404, %v2793
    %v2802 = vadd.f32 %v2405, %v2794
    %v2803 = vadd.f32 %v2406, %v2795
    %s2804 = scalar_lea.vmem [#allocation5], 1056
    %v2805 = vld [vmem:[%s2804] sm:$0xff]
    %v2806 = vld [vmem:[%s2804 + $0x8] sm:$0xff]
    %v2807 = vld [vmem:[%s2804 + $0x10] sm:$0xff]
    %v2808 = vld [vmem:[%s2804 + $0x18] sm:$0xff]
    %v2813 = vrot.slane %v2805, 5
    %v2814 = vrot.slane %v2806, 5
    %v2815 = vrot.slane %v2807, 5
    %v2816 = vsel %vm2252, %v2813, %v2815
    %v2817 = vrot.slane %v2808, 5
    %v2818 = vsel %vm2252, %v2814, %v2817
    %2819 = vrot.lane.b32.xlu0 %v2813, 6
    %v2820 = vpop.permute.xlu0 %2819
    %2821 = vrot.lane.b32.xlu0 %v2814, 6
    %v2822 = vpop.permute.xlu0 %2821
    %2823 = vrot.lane.b32.xlu0 %v2816, 6
    %v2824 = vpop.permute.xlu0 %2823
    %2825 = vrot.lane.b32.xlu0 %v2818, 6
    %v2826 = vpop.permute.xlu0 %2825
    %2827 = vrot.lane.b32.xlu0 %v2815, 6
    %v2828 = vpop.permute.xlu0 %2827
    %2829 = vrot.lane.b32.xlu0 %v2817, 6
    %v2830 = vpop.permute.xlu0 %2829
    %v2831 = vsel %vm322, %v2820, %v2822
    %v2832 = vsel %vm322, %v2824, %v2826
    %v2833 = vsel %vm322, %v2828, %v2830
    %v2843 = vmul.f32 %v2237, %v2820
    %v2844 = vmul.f32 %v2238, %v2831
    %v2845 = vmul.f32 %v2239, %v2822
    %v2846 = vmul.f32 %v503, %v2824
    %v2847 = vmul.f32 %v504, %v2832
    %v2848 = vmul.f32 %v505, %v2826
    %v2849 = vmul.f32 %v2240, %v2828
    %v2850 = vmul.f32 %v2241, %v2833
    %v2851 = vmul.f32 %v2242, %v2830
    %v2861 = vrot.slane %v2843, 3
    %v2862 = vrot.slane %v2846, 3
    %v2863 = vsel %vm2277, %v2861, %v2862
    %v2864 = vrot.slane %v2844, 3
    %v2865 = vrot.slane %v2847, 3
    %v2866 = vsel %vm2277, %v2864, %v2865
    %v2867 = vrot.slane %v2845, 3
    %v2868 = vrot.slane %v2848, 3
    %v2869 = vsel %vm2277, %v2867, %v2868
    %v2870 = vrot.slane %v2849, 3
    %v2871 = vsel %vm2277, %v2862, %v2870
    %v2872 = vrot.slane %v2850, 3
    %v2873 = vsel %vm2277, %v2865, %v2872
    %v2874 = vrot.slane %v2851, 3
    %v2875 = vsel %vm2277, %v2868, %v2874
    %2876 = vrot.lane.b32.xlu0 %v2863, 123
    %v2877 = vpop.permute.xlu0 %2876
    %2878 = vrot.lane.b32.xlu0 %v2866, 123
    %v2879 = vpop.permute.xlu0 %2878
    %2880 = vrot.lane.b32.xlu0 %v2869, 123
    %v2881 = vpop.permute.xlu0 %2880
    %2882 = vrot.lane.b32.xlu0 %v2871, 123
    %v2883 = vpop.permute.xlu0 %2882
    %2884 = vrot.lane.b32.xlu0 %v2873, 123
    %v2885 = vpop.permute.xlu0 %2884
    %2886 = vrot.lane.b32.xlu0 %v2875, 123
    %v2887 = vpop.permute.xlu0 %2886
    %v2888 = vsel %vm2791, %v2877, %v2879
    %v2889 = vsel %vm2791, %v2879, %v2881
    %v2890 = vsel %vm2791, %v2883, %v2885
    %v2891 = vsel %vm2791, %v2885, %v2887
    %v2898 = vadd.f32 %v2501, %v2888
    %v2899 = vadd.f32 %v2502, %v2889
    %v2900 = vadd.f32 %v2503, %v2881
    %v2901 = vadd.f32 %v2504, %v2890
    %v2902 = vadd.f32 %v2505, %v2891
    %v2903 = vadd.f32 %v2506, %v2887
    %s2904 = scalar_lea.vmem [#allocation5], 1088
    %v2905 = vld [vmem:[%s2904] sm:$0xff]
    %v2906 = vld [vmem:[%s2904 + $0x8] sm:$0xff]
    %v2907 = vld [vmem:[%s2904 + $0x10] sm:$0xff]
    %v2908 = vld [vmem:[%s2904 + $0x18] sm:$0xff]
    %v2913 = vrot.slane %v2905, 5
    %v2914 = vrot.slane %v2906, 5
    %v2915 = vrot.slane %v2907, 5
    %v2916 = vsel %vm2252, %v2913, %v2915
    %v2917 = vrot.slane %v2908, 5
    %v2918 = vsel %vm2252, %v2914, %v2917
    %2919 = vrot.lane.b32.xlu0 %v2913, 7
    %v2920 = vpop.permute.xlu0 %2919
    %2921 = vrot.lane.b32.xlu0 %v2914, 7
    %v2922 = vpop.permute.xlu0 %2921
    %2923 = vrot.lane.b32.xlu0 %v2916, 7
    %v2924 = vpop.permute.xlu0 %2923
    %2925 = vrot.lane.b32.xlu0 %v2918, 7
    %v2926 = vpop.permute.xlu0 %2925
    %2927 = vrot.lane.b32.xlu0 %v2915, 7
    %v2928 = vpop.permute.xlu0 %2927
    %2929 = vrot.lane.b32.xlu0 %v2917, 7
    %v2930 = vpop.permute.xlu0 %2929
    %v2931 = vsel %vm388, %v2920, %v2922
    %v2932 = vsel %vm388, %v2924, %v2926
    %v2933 = vsel %vm388, %v2928, %v2930
    %v2943 = vmul.f32 %v2237, %v2920
    %v2944 = vmul.f32 %v2238, %v2931
    %v2945 = vmul.f32 %v2239, %v2922
    %v2946 = vmul.f32 %v503, %v2924
    %v2947 = vmul.f32 %v504, %v2932
    %v2948 = vmul.f32 %v505, %v2926
    %v2949 = vmul.f32 %v2240, %v2928
    %v2950 = vmul.f32 %v2241, %v2933
    %v2951 = vmul.f32 %v2242, %v2930
    %v2961 = vrot.slane %v2943, 3
    %v2962 = vrot.slane %v2946, 3
    %v2963 = vsel %vm2277, %v2961, %v2962
    %v2964 = vrot.slane %v2944, 3
    %v2965 = vrot.slane %v2947, 3
    %v2966 = vsel %vm2277, %v2964, %v2965
    %v2967 = vrot.slane %v2945, 3
    %v2968 = vrot.slane %v2948, 3
    %v2969 = vsel %vm2277, %v2967, %v2968
    %v2970 = vrot.slane %v2949, 3
    %v2971 = vsel %vm2277, %v2962, %v2970
    %v2972 = vrot.slane %v2950, 3
    %v2973 = vsel %vm2277, %v2965, %v2972
    %v2974 = vrot.slane %v2951, 3
    %v2975 = vsel %vm2277, %v2968, %v2974
    %2976 = vrot.lane.b32.xlu0 %v2963, 123
    %v2977 = vpop.permute.xlu0 %2976
    %2978 = vrot.lane.b32.xlu0 %v2966, 123
    %v2979 = vpop.permute.xlu0 %2978
    %2980 = vrot.lane.b32.xlu0 %v2969, 123
    %v2981 = vpop.permute.xlu0 %2980
    %2982 = vrot.lane.b32.xlu0 %v2971, 123
    %v2983 = vpop.permute.xlu0 %2982
    %2984 = vrot.lane.b32.xlu0 %v2973, 123
    %v2985 = vpop.permute.xlu0 %2984
    %2986 = vrot.lane.b32.xlu0 %v2975, 123
    %v2987 = vpop.permute.xlu0 %2986
    %v2988 = vsel %vm2791, %v2977, %v2979
    %v2989 = vsel %vm2791, %v2979, %v2981
    %v2990 = vsel %vm2791, %v2983, %v2985
    %v2991 = vsel %vm2791, %v2985, %v2987
    %v2998 = vadd.f32 %v2601, %v2988
    %v2999 = vadd.f32 %v2602, %v2989
    %v3000 = vadd.f32 %v2603, %v2981
    %v3001 = vadd.f32 %v2604, %v2990
    %v3002 = vadd.f32 %v2605, %v2991
    %v3003 = vadd.f32 %v2606, %v2987
    %s3004 = scalar_lea.vmem [#allocation5], 1120
    %v3005 = vld [vmem:[%s3004] sm:$0xff]
    %v3006 = vld [vmem:[%s3004 + $0x8] sm:$0xff]
    %v3007 = vld [vmem:[%s3004 + $0x10] sm:$0xff]
    %v3008 = vld [vmem:[%s3004 + $0x18] sm:$0xff]
    %v3013 = vrot.slane %v3005, 5
    %v3014 = vrot.slane %v3006, 5
    %v3015 = vrot.slane %v3007, 5
    %v3016 = vsel %vm2252, %v3013, %v3015
    %v3017 = vrot.slane %v3008, 5
    %v3018 = vsel %vm2252, %v3014, %v3017
    %3019 = vrot.lane.b32.xlu0 %v3013, 8
    %v3020 = vpop.permute.xlu0 %3019
    %3021 = vrot.lane.b32.xlu0 %v3014, 8
    %v3022 = vpop.permute.xlu0 %3021
    %3023 = vrot.lane.b32.xlu0 %v3016, 8
    %v3024 = vpop.permute.xlu0 %3023
    %3025 = vrot.lane.b32.xlu0 %v3018, 8
    %v3026 = vpop.permute.xlu0 %3025
    %3027 = vrot.lane.b32.xlu0 %v3015, 8
    %v3028 = vpop.permute.xlu0 %3027
    %3029 = vrot.lane.b32.xlu0 %v3017, 8
    %v3030 = vpop.permute.xlu0 %3029
    %v3031 = vsel %vm454, %v3020, %v3022
    %v3032 = vsel %vm454, %v3024, %v3026
    %v3033 = vsel %vm454, %v3028, %v3030
    %v3043 = vmul.f32 %v2237, %v3020
    %v3044 = vmul.f32 %v2238, %v3031
    %v3045 = vmul.f32 %v2239, %v3022
    %v3046 = vmul.f32 %v503, %v3024
    %v3047 = vmul.f32 %v504, %v3032
    %v3048 = vmul.f32 %v505, %v3026
    %v3049 = vmul.f32 %v2240, %v3028
    %v3050 = vmul.f32 %v2241, %v3033
    %v3051 = vmul.f32 %v2242, %v3030
    %v3061 = vrot.slane %v3043, 3
    %v3062 = vrot.slane %v3046, 3
    %v3063 = vsel %vm2277, %v3061, %v3062
    %v3064 = vrot.slane %v3044, 3
    %v3065 = vrot.slane %v3047, 3
    %v3066 = vsel %vm2277, %v3064, %v3065
    %v3067 = vrot.slane %v3045, 3
    %v3068 = vrot.slane %v3048, 3
    %v3069 = vsel %vm2277, %v3067, %v3068
    %v3070 = vrot.slane %v3049, 3
    %v3071 = vsel %vm2277, %v3062, %v3070
    %v3072 = vrot.slane %v3050, 3
    %v3073 = vsel %vm2277, %v3065, %v3072
    %v3074 = vrot.slane %v3051, 3
    %v3075 = vsel %vm2277, %v3068, %v3074
    %3076 = vrot.lane.b32.xlu0 %v3063, 123
    %v3077 = vpop.permute.xlu0 %3076
    %3078 = vrot.lane.b32.xlu0 %v3066, 123
    %v3079 = vpop.permute.xlu0 %3078
    %3080 = vrot.lane.b32.xlu0 %v3069, 123
    %v3081 = vpop.permute.xlu0 %3080
    %3082 = vrot.lane.b32.xlu0 %v3071, 123
    %v3083 = vpop.permute.xlu0 %3082
    %3084 = vrot.lane.b32.xlu0 %v3073, 123
    %v3085 = vpop.permute.xlu0 %3084
    %3086 = vrot.lane.b32.xlu0 %v3075, 123
    %v3087 = vpop.permute.xlu0 %3086
    %v3088 = vsel %vm2791, %v3077, %v3079
    %v3089 = vsel %vm2791, %v3079, %v3081
    %v3090 = vsel %vm2791, %v3083, %v3085
    %v3091 = vsel %vm2791, %v3085, %v3087
    %v3098 = vadd.f32 %v2701, %v3088
    %v3099 = vadd.f32 %v2702, %v3089
    %v3100 = vadd.f32 %v2703, %v3081
    %v3101 = vadd.f32 %v2704, %v3090
    %v3102 = vadd.f32 %v2705, %v3091
    %v3103 = vadd.f32 %v2706, %v3087
    %v3104 = vld [vmem:[#allocation2] sm:$0xf0]
    %v3105 = vld [vmem:[#allocation2 + $0x8] sm:$0xf0]
    %v3106 = vld [vmem:[#allocation2 + $0x10] sm:$0xf0]
    %v3107 = vld [vmem:[#allocation2 + $0x30] sm:$0xf]
    %v3108 = vld [vmem:[#allocation2 + $0x38] sm:$0xf]
    %v3109 = vld [vmem:[#allocation2 + $0x40] sm:$0xf]
    %s3110 = scalar_lea.vmem [#allocation5], 1152
    %v3111 = vld [vmem:[%s3110] sm:$0xff]
    %v3112 = vld [vmem:[%s3110 + $0x8] sm:$0xff]
    %v3113 = vld [vmem:[%s3110 + $0x10] sm:$0xff]
    %v3114 = vld [vmem:[%s3110 + $0x18] sm:$0xff]
    %vm3119 = vcmask 1043456
    %v3120 = vrot.slane %v3111, 4
    %v3121 = vrot.slane %v3112, 4
    %v3122 = vrot.slane %v3113, 4
    %v3123 = vsel %vm3119, %v3120, %v3122
    %v3124 = vrot.slane %v3114, 4
    %v3125 = vsel %vm3119, %v3121, %v3124
    %v3132 = vmul.f32 %v3104, %v3120
    %v3133 = vmul.f32 %v3105, %v3121
    %v3134 = vmul.f32 %v503, %v3123
    %v3135 = vmul.f32 %v504, %v3125
    %v3136 = vmul.f32 %v3107, %v3122
    %v3137 = vmul.f32 %v3108, %v3124
    %v3144 = vrot.slane %v3132, 4
    %v3145 = vrot.slane %v3134, 4
    %v3146 = vsel %vm3119, %v3144, %v3145
    %v3147 = vrot.slane %v3133, 4
    %v3148 = vrot.slane %v3135, 4
    %v3149 = vsel %vm3119, %v3147, %v3148
    %v3150 = vrot.slane %v3136, 4
    %v3151 = vsel %vm3119, %v3145, %v3150
    %v3152 = vrot.slane %v3137, 4
    %v3153 = vsel %vm3119, %v3148, %v3152
    %v3158 = vadd.f32 %v2800, %v3146
    %v3159 = vadd.f32 %v2801, %v3149
    %v3160 = vadd.f32 %v2802, %v3151
    %v3161 = vadd.f32 %v2803, %v3153
    %s3162 = scalar_lea.vmem [#allocation5], 1184
    %v3163 = vld [vmem:[%s3162] sm:$0xff]
    %v3164 = vld [vmem:[%s3162 + $0x8] sm:$0xff]
    %v3165 = vld [vmem:[%s3162 + $0x10] sm:$0xff]
    %v3166 = vld [vmem:[%s3162 + $0x18] sm:$0xff]
    %v3171 = vrot.slane %v3163, 4
    %v3172 = vrot.slane %v3164, 4
    %v3173 = vrot.slane %v3165, 4
    %v3174 = vsel %vm3119, %v3171, %v3173
    %v3175 = vrot.slane %v3166, 4
    %v3176 = vsel %vm3119, %v3172, %v3175
    %3177 = vrot.lane.b32.xlu0 %v3171, 1
    %v3178 = vpop.permute.xlu0 %3177
    %3179 = vrot.lane.b32.xlu0 %v3172, 1
    %v3180 = vpop.permute.xlu0 %3179
    %3181 = vrot.lane.b32.xlu0 %v3174, 1
    %v3182 = vpop.permute.xlu0 %3181
    %3183 = vrot.lane.b32.xlu0 %v3176, 1
    %v3184 = vpop.permute.xlu0 %3183
    %3185 = vrot.lane.b32.xlu0 %v3173, 1
    %v3186 = vpop.permute.xlu0 %3185
    %3187 = vrot.lane.b32.xlu0 %v3175, 1
    %v3188 = vpop.permute.xlu0 %3187
    %v3189 = vsel %vm79, %v3178, %v3180
    %v3190 = vsel %vm79, %v3182, %v3184
    %v3191 = vsel %vm79, %v3186, %v3188
    %v3201 = vmul.f32 %v3104, %v3178
    %v3202 = vmul.f32 %v3105, %v3189
    %v3203 = vmul.f32 %v3106, %v3180
    %v3204 = vmul.f32 %v503, %v3182
    %v3205 = vmul.f32 %v504, %v3190
    %v3206 = vmul.f32 %v505, %v3184
    %v3207 = vmul.f32 %v3107, %v3186
    %v3208 = vmul.f32 %v3108, %v3191
    %v3209 = vmul.f32 %v3109, %v3188
    %v3219 = vrot.slane %v3201, 4
    %v3220 = vrot.slane %v3204, 4
    %v3221 = vsel %vm3119, %v3219, %v3220
    %v3222 = vrot.slane %v3202, 4
    %v3223 = vrot.slane %v3205, 4
    %v3224 = vsel %vm3119, %v3222, %v3223
    %v3225 = vrot.slane %v3203, 4
    %v3226 = vrot.slane %v3206, 4
    %v3227 = vsel %vm3119, %v3225, %v3226
    %v3228 = vrot.slane %v3207, 4
    %v3229 = vsel %vm3119, %v3220, %v3228
    %v3230 = vrot.slane %v3208, 4
    %v3231 = vsel %vm3119, %v3223, %v3230
    %v3232 = vrot.slane %v3209, 4
    %v3233 = vsel %vm3119, %v3226, %v3232
    %v3240 = vadd.f32 %v2898, %v3221
    %v3241 = vadd.f32 %v2899, %v3224
    %v3242 = vadd.f32 %v2900, %v3227
    %v3243 = vadd.f32 %v2901, %v3229
    %v3244 = vadd.f32 %v2902, %v3231
    %v3245 = vadd.f32 %v2903, %v3233
    %s3246 = scalar_lea.vmem [#allocation5], 1216
    %v3247 = vld [vmem:[%s3246] sm:$0xff]
    %v3248 = vld [vmem:[%s3246 + $0x8] sm:$0xff]
    %v3249 = vld [vmem:[%s3246 + $0x10] sm:$0xff]
    %v3250 = vld [vmem:[%s3246 + $0x18] sm:$0xff]
    %v3255 = vrot.slane %v3247, 4
    %v3256 = vrot.slane %v3248, 4
    %v3257 = vrot.slane %v3249, 4
    %v3258 = vsel %vm3119, %v3255, %v3257
    %v3259 = vrot.slane %v3250, 4
    %v3260 = vsel %vm3119, %v3256, %v3259
    %3261 = vrot.lane.b32.xlu0 %v3255, 2
    %v3262 = vpop.permute.xlu0 %3261
    %3263 = vrot.lane.b32.xlu0 %v3256, 2
    %v3264 = vpop.permute.xlu0 %3263
    %3265 = vrot.lane.b32.xlu0 %v3258, 2
    %v3266 = vpop.permute.xlu0 %3265
    %3267 = vrot.lane.b32.xlu0 %v3260, 2
    %v3268 = vpop.permute.xlu0 %3267
    %3269 = vrot.lane.b32.xlu0 %v3257, 2
    %v3270 = vpop.permute.xlu0 %3269
    %3271 = vrot.lane.b32.xlu0 %v3259, 2
    %v3272 = vpop.permute.xlu0 %3271
    %v3273 = vsel %vm117, %v3262, %v3264
    %v3274 = vsel %vm117, %v3266, %v3268
    %v3275 = vsel %vm117, %v3270, %v3272
    %v3285 = vmul.f32 %v3104, %v3262
    %v3286 = vmul.f32 %v3105, %v3273
    %v3287 = vmul.f32 %v3106, %v3264
    %v3288 = vmul.f32 %v503, %v3266
    %v3289 = vmul.f32 %v504, %v3274
    %v3290 = vmul.f32 %v505, %v3268
    %v3291 = vmul.f32 %v3107, %v3270
    %v3292 = vmul.f32 %v3108, %v3275
    %v3293 = vmul.f32 %v3109, %v3272
    %v3303 = vrot.slane %v3285, 4
    %v3304 = vrot.slane %v3288, 4
    %v3305 = vsel %vm3119, %v3303, %v3304
    %v3306 = vrot.slane %v3286, 4
    %v3307 = vrot.slane %v3289, 4
    %v3308 = vsel %vm3119, %v3306, %v3307
    %v3309 = vrot.slane %v3287, 4
    %v3310 = vrot.slane %v3290, 4
    %v3311 = vsel %vm3119, %v3309, %v3310
    %v3312 = vrot.slane %v3291, 4
    %v3313 = vsel %vm3119, %v3304, %v3312
    %v3314 = vrot.slane %v3292, 4
    %v3315 = vsel %vm3119, %v3307, %v3314
    %v3316 = vrot.slane %v3293, 4
    %v3317 = vsel %vm3119, %v3310, %v3316
    %v3324 = vadd.f32 %v2998, %v3305
    %v3325 = vadd.f32 %v2999, %v3308
    %v3326 = vadd.f32 %v3000, %v3311
    %v3327 = vadd.f32 %v3001, %v3313
    %v3328 = vadd.f32 %v3002, %v3315
    %v3329 = vadd.f32 %v3003, %v3317
    %s3330 = scalar_lea.vmem [#allocation5], 1248
    %v3331 = vld [vmem:[%s3330] sm:$0xff]
    %v3332 = vld [vmem:[%s3330 + $0x8] sm:$0xff]
    %v3333 = vld [vmem:[%s3330 + $0x10] sm:$0xff]
    %v3334 = vld [vmem:[%s3330 + $0x18] sm:$0xff]
    %v3339 = vrot.slane %v3331, 4
    %v3340 = vrot.slane %v3332, 4
    %v3341 = vrot.slane %v3333, 4
    %v3342 = vsel %vm3119, %v3339, %v3341
    %v3343 = vrot.slane %v3334, 4
    %v3344 = vsel %vm3119, %v3340, %v3343
    %3345 = vrot.lane.b32.xlu0 %v3339, 3
    %v3346 = vpop.permute.xlu0 %3345
    %3347 = vrot.lane.b32.xlu0 %v3340, 3
    %v3348 = vpop.permute.xlu0 %3347
    %3349 = vrot.lane.b32.xlu0 %v3342, 3
    %v3350 = vpop.permute.xlu0 %3349
    %3351 = vrot.lane.b32.xlu0 %v3344, 3
    %v3352 = vpop.permute.xlu0 %3351
    %3353 = vrot.lane.b32.xlu0 %v3341, 3
    %v3354 = vpop.permute.xlu0 %3353
    %3355 = vrot.lane.b32.xlu0 %v3343, 3
    %v3356 = vpop.permute.xlu0 %3355
    %v3357 = vsel %vm155, %v3346, %v3348
    %v3358 = vsel %vm155, %v3350, %v3352
    %v3359 = vsel %vm155, %v3354, %v3356
    %v3369 = vmul.f32 %v3104, %v3346
    %v3370 = vmul.f32 %v3105, %v3357
    %v3371 = vmul.f32 %v3106, %v3348
    %v3372 = vmul.f32 %v503, %v3350
    %v3373 = vmul.f32 %v504, %v3358
    %v3374 = vmul.f32 %v505, %v3352
    %v3375 = vmul.f32 %v3107, %v3354
    %v3376 = vmul.f32 %v3108, %v3359
    %v3377 = vmul.f32 %v3109, %v3356
    %v3387 = vrot.slane %v3369, 4
    %v3388 = vrot.slane %v3372, 4
    %v3389 = vsel %vm3119, %v3387, %v3388
    %v3390 = vrot.slane %v3370, 4
    %v3391 = vrot.slane %v3373, 4
    %v3392 = vsel %vm3119, %v3390, %v3391
    %v3393 = vrot.slane %v3371, 4
    %v3394 = vrot.slane %v3374, 4
    %v3395 = vsel %vm3119, %v3393, %v3394
    %v3396 = vrot.slane %v3375, 4
    %v3397 = vsel %vm3119, %v3388, %v3396
    %v3398 = vrot.slane %v3376, 4
    %v3399 = vsel %vm3119, %v3391, %v3398
    %v3400 = vrot.slane %v3377, 4
    %v3401 = vsel %vm3119, %v3394, %v3400
    %v3408 = vadd.f32 %v3098, %v3389
    %v3409 = vadd.f32 %v3099, %v3392
    %v3410 = vadd.f32 %v3100, %v3395
    %v3411 = vadd.f32 %v3101, %v3397
    %v3412 = vadd.f32 %v3102, %v3399
    %v3413 = vadd.f32 %v3103, %v3401
    %s3414 = scalar_lea.vmem [#allocation5], 1280
    %v3415 = vld [vmem:[%s3414] sm:$0xff]
    %v3416 = vld [vmem:[%s3414 + $0x8] sm:$0xff]
    %v3417 = vld [vmem:[%s3414 + $0x10] sm:$0xff]
    %v3418 = vld [vmem:[%s3414 + $0x18] sm:$0xff]
    %v3423 = vrot.slane %v3415, 4
    %v3424 = vrot.slane %v3416, 4
    %v3425 = vrot.slane %v3417, 4
    %v3426 = vsel %vm3119, %v3423, %v3425
    %v3427 = vrot.slane %v3418, 4
    %v3428 = vsel %vm3119, %v3424, %v3427
    %3429 = vrot.lane.b32.xlu0 %v3423, 4
    %v3430 = vpop.permute.xlu0 %3429
    %3431 = vrot.lane.b32.xlu0 %v3424, 4
    %v3432 = vpop.permute.xlu0 %3431
    %3433 = vrot.lane.b32.xlu0 %v3426, 4
    %v3434 = vpop.permute.xlu0 %3433
    %3435 = vrot.lane.b32.xlu0 %v3428, 4
    %v3436 = vpop.permute.xlu0 %3435
    %3437 = vrot.lane.b32.xlu0 %v3425, 4
    %v3438 = vpop.permute.xlu0 %3437
    %3439 = vrot.lane.b32.xlu0 %v3427, 4
    %v3440 = vpop.permute.xlu0 %3439
    %v3441 = vsel %vm193, %v3430, %v3432
    %v3442 = vsel %vm193, %v3434, %v3436
    %v3443 = vsel %vm193, %v3438, %v3440
    %v3453 = vmul.f32 %v3104, %v3430
    %v3454 = vmul.f32 %v3105, %v3441
    %v3455 = vmul.f32 %v3106, %v3432
    %v3456 = vmul.f32 %v503, %v3434
    %v3457 = vmul.f32 %v504, %v3442
    %v3458 = vmul.f32 %v505, %v3436
    %v3459 = vmul.f32 %v3107, %v3438
    %v3460 = vmul.f32 %v3108, %v3443
    %v3461 = vmul.f32 %v3109, %v3440
    %v3471 = vrot.slane %v3453, 4
    %v3472 = vrot.slane %v3456, 4
    %v3473 = vsel %vm3119, %v3471, %v3472
    %v3474 = vrot.slane %v3454, 4
    %v3475 = vrot.slane %v3457, 4
    %v3476 = vsel %vm3119, %v3474, %v3475
    %v3477 = vrot.slane %v3455, 4
    %v3478 = vrot.slane %v3458, 4
    %v3479 = vsel %vm3119, %v3477, %v3478
    %v3480 = vrot.slane %v3459, 4
    %v3481 = vsel %vm3119, %v3472, %v3480
    %v3482 = vrot.slane %v3460, 4
    %v3483 = vsel %vm3119, %v3475, %v3482
    %v3484 = vrot.slane %v3461, 4
    %v3485 = vsel %vm3119, %v3478, %v3484
    %3486 = vrot.lane.b32.xlu0 %v3473, 124
    %v3487 = vpop.permute.xlu0 %3486
    %3488 = vrot.lane.b32.xlu0 %v3476, 124
    %v3489 = vpop.permute.xlu0 %3488
    %3490 = vrot.lane.b32.xlu0 %v3479, 124
    %v3491 = vpop.permute.xlu0 %3490
    %3492 = vrot.lane.b32.xlu0 %v3481, 124
    %v3493 = vpop.permute.xlu0 %3492
    %3494 = vrot.lane.b32.xlu0 %v3483, 124
    %v3495 = vpop.permute.xlu0 %3494
    %3496 = vrot.lane.b32.xlu0 %v3485, 124
    %v3497 = vpop.permute.xlu0 %3496
    %v3498 = vsel %vm226, %v3487, %v3489
    %v3499 = vsel %vm226, %v3489, %v3491
    %v3500 = vsel %vm226, %v3493, %v3495
    %v3501 = vsel %vm226, %v3495, %v3497
    %v3506 = vadd.f32 %v3158, %v3498
    %v3507 = vadd.f32 %v3159, %v3499
    %v3508 = vadd.f32 %v3160, %v3500
    %v3509 = vadd.f32 %v3161, %v3501
    %s3510 = scalar_lea.vmem [#allocation5], 1312
    %v3511 = vld [vmem:[%s3510] sm:$0xff]
    %v3512 = vld [vmem:[%s3510 + $0x8] sm:$0xff]
    %v3513 = vld [vmem:[%s3510 + $0x10] sm:$0xff]
    %v3514 = vld [vmem:[%s3510 + $0x18] sm:$0xff]
    %v3519 = vrot.slane %v3511, 4
    %v3520 = vrot.slane %v3512, 4
    %v3521 = vrot.slane %v3513, 4
    %v3522 = vsel %vm3119, %v3519, %v3521
    %v3523 = vrot.slane %v3514, 4
    %v3524 = vsel %vm3119, %v3520, %v3523
    %3525 = vrot.lane.b32.xlu0 %v3519, 5
    %v3526 = vpop.permute.xlu0 %3525
    %3527 = vrot.lane.b32.xlu0 %v3520, 5
    %v3528 = vpop.permute.xlu0 %3527
    %3529 = vrot.lane.b32.xlu0 %v3522, 5
    %v3530 = vpop.permute.xlu0 %3529
    %3531 = vrot.lane.b32.xlu0 %v3524, 5
    %v3532 = vpop.permute.xlu0 %3531
    %3533 = vrot.lane.b32.xlu0 %v3521, 5
    %v3534 = vpop.permute.xlu0 %3533
    %3535 = vrot.lane.b32.xlu0 %v3523, 5
    %v3536 = vpop.permute.xlu0 %3535
    %v3537 = vsel %vm256, %v3526, %v3528
    %v3538 = vsel %vm256, %v3530, %v3532
    %v3539 = vsel %vm256, %v3534, %v3536
    %v3549 = vmul.f32 %v3104, %v3526
    %v3550 = vmul.f32 %v3105, %v3537
    %v3551 = vmul.f32 %v3106, %v3528
    %v3552 = vmul.f32 %v503, %v3530
    %v3553 = vmul.f32 %v504, %v3538
    %v3554 = vmul.f32 %v505, %v3532
    %v3555 = vmul.f32 %v3107, %v3534
    %v3556 = vmul.f32 %v3108, %v3539
    %v3557 = vmul.f32 %v3109, %v3536
    %v3567 = vrot.slane %v3549, 4
    %v3568 = vrot.slane %v3552, 4
    %v3569 = vsel %vm3119, %v3567, %v3568
    %v3570 = vrot.slane %v3550, 4
    %v3571 = vrot.slane %v3553, 4
    %v3572 = vsel %vm3119, %v3570, %v3571
    %v3573 = vrot.slane %v3551, 4
    %v3574 = vrot.slane %v3554, 4
    %v3575 = vsel %vm3119, %v3573, %v3574
    %v3576 = vrot.slane %v3555, 4
    %v3577 = vsel %vm3119, %v3568, %v3576
    %v3578 = vrot.slane %v3556, 4
    %v3579 = vsel %vm3119, %v3571, %v3578
    %v3580 = vrot.slane %v3557, 4
    %v3581 = vsel %vm3119, %v3574, %v3580
    %3582 = vrot.lane.b32.xlu0 %v3569, 124
    %v3583 = vpop.permute.xlu0 %3582
    %3584 = vrot.lane.b32.xlu0 %v3572, 124
    %v3585 = vpop.permute.xlu0 %3584
    %3586 = vrot.lane.b32.xlu0 %v3575, 124
    %v3587 = vpop.permute.xlu0 %3586
    %3588 = vrot.lane.b32.xlu0 %v3577, 124
    %v3589 = vpop.permute.xlu0 %3588
    %3590 = vrot.lane.b32.xlu0 %v3579, 124
    %v3591 = vpop.permute.xlu0 %3590
    %3592 = vrot.lane.b32.xlu0 %v3581, 124
    %v3593 = vpop.permute.xlu0 %3592
    %v3594 = vsel %vm226, %v3583, %v3585
    %v3595 = vsel %vm226, %v3585, %v3587
    %v3596 = vsel %vm226, %v3589, %v3591
    %v3597 = vsel %vm226, %v3591, %v3593
    %v3604 = vadd.f32 %v3240, %v3594
    %v3605 = vadd.f32 %v3241, %v3595
    %v3606 = vadd.f32 %v3242, %v3587
    %v3607 = vadd.f32 %v3243, %v3596
    %v3608 = vadd.f32 %v3244, %v3597
    %v3609 = vadd.f32 %v3245, %v3593
    %s3610 = scalar_lea.vmem [#allocation5], 1344
    %v3611 = vld [vmem:[%s3610] sm:$0xff]
    %v3612 = vld [vmem:[%s3610 + $0x8] sm:$0xff]
    %v3613 = vld [vmem:[%s3610 + $0x10] sm:$0xff]
    %v3614 = vld [vmem:[%s3610 + $0x18] sm:$0xff]
    %v3619 = vrot.slane %v3611, 4
    %v3620 = vrot.slane %v3612, 4
    %v3621 = vrot.slane %v3613, 4
    %v3622 = vsel %vm3119, %v3619, %v3621
    %v3623 = vrot.slane %v3614, 4
    %v3624 = vsel %vm3119, %v3620, %v3623
    %3625 = vrot.lane.b32.xlu0 %v3619, 6
    %v3626 = vpop.permute.xlu0 %3625
    %3627 = vrot.lane.b32.xlu0 %v3620, 6
    %v3628 = vpop.permute.xlu0 %3627
    %3629 = vrot.lane.b32.xlu0 %v3622, 6
    %v3630 = vpop.permute.xlu0 %3629
    %3631 = vrot.lane.b32.xlu0 %v3624, 6
    %v3632 = vpop.permute.xlu0 %3631
    %3633 = vrot.lane.b32.xlu0 %v3621, 6
    %v3634 = vpop.permute.xlu0 %3633
    %3635 = vrot.lane.b32.xlu0 %v3623, 6
    %v3636 = vpop.permute.xlu0 %3635
    %v3637 = vsel %vm322, %v3626, %v3628
    %v3638 = vsel %vm322, %v3630, %v3632
    %v3639 = vsel %vm322, %v3634, %v3636
    %v3649 = vmul.f32 %v3104, %v3626
    %v3650 = vmul.f32 %v3105, %v3637
    %v3651 = vmul.f32 %v3106, %v3628
    %v3652 = vmul.f32 %v503, %v3630
    %v3653 = vmul.f32 %v504, %v3638
    %v3654 = vmul.f32 %v505, %v3632
    %v3655 = vmul.f32 %v3107, %v3634
    %v3656 = vmul.f32 %v3108, %v3639
    %v3657 = vmul.f32 %v3109, %v3636
    %v3667 = vrot.slane %v3649, 4
    %v3668 = vrot.slane %v3652, 4
    %v3669 = vsel %vm3119, %v3667, %v3668
    %v3670 = vrot.slane %v3650, 4
    %v3671 = vrot.slane %v3653, 4
    %v3672 = vsel %vm3119, %v3670, %v3671
    %v3673 = vrot.slane %v3651, 4
    %v3674 = vrot.slane %v3654, 4
    %v3675 = vsel %vm3119, %v3673, %v3674
    %v3676 = vrot.slane %v3655, 4
    %v3677 = vsel %vm3119, %v3668, %v3676
    %v3678 = vrot.slane %v3656, 4
    %v3679 = vsel %vm3119, %v3671, %v3678
    %v3680 = vrot.slane %v3657, 4
    %v3681 = vsel %vm3119, %v3674, %v3680
    %3682 = vrot.lane.b32.xlu0 %v3669, 124
    %v3683 = vpop.permute.xlu0 %3682
    %3684 = vrot.lane.b32.xlu0 %v3672, 124
    %v3685 = vpop.permute.xlu0 %3684
    %3686 = vrot.lane.b32.xlu0 %v3675, 124
    %v3687 = vpop.permute.xlu0 %3686
    %3688 = vrot.lane.b32.xlu0 %v3677, 124
    %v3689 = vpop.permute.xlu0 %3688
    %3690 = vrot.lane.b32.xlu0 %v3679, 124
    %v3691 = vpop.permute.xlu0 %3690
    %3692 = vrot.lane.b32.xlu0 %v3681, 124
    %v3693 = vpop.permute.xlu0 %3692
    %v3694 = vsel %vm226, %v3683, %v3685
    %v3695 = vsel %vm226, %v3685, %v3687
    %v3696 = vsel %vm226, %v3689, %v3691
    %v3697 = vsel %vm226, %v3691, %v3693
    %v3704 = vadd.f32 %v3324, %v3694
    %v3705 = vadd.f32 %v3325, %v3695
    %v3706 = vadd.f32 %v3326, %v3687
    %v3707 = vadd.f32 %v3327, %v3696
    %v3708 = vadd.f32 %v3328, %v3697
    %v3709 = vadd.f32 %v3329, %v3693
    %s3710 = scalar_lea.vmem [#allocation5], 1376
    %v3711 = vld [vmem:[%s3710] sm:$0xff]
    %v3712 = vld [vmem:[%s3710 + $0x8] sm:$0xff]
    %v3713 = vld [vmem:[%s3710 + $0x10] sm:$0xff]
    %v3714 = vld [vmem:[%s3710 + $0x18] sm:$0xff]
    %v3719 = vrot.slane %v3711, 4
    %v3720 = vrot.slane %v3712, 4
    %v3721 = vrot.slane %v3713, 4
    %v3722 = vsel %vm3119, %v3719, %v3721
    %v3723 = vrot.slane %v3714, 4
    %v3724 = vsel %vm3119, %v3720, %v3723
    %3725 = vrot.lane.b32.xlu0 %v3719, 7
    %v3726 = vpop.permute.xlu0 %3725
    %3727 = vrot.lane.b32.xlu0 %v3720, 7
    %v3728 = vpop.permute.xlu0 %3727
    %3729 = vrot.lane.b32.xlu0 %v3722, 7
    %v3730 = vpop.permute.xlu0 %3729
    %3731 = vrot.lane.b32.xlu0 %v3724, 7
    %v3732 = vpop.permute.xlu0 %3731
    %3733 = vrot.lane.b32.xlu0 %v3721, 7
    %v3734 = vpop.permute.xlu0 %3733
    %3735 = vrot.lane.b32.xlu0 %v3723, 7
    %v3736 = vpop.permute.xlu0 %3735
    %v3737 = vsel %vm388, %v3726, %v3728
    %v3738 = vsel %vm388, %v3730, %v3732
    %v3739 = vsel %vm388, %v3734, %v3736
    %v3749 = vmul.f32 %v3104, %v3726
    %v3750 = vmul.f32 %v3105, %v3737
    %v3751 = vmul.f32 %v3106, %v3728
    %v3752 = vmul.f32 %v503, %v3730
    %v3753 = vmul.f32 %v504, %v3738
    %v3754 = vmul.f32 %v505, %v3732
    %v3755 = vmul.f32 %v3107, %v3734
    %v3756 = vmul.f32 %v3108, %v3739
    %v3757 = vmul.f32 %v3109, %v3736
    %v3767 = vrot.slane %v3749, 4
    %v3768 = vrot.slane %v3752, 4
    %v3769 = vsel %vm3119, %v3767, %v3768
    %v3770 = vrot.slane %v3750, 4
    %v3771 = vrot.slane %v3753, 4
    %v3772 = vsel %vm3119, %v3770, %v3771
    %v3773 = vrot.slane %v3751, 4
    %v3774 = vrot.slane %v3754, 4
    %v3775 = vsel %vm3119, %v3773, %v3774
    %v3776 = vrot.slane %v3755, 4
    %v3777 = vsel %vm3119, %v3768, %v3776
    %v3778 = vrot.slane %v3756, 4
    %v3779 = vsel %vm3119, %v3771, %v3778
    %v3780 = vrot.slane %v3757, 4
    %v3781 = vsel %vm3119, %v3774, %v3780
    %3782 = vrot.lane.b32.xlu0 %v3769, 124
    %v3783 = vpop.permute.xlu0 %3782
    %3784 = vrot.lane.b32.xlu0 %v3772, 124
    %v3785 = vpop.permute.xlu0 %3784
    %3786 = vrot.lane.b32.xlu0 %v3775, 124
    %v3787 = vpop.permute.xlu0 %3786
    %3788 = vrot.lane.b32.xlu0 %v3777, 124
    %v3789 = vpop.permute.xlu0 %3788
    %3790 = vrot.lane.b32.xlu0 %v3779, 124
    %v3791 = vpop.permute.xlu0 %3790
    %3792 = vrot.lane.b32.xlu0 %v3781, 124
    %v3793 = vpop.permute.xlu0 %3792
    %v3794 = vsel %vm226, %v3783, %v3785
    %v3795 = vsel %vm226, %v3785, %v3787
    %v3796 = vsel %vm226, %v3789, %v3791
    %v3797 = vsel %vm226, %v3791, %v3793
    %v3804 = vadd.f32 %v3408, %v3794
    %v3805 = vadd.f32 %v3409, %v3795
    %v3806 = vadd.f32 %v3410, %v3787
    %v3807 = vadd.f32 %v3411, %v3796
    %v3808 = vadd.f32 %v3412, %v3797
    %v3809 = vadd.f32 %v3413, %v3793
    %s3810 = scalar_lea.vmem [#allocation5], 1408
    %v3811 = vld [vmem:[%s3810] sm:$0xff]
    %v3812 = vld [vmem:[%s3810 + $0x8] sm:$0xff]
    %v3813 = vld [vmem:[%s3810 + $0x10] sm:$0xff]
    %v3814 = vld [vmem:[%s3810 + $0x18] sm:$0xff]
    %v3819 = vrot.slane %v3811, 4
    %v3820 = vrot.slane %v3812, 4
    %v3821 = vrot.slane %v3813, 4
    %v3822 = vsel %vm3119, %v3819, %v3821
    %v3823 = vrot.slane %v3814, 4
    %v3824 = vsel %vm3119, %v3820, %v3823
    %3825 = vrot.lane.b32.xlu0 %v3819, 8
    %v3826 = vpop.permute.xlu0 %3825
    %3827 = vrot.lane.b32.xlu0 %v3820, 8
    %v3828 = vpop.permute.xlu0 %3827
    %3829 = vrot.lane.b32.xlu0 %v3822, 8
    %v3830 = vpop.permute.xlu0 %3829
    %3831 = vrot.lane.b32.xlu0 %v3824, 8
    %v3832 = vpop.permute.xlu0 %3831
    %3833 = vrot.lane.b32.xlu0 %v3821, 8
    %v3834 = vpop.permute.xlu0 %3833
    %3835 = vrot.lane.b32.xlu0 %v3823, 8
    %v3836 = vpop.permute.xlu0 %3835
    %v3837 = vsel %vm454, %v3826, %v3828
    %v3838 = vsel %vm454, %v3830, %v3832
    %v3839 = vsel %vm454, %v3834, %v3836
    %v3849 = vmul.f32 %v3104, %v3826
    %v3850 = vmul.f32 %v3105, %v3837
    %v3851 = vmul.f32 %v3106, %v3828
    %v3852 = vmul.f32 %v503, %v3830
    %v3853 = vmul.f32 %v504, %v3838
    %v3854 = vmul.f32 %v505, %v3832
    %v3855 = vmul.f32 %v3107, %v3834
    %v3856 = vmul.f32 %v3108, %v3839
    %v3857 = vmul.f32 %v3109, %v3836
    %v3867 = vrot.slane %v3849, 4
    %v3868 = vrot.slane %v3852, 4
    %v3869 = vsel %vm3119, %v3867, %v3868
    %v3870 = vrot.slane %v3850, 4
    %v3871 = vrot.slane %v3853, 4
    %v3872 = vsel %vm3119, %v3870, %v3871
    %v3873 = vrot.slane %v3851, 4
    %v3874 = vrot.slane %v3854, 4
    %v3875 = vsel %vm3119, %v3873, %v3874
    %v3876 = vrot.slane %v3855, 4
    %v3877 = vsel %vm3119, %v3868, %v3876
    %v3878 = vrot.slane %v3856, 4
    %v3879 = vsel %vm3119, %v3871, %v3878
    %v3880 = vrot.slane %v3857, 4
    %v3881 = vsel %vm3119, %v3874, %v3880
    %3882 = vrot.lane.b32.xlu0 %v3869, 120
    %v3883 = vpop.permute.xlu0 %3882
    %3884 = vrot.lane.b32.xlu0 %v3872, 120
    %v3885 = vpop.permute.xlu0 %3884
    %3886 = vrot.lane.b32.xlu0 %v3875, 120
    %v3887 = vpop.permute.xlu0 %3886
    %3888 = vrot.lane.b32.xlu0 %v3877, 120
    %v3889 = vpop.permute.xlu0 %3888
    %3890 = vrot.lane.b32.xlu0 %v3879, 120
    %v3891 = vpop.permute.xlu0 %3890
    %3892 = vrot.lane.b32.xlu0 %v3881, 120
    %v3893 = vpop.permute.xlu0 %3892
    %v3894 = vsel %vm487, %v3883, %v3885
    %v3895 = vsel %vm487, %v3885, %v3887
    %v3896 = vsel %vm487, %v3889, %v3891
    %v3897 = vsel %vm487, %v3891, %v3893
    %v3902 = vadd.f32 %v3506, %v3894
    %v3903 = vadd.f32 %v3507, %v3895
    %v3904 = vadd.f32 %v3508, %v3896
    %v3905 = vadd.f32 %v3509, %v3897
    %v3906 = vld [vmem:[#allocation2] sm:$0xe0]
    %v3907 = vld [vmem:[#allocation2 + $0x8] sm:$0xe0]
    %v3908 = vld [vmem:[#allocation2 + $0x10] sm:$0xe0]
    %v3909 = vld [vmem:[#allocation2 + $0x30] sm:$0x1f]
    %v3910 = vld [vmem:[#allocation2 + $0x38] sm:$0x1f]
    %v3911 = vld [vmem:[#allocation2 + $0x40] sm:$0x1f]
    %s3912 = scalar_lea.vmem [#allocation5], 1440
    %v3913 = vld [vmem:[%s3912] sm:$0xff]
    %v3914 = vld [vmem:[%s3912 + $0x8] sm:$0xff]
    %v3915 = vld [vmem:[%s3912 + $0x10] sm:$0xff]
    %v3916 = vld [vmem:[%s3912 + $0x18] sm:$0xff]
    %v3921 = vrot.slane %v3913, 3
    %v3922 = vrot.slane %v3914, 3
    %v3923 = vrot.slane %v3915, 3
    %v3924 = vsel %vm2277, %v3921, %v3923
    %v3925 = vrot.slane %v3916, 3
    %v3926 = vsel %vm2277, %v3922, %v3925
    %v3933 = vmul.f32 %v3906, %v3921
    %v3934 = vmul.f32 %v3907, %v3922
    %v3935 = vmul.f32 %v503, %v3924
    %v3936 = vmul.f32 %v504, %v3926
    %v3937 = vmul.f32 %v3909, %v3923
    %v3938 = vmul.f32 %v3910, %v3925
    %v3945 = vrot.slane %v3933, 5
    %v3946 = vrot.slane %v3935, 5
    %v3947 = vsel %vm2252, %v3945, %v3946
    %v3948 = vrot.slane %v3934, 5
    %v3949 = vrot.slane %v3936, 5
    %v3950 = vsel %vm2252, %v3948, %v3949
    %v3951 = vrot.slane %v3937, 5
    %v3952 = vsel %vm2252, %v3946, %v3951
    %v3953 = vrot.slane %v3938, 5
    %v3954 = vsel %vm2252, %v3949, %v3953
    %3955 = vrot.lane.b32.xlu0 %v3947, 1
    %v3956 = vpop.permute.xlu0 %3955
    %3957 = vrot.lane.b32.xlu0 %v3950, 1
    %v3958 = vpop.permute.xlu0 %3957
    %3959 = vrot.lane.b32.xlu0 %v3952, 1
    %v3960 = vpop.permute.xlu0 %3959
    %3961 = vrot.lane.b32.xlu0 %v3954, 1
    %v3962 = vpop.permute.xlu0 %3961
    %v3963 = vsel %vm79, %v3956, %v3958
    %v3964 = vsel %vm79, %v3960, %v3962
    %v3971 = vadd.f32 %v3604, %v3956
    %v3972 = vadd.f32 %v3605, %v3963
    %v3973 = vadd.f32 %v3606, %v3958
    %v3974 = vadd.f32 %v3607, %v3960
    %v3975 = vadd.f32 %v3608, %v3964
    %v3976 = vadd.f32 %v3609, %v3962
    %s3977 = scalar_lea.vmem [#allocation5], 1472
    %v3978 = vld [vmem:[%s3977] sm:$0xff]
    %v3979 = vld [vmem:[%s3977 + $0x8] sm:$0xff]
    %v3980 = vld [vmem:[%s3977 + $0x10] sm:$0xff]
    %v3981 = vld [vmem:[%s3977 + $0x18] sm:$0xff]
    %v3986 = vrot.slane %v3978, 3
    %v3987 = vrot.slane %v3979, 3
    %v3988 = vrot.slane %v3980, 3
    %v3989 = vsel %vm2277, %v3986, %v3988
    %v3990 = vrot.slane %v3981, 3
    %v3991 = vsel %vm2277, %v3987, %v3990
    %3992 = vrot.lane.b32.xlu0 %v3986, 1
    %v3993 = vpop.permute.xlu0 %3992
    %3994 = vrot.lane.b32.xlu0 %v3987, 1
    %v3995 = vpop.permute.xlu0 %3994
    %3996 = vrot.lane.b32.xlu0 %v3989, 1
    %v3997 = vpop.permute.xlu0 %3996
    %3998 = vrot.lane.b32.xlu0 %v3991, 1
    %v3999 = vpop.permute.xlu0 %3998
    %4000 = vrot.lane.b32.xlu0 %v3988, 1
    %v4001 = vpop.permute.xlu0 %4000
    %4002 = vrot.lane.b32.xlu0 %v3990, 1
    %v4003 = vpop.permute.xlu0 %4002
    %v4004 = vsel %vm79, %v3993, %v3995
    %v4005 = vsel %vm79, %v3997, %v3999
    %v4006 = vsel %vm79, %v4001, %v4003
    %v4016 = vmul.f32 %v3906, %v3993
    %v4017 = vmul.f32 %v3907, %v4004
    %v4018 = vmul.f32 %v3908, %v3995
    %v4019 = vmul.f32 %v503, %v3997
    %v4020 = vmul.f32 %v504, %v4005
    %v4021 = vmul.f32 %v505, %v3999
    %v4022 = vmul.f32 %v3909, %v4001
    %v4023 = vmul.f32 %v3910, %v4006
    %v4024 = vmul.f32 %v3911, %v4003
    %v4034 = vrot.slane %v4016, 5
    %v4035 = vrot.slane %v4019, 5
    %v4036 = vsel %vm2252, %v4034, %v4035
    %v4037 = vrot.slane %v4017, 5
    %v4038 = vrot.slane %v4020, 5
    %v4039 = vsel %vm2252, %v4037, %v4038
    %v4040 = vrot.slane %v4018, 5
    %v4041 = vrot.slane %v4021, 5
    %v4042 = vsel %vm2252, %v4040, %v4041
    %v4043 = vrot.slane %v4022, 5
    %v4044 = vsel %vm2252, %v4035, %v4043
    %v4045 = vrot.slane %v4023, 5
    %v4046 = vsel %vm2252, %v4038, %v4045
    %v4047 = vrot.slane %v4024, 5
    %v4048 = vsel %vm2252, %v4041, %v4047
    %4049 = vrot.lane.b32.xlu0 %v4036, 1
    %v4050 = vpop.permute.xlu0 %4049
    %4051 = vrot.lane.b32.xlu0 %v4039, 1
    %v4052 = vpop.permute.xlu0 %4051
    %4053 = vrot.lane.b32.xlu0 %v4042, 1
    %v4054 = vpop.permute.xlu0 %4053
    %4055 = vrot.lane.b32.xlu0 %v4044, 1
    %v4056 = vpop.permute.xlu0 %4055
    %4057 = vrot.lane.b32.xlu0 %v4046, 1
    %v4058 = vpop.permute.xlu0 %4057
    %4059 = vrot.lane.b32.xlu0 %v4048, 1
    %v4060 = vpop.permute.xlu0 %4059
    %v4061 = vsel %vm79, %v4050, %v4052
    %v4062 = vsel %vm79, %v4052, %v4054
    %v4063 = vsel %vm79, %v4056, %v4058
    %v4064 = vsel %vm79, %v4058, %v4060
    %v4071 = vadd.f32 %v3704, %v4050
    %v4072 = vadd.f32 %v3705, %v4061
    %v4073 = vadd.f32 %v3706, %v4062
    %v4074 = vadd.f32 %v3707, %v4056
    %v4075 = vadd.f32 %v3708, %v4063
    %v4076 = vadd.f32 %v3709, %v4064
    %s4077 = scalar_lea.vmem [#allocation5], 1504
    %v4078 = vld [vmem:[%s4077] sm:$0xff]
    %v4079 = vld [vmem:[%s4077 + $0x8] sm:$0xff]
    %v4080 = vld [vmem:[%s4077 + $0x10] sm:$0xff]
    %v4081 = vld [vmem:[%s4077 + $0x18] sm:$0xff]
    %v4086 = vrot.slane %v4078, 3
    %v4087 = vrot.slane %v4079, 3
    %v4088 = vrot.slane %v4080, 3
    %v4089 = vsel %vm2277, %v4086, %v4088
    %v4090 = vrot.slane %v4081, 3
    %v4091 = vsel %vm2277, %v4087, %v4090
    %4092 = vrot.lane.b32.xlu0 %v4086, 2
    %v4093 = vpop.permute.xlu0 %4092
    %4094 = vrot.lane.b32.xlu0 %v4087, 2
    %v4095 = vpop.permute.xlu0 %4094
    %4096 = vrot.lane.b32.xlu0 %v4089, 2
    %v4097 = vpop.permute.xlu0 %4096
    %4098 = vrot.lane.b32.xlu0 %v4091, 2
    %v4099 = vpop.permute.xlu0 %4098
    %4100 = vrot.lane.b32.xlu0 %v4088, 2
    %v4101 = vpop.permute.xlu0 %4100
    %4102 = vrot.lane.b32.xlu0 %v4090, 2
    %v4103 = vpop.permute.xlu0 %4102
    %v4104 = vsel %vm117, %v4093, %v4095
    %v4105 = vsel %vm117, %v4097, %v4099
    %v4106 = vsel %vm117, %v4101, %v4103
    %v4116 = vmul.f32 %v3906, %v4093
    %v4117 = vmul.f32 %v3907, %v4104
    %v4118 = vmul.f32 %v3908, %v4095
    %v4119 = vmul.f32 %v503, %v4097
    %v4120 = vmul.f32 %v504, %v4105
    %v4121 = vmul.f32 %v505, %v4099
    %v4122 = vmul.f32 %v3909, %v4101
    %v4123 = vmul.f32 %v3910, %v4106
    %v4124 = vmul.f32 %v3911, %v4103
    %v4134 = vrot.slane %v4116, 5
    %v4135 = vrot.slane %v4119, 5
    %v4136 = vsel %vm2252, %v4134, %v4135
    %v4137 = vrot.slane %v4117, 5
    %v4138 = vrot.slane %v4120, 5
    %v4139 = vsel %vm2252, %v4137, %v4138
    %v4140 = vrot.slane %v4118, 5
    %v4141 = vrot.slane %v4121, 5
    %v4142 = vsel %vm2252, %v4140, %v4141
    %v4143 = vrot.slane %v4122, 5
    %v4144 = vsel %vm2252, %v4135, %v4143
    %v4145 = vrot.slane %v4123, 5
    %v4146 = vsel %vm2252, %v4138, %v4145
    %v4147 = vrot.slane %v4124, 5
    %v4148 = vsel %vm2252, %v4141, %v4147
    %4149 = vrot.lane.b32.xlu0 %v4136, 1
    %v4150 = vpop.permute.xlu0 %4149
    %4151 = vrot.lane.b32.xlu0 %v4139, 1
    %v4152 = vpop.permute.xlu0 %4151
    %4153 = vrot.lane.b32.xlu0 %v4142, 1
    %v4154 = vpop.permute.xlu0 %4153
    %4155 = vrot.lane.b32.xlu0 %v4144, 1
    %v4156 = vpop.permute.xlu0 %4155
    %4157 = vrot.lane.b32.xlu0 %v4146, 1
    %v4158 = vpop.permute.xlu0 %4157
    %4159 = vrot.lane.b32.xlu0 %v4148, 1
    %v4160 = vpop.permute.xlu0 %4159
    %v4161 = vsel %vm79, %v4150, %v4152
    %v4162 = vsel %vm79, %v4152, %v4154
    %v4163 = vsel %vm79, %v4156, %v4158
    %v4164 = vsel %vm79, %v4158, %v4160
    %v4171 = vadd.f32 %v3804, %v4150
    %v4172 = vadd.f32 %v3805, %v4161
    %v4173 = vadd.f32 %v3806, %v4162
    %v4174 = vadd.f32 %v3807, %v4156
    %v4175 = vadd.f32 %v3808, %v4163
    %v4176 = vadd.f32 %v3809, %v4164
    %s4177 = scalar_lea.vmem [#allocation5], 1536
    %v4178 = vld [vmem:[%s4177] sm:$0xff]
    %v4179 = vld [vmem:[%s4177 + $0x8] sm:$0xff]
    %v4180 = vld [vmem:[%s4177 + $0x10] sm:$0xff]
    %v4181 = vld [vmem:[%s4177 + $0x18] sm:$0xff]
    %v4186 = vrot.slane %v4178, 3
    %v4187 = vrot.slane %v4179, 3
    %v4188 = vrot.slane %v4180, 3
    %v4189 = vsel %vm2277, %v4186, %v4188
    %v4190 = vrot.slane %v4181, 3
    %v4191 = vsel %vm2277, %v4187, %v4190
    %4192 = vrot.lane.b32.xlu0 %v4186, 3
    %v4193 = vpop.permute.xlu0 %4192
    %4194 = vrot.lane.b32.xlu0 %v4187, 3
    %v4195 = vpop.permute.xlu0 %4194
    %4196 = vrot.lane.b32.xlu0 %v4189, 3
    %v4197 = vpop.permute.xlu0 %4196
    %4198 = vrot.lane.b32.xlu0 %v4191, 3
    %v4199 = vpop.permute.xlu0 %4198
    %4200 = vrot.lane.b32.xlu0 %v4188, 3
    %v4201 = vpop.permute.xlu0 %4200
    %4202 = vrot.lane.b32.xlu0 %v4190, 3
    %v4203 = vpop.permute.xlu0 %4202
    %v4204 = vsel %vm155, %v4193, %v4195
    %v4205 = vsel %vm155, %v4197, %v4199
    %v4206 = vsel %vm155, %v4201, %v4203
    %v4216 = vmul.f32 %v3906, %v4193
    %v4217 = vmul.f32 %v3907, %v4204
    %v4218 = vmul.f32 %v3908, %v4195
    %v4219 = vmul.f32 %v503, %v4197
    %v4220 = vmul.f32 %v504, %v4205
    %v4221 = vmul.f32 %v505, %v4199
    %v4222 = vmul.f32 %v3909, %v4201
    %v4223 = vmul.f32 %v3910, %v4206
    %v4224 = vmul.f32 %v3911, %v4203
    %v4234 = vrot.slane %v4216, 5
    %v4235 = vrot.slane %v4219, 5
    %v4236 = vsel %vm2252, %v4234, %v4235
    %v4237 = vrot.slane %v4217, 5
    %v4238 = vrot.slane %v4220, 5
    %v4239 = vsel %vm2252, %v4237, %v4238
    %v4240 = vrot.slane %v4218, 5
    %v4241 = vrot.slane %v4221, 5
    %v4242 = vsel %vm2252, %v4240, %v4241
    %v4243 = vrot.slane %v4222, 5
    %v4244 = vsel %vm2252, %v4235, %v4243
    %v4245 = vrot.slane %v4223, 5
    %v4246 = vsel %vm2252, %v4238, %v4245
    %v4247 = vrot.slane %v4224, 5
    %v4248 = vsel %vm2252, %v4241, %v4247
    %4249 = vrot.lane.b32.xlu0 %v4236, 125
    %v4250 = vpop.permute.xlu0 %4249
    %4251 = vrot.lane.b32.xlu0 %v4239, 125
    %v4252 = vpop.permute.xlu0 %4251
    %4253 = vrot.lane.b32.xlu0 %v4242, 125
    %v4254 = vpop.permute.xlu0 %4253
    %4255 = vrot.lane.b32.xlu0 %v4244, 125
    %v4256 = vpop.permute.xlu0 %4255
    %4257 = vrot.lane.b32.xlu0 %v4246, 125
    %v4258 = vpop.permute.xlu0 %4257
    %4259 = vrot.lane.b32.xlu0 %v4248, 125
    %v4260 = vpop.permute.xlu0 %4259
    %v4261 = vsel %vm860, %v4250, %v4252
    %v4262 = vsel %vm860, %v4252, %v4254
    %v4263 = vsel %vm860, %v4256, %v4258
    %v4264 = vsel %vm860, %v4258, %v4260
    %v4269 = vadd.f32 %v3902, %v4261
    %v4270 = vadd.f32 %v3903, %v4262
    %v4271 = vadd.f32 %v3904, %v4263
    %v4272 = vadd.f32 %v3905, %v4264
    %s4273 = scalar_lea.vmem [#allocation5], 1568
    %v4274 = vld [vmem:[%s4273] sm:$0xff]
    %v4275 = vld [vmem:[%s4273 + $0x8] sm:$0xff]
    %v4276 = vld [vmem:[%s4273 + $0x10] sm:$0xff]
    %v4277 = vld [vmem:[%s4273 + $0x18] sm:$0xff]
    %v4282 = vrot.slane %v4274, 3
    %v4283 = vrot.slane %v4275, 3
    %v4284 = vrot.slane %v4276, 3
    %v4285 = vsel %vm2277, %v4282, %v4284
    %v4286 = vrot.slane %v4277, 3
    %v4287 = vsel %vm2277, %v4283, %v4286
    %4288 = vrot.lane.b32.xlu0 %v4282, 4
    %v4289 = vpop.permute.xlu0 %4288
    %4290 = vrot.lane.b32.xlu0 %v4283, 4
    %v4291 = vpop.permute.xlu0 %4290
    %4292 = vrot.lane.b32.xlu0 %v4285, 4
    %v4293 = vpop.permute.xlu0 %4292
    %4294 = vrot.lane.b32.xlu0 %v4287, 4
    %v4295 = vpop.permute.xlu0 %4294
    %4296 = vrot.lane.b32.xlu0 %v4284, 4
    %v4297 = vpop.permute.xlu0 %4296
    %4298 = vrot.lane.b32.xlu0 %v4286, 4
    %v4299 = vpop.permute.xlu0 %4298
    %v4300 = vsel %vm193, %v4289, %v4291
    %v4301 = vsel %vm193, %v4293, %v4295
    %v4302 = vsel %vm193, %v4297, %v4299
    %v4312 = vmul.f32 %v3906, %v4289
    %v4313 = vmul.f32 %v3907, %v4300
    %v4314 = vmul.f32 %v3908, %v4291
    %v4315 = vmul.f32 %v503, %v4293
    %v4316 = vmul.f32 %v504, %v4301
    %v4317 = vmul.f32 %v505, %v4295
    %v4318 = vmul.f32 %v3909, %v4297
    %v4319 = vmul.f32 %v3910, %v4302
    %v4320 = vmul.f32 %v3911, %v4299
    %v4330 = vrot.slane %v4312, 5
    %v4331 = vrot.slane %v4315, 5
    %v4332 = vsel %vm2252, %v4330, %v4331
    %v4333 = vrot.slane %v4313, 5
    %v4334 = vrot.slane %v4316, 5
    %v4335 = vsel %vm2252, %v4333, %v4334
    %v4336 = vrot.slane %v4314, 5
    %v4337 = vrot.slane %v4317, 5
    %v4338 = vsel %vm2252, %v4336, %v4337
    %v4339 = vrot.slane %v4318, 5
    %v4340 = vsel %vm2252, %v4331, %v4339
    %v4341 = vrot.slane %v4319, 5
    %v4342 = vsel %vm2252, %v4334, %v4341
    %v4343 = vrot.slane %v4320, 5
    %v4344 = vsel %vm2252, %v4337, %v4343
    %4345 = vrot.lane.b32.xlu0 %v4332, 125
    %v4346 = vpop.permute.xlu0 %4345
    %4347 = vrot.lane.b32.xlu0 %v4335, 125
    %v4348 = vpop.permute.xlu0 %4347
    %4349 = vrot.lane.b32.xlu0 %v4338, 125
    %v4350 = vpop.permute.xlu0 %4349
    %4351 = vrot.lane.b32.xlu0 %v4340, 125
    %v4352 = vpop.permute.xlu0 %4351
    %4353 = vrot.lane.b32.xlu0 %v4342, 125
    %v4354 = vpop.permute.xlu0 %4353
    %4355 = vrot.lane.b32.xlu0 %v4344, 125
    %v4356 = vpop.permute.xlu0 %4355
    %v4357 = vsel %vm860, %v4346, %v4348
    %v4358 = vsel %vm860, %v4348, %v4350
    %v4359 = vsel %vm860, %v4352, %v4354
    %v4360 = vsel %vm860, %v4354, %v4356
    %v4367 = vadd.f32 %v3971, %v4357
    %v4368 = vadd.f32 %v3972, %v4358
    %v4369 = vadd.f32 %v3973, %v4350
    %v4370 = vadd.f32 %v3974, %v4359
    %v4371 = vadd.f32 %v3975, %v4360
    %v4372 = vadd.f32 %v3976, %v4356
    %s4373 = scalar_lea.vmem [#allocation5], 1600
    %v4374 = vld [vmem:[%s4373] sm:$0xff]
    %v4375 = vld [vmem:[%s4373 + $0x8] sm:$0xff]
    %v4376 = vld [vmem:[%s4373 + $0x10] sm:$0xff]
    %v4377 = vld [vmem:[%s4373 + $0x18] sm:$0xff]
    %v4382 = vrot.slane %v4374, 3
    %v4383 = vrot.slane %v4375, 3
    %v4384 = vrot.slane %v4376, 3
    %v4385 = vsel %vm2277, %v4382, %v4384
    %v4386 = vrot.slane %v4377, 3
    %v4387 = vsel %vm2277, %v4383, %v4386
    %4388 = vrot.lane.b32.xlu0 %v4382, 5
    %v4389 = vpop.permute.xlu0 %4388
    %4390 = vrot.lane.b32.xlu0 %v4383, 5
    %v4391 = vpop.permute.xlu0 %4390
    %4392 = vrot.lane.b32.xlu0 %v4385, 5
    %v4393 = vpop.permute.xlu0 %4392
    %4394 = vrot.lane.b32.xlu0 %v4387, 5
    %v4395 = vpop.permute.xlu0 %4394
    %4396 = vrot.lane.b32.xlu0 %v4384, 5
    %v4397 = vpop.permute.xlu0 %4396
    %4398 = vrot.lane.b32.xlu0 %v4386, 5
    %v4399 = vpop.permute.xlu0 %4398
    %v4400 = vsel %vm256, %v4389, %v4391
    %v4401 = vsel %vm256, %v4393, %v4395
    %v4402 = vsel %vm256, %v4397, %v4399
    %v4412 = vmul.f32 %v3906, %v4389
    %v4413 = vmul.f32 %v3907, %v4400
    %v4414 = vmul.f32 %v3908, %v4391
    %v4415 = vmul.f32 %v503, %v4393
    %v4416 = vmul.f32 %v504, %v4401
    %v4417 = vmul.f32 %v505, %v4395
    %v4418 = vmul.f32 %v3909, %v4397
    %v4419 = vmul.f32 %v3910, %v4402
    %v4420 = vmul.f32 %v3911, %v4399
    %v4430 = vrot.slane %v4412, 5
    %v4431 = vrot.slane %v4415, 5
    %v4432 = vsel %vm2252, %v4430, %v4431
    %v4433 = vrot.slane %v4413, 5
    %v4434 = vrot.slane %v4416, 5
    %v4435 = vsel %vm2252, %v4433, %v4434
    %v4436 = vrot.slane %v4414, 5
    %v4437 = vrot.slane %v4417, 5
    %v4438 = vsel %vm2252, %v4436, %v4437
    %v4439 = vrot.slane %v4418, 5
    %v4440 = vsel %vm2252, %v4431, %v4439
    %v4441 = vrot.slane %v4419, 5
    %v4442 = vsel %vm2252, %v4434, %v4441
    %v4443 = vrot.slane %v4420, 5
    %v4444 = vsel %vm2252, %v4437, %v4443
    %4445 = vrot.lane.b32.xlu0 %v4432, 125
    %v4446 = vpop.permute.xlu0 %4445
    %4447 = vrot.lane.b32.xlu0 %v4435, 125
    %v4448 = vpop.permute.xlu0 %4447
    %4449 = vrot.lane.b32.xlu0 %v4438, 125
    %v4450 = vpop.permute.xlu0 %4449
    %4451 = vrot.lane.b32.xlu0 %v4440, 125
    %v4452 = vpop.permute.xlu0 %4451
    %4453 = vrot.lane.b32.xlu0 %v4442, 125
    %v4454 = vpop.permute.xlu0 %4453
    %4455 = vrot.lane.b32.xlu0 %v4444, 125
    %v4456 = vpop.permute.xlu0 %4455
    %v4457 = vsel %vm860, %v4446, %v4448
    %v4458 = vsel %vm860, %v4448, %v4450
    %v4459 = vsel %vm860, %v4452, %v4454
    %v4460 = vsel %vm860, %v4454, %v4456
    %v4467 = vadd.f32 %v4071, %v4457
    %v4468 = vadd.f32 %v4072, %v4458
    %v4469 = vadd.f32 %v4073, %v4450
    %v4470 = vadd.f32 %v4074, %v4459
    %v4471 = vadd.f32 %v4075, %v4460
    %v4472 = vadd.f32 %v4076, %v4456
    %s4473 = scalar_lea.vmem [#allocation5], 1632
    %v4474 = vld [vmem:[%s4473] sm:$0xff]
    %v4475 = vld [vmem:[%s4473 + $0x8] sm:$0xff]
    %v4476 = vld [vmem:[%s4473 + $0x10] sm:$0xff]
    %v4477 = vld [vmem:[%s4473 + $0x18] sm:$0xff]
    %v4482 = vrot.slane %v4474, 3
    %v4483 = vrot.slane %v4475, 3
    %v4484 = vrot.slane %v4476, 3
    %v4485 = vsel %vm2277, %v4482, %v4484
    %v4486 = vrot.slane %v4477, 3
    %v4487 = vsel %vm2277, %v4483, %v4486
    %4488 = vrot.lane.b32.xlu0 %v4482, 6
    %v4489 = vpop.permute.xlu0 %4488
    %4490 = vrot.lane.b32.xlu0 %v4483, 6
    %v4491 = vpop.permute.xlu0 %4490
    %4492 = vrot.lane.b32.xlu0 %v4485, 6
    %v4493 = vpop.permute.xlu0 %4492
    %4494 = vrot.lane.b32.xlu0 %v4487, 6
    %v4495 = vpop.permute.xlu0 %4494
    %4496 = vrot.lane.b32.xlu0 %v4484, 6
    %v4497 = vpop.permute.xlu0 %4496
    %4498 = vrot.lane.b32.xlu0 %v4486, 6
    %v4499 = vpop.permute.xlu0 %4498
    %v4500 = vsel %vm322, %v4489, %v4491
    %v4501 = vsel %vm322, %v4493, %v4495
    %v4502 = vsel %vm322, %v4497, %v4499
    %v4512 = vmul.f32 %v3906, %v4489
    %v4513 = vmul.f32 %v3907, %v4500
    %v4514 = vmul.f32 %v3908, %v4491
    %v4515 = vmul.f32 %v503, %v4493
    %v4516 = vmul.f32 %v504, %v4501
    %v4517 = vmul.f32 %v505, %v4495
    %v4518 = vmul.f32 %v3909, %v4497
    %v4519 = vmul.f32 %v3910, %v4502
    %v4520 = vmul.f32 %v3911, %v4499
    %v4530 = vrot.slane %v4512, 5
    %v4531 = vrot.slane %v4515, 5
    %v4532 = vsel %vm2252, %v4530, %v4531
    %v4533 = vrot.slane %v4513, 5
    %v4534 = vrot.slane %v4516, 5
    %v4535 = vsel %vm2252, %v4533, %v4534
    %v4536 = vrot.slane %v4514, 5
    %v4537 = vrot.slane %v4517, 5
    %v4538 = vsel %vm2252, %v4536, %v4537
    %v4539 = vrot.slane %v4518, 5
    %v4540 = vsel %vm2252, %v4531, %v4539
    %v4541 = vrot.slane %v4519, 5
    %v4542 = vsel %vm2252, %v4534, %v4541
    %v4543 = vrot.slane %v4520, 5
    %v4544 = vsel %vm2252, %v4537, %v4543
    %4545 = vrot.lane.b32.xlu0 %v4532, 125
    %v4546 = vpop.permute.xlu0 %4545
    %4547 = vrot.lane.b32.xlu0 %v4535, 125
    %v4548 = vpop.permute.xlu0 %4547
    %4549 = vrot.lane.b32.xlu0 %v4538, 125
    %v4550 = vpop.permute.xlu0 %4549
    %4551 = vrot.lane.b32.xlu0 %v4540, 125
    %v4552 = vpop.permute.xlu0 %4551
    %4553 = vrot.lane.b32.xlu0 %v4542, 125
    %v4554 = vpop.permute.xlu0 %4553
    %4555 = vrot.lane.b32.xlu0 %v4544, 125
    %v4556 = vpop.permute.xlu0 %4555
    %v4557 = vsel %vm860, %v4546, %v4548
    %v4558 = vsel %vm860, %v4548, %v4550
    %v4559 = vsel %vm860, %v4552, %v4554
    %v4560 = vsel %vm860, %v4554, %v4556
    %v4567 = vadd.f32 %v4171, %v4557
    %v4568 = vadd.f32 %v4172, %v4558
    %v4569 = vadd.f32 %v4173, %v4550
    %v4570 = vadd.f32 %v4174, %v4559
    %v4571 = vadd.f32 %v4175, %v4560
    %v4572 = vadd.f32 %v4176, %v4556
    %s4573 = scalar_lea.vmem [#allocation5], 1664
    %v4574 = vld [vmem:[%s4573] sm:$0xff]
    %v4575 = vld [vmem:[%s4573 + $0x8] sm:$0xff]
    %v4576 = vld [vmem:[%s4573 + $0x10] sm:$0xff]
    %v4577 = vld [vmem:[%s4573 + $0x18] sm:$0xff]
    %v4582 = vrot.slane %v4574, 3
    %v4583 = vrot.slane %v4575, 3
    %v4584 = vrot.slane %v4576, 3
    %v4585 = vsel %vm2277, %v4582, %v4584
    %v4586 = vrot.slane %v4577, 3
    %v4587 = vsel %vm2277, %v4583, %v4586
    %4588 = vrot.lane.b32.xlu0 %v4582, 7
    %v4589 = vpop.permute.xlu0 %4588
    %4590 = vrot.lane.b32.xlu0 %v4583, 7
    %v4591 = vpop.permute.xlu0 %4590
    %4592 = vrot.lane.b32.xlu0 %v4585, 7
    %v4593 = vpop.permute.xlu0 %4592
    %4594 = vrot.lane.b32.xlu0 %v4587, 7
    %v4595 = vpop.permute.xlu0 %4594
    %4596 = vrot.lane.b32.xlu0 %v4584, 7
    %v4597 = vpop.permute.xlu0 %4596
    %4598 = vrot.lane.b32.xlu0 %v4586, 7
    %v4599 = vpop.permute.xlu0 %4598
    %v4600 = vsel %vm388, %v4589, %v4591
    %v4601 = vsel %vm388, %v4593, %v4595
    %v4602 = vsel %vm388, %v4597, %v4599
    %v4612 = vmul.f32 %v3906, %v4589
    %v4613 = vmul.f32 %v3907, %v4600
    %v4614 = vmul.f32 %v3908, %v4591
    %v4615 = vmul.f32 %v503, %v4593
    %v4616 = vmul.f32 %v504, %v4601
    %v4617 = vmul.f32 %v505, %v4595
    %v4618 = vmul.f32 %v3909, %v4597
    %v4619 = vmul.f32 %v3910, %v4602
    %v4620 = vmul.f32 %v3911, %v4599
    %v4630 = vrot.slane %v4612, 5
    %v4631 = vrot.slane %v4615, 5
    %v4632 = vsel %vm2252, %v4630, %v4631
    %v4633 = vrot.slane %v4613, 5
    %v4634 = vrot.slane %v4616, 5
    %v4635 = vsel %vm2252, %v4633, %v4634
    %v4636 = vrot.slane %v4614, 5
    %v4637 = vrot.slane %v4617, 5
    %v4638 = vsel %vm2252, %v4636, %v4637
    %v4639 = vrot.slane %v4618, 5
    %v4640 = vsel %vm2252, %v4631, %v4639
    %v4641 = vrot.slane %v4619, 5
    %v4642 = vsel %vm2252, %v4634, %v4641
    %v4643 = vrot.slane %v4620, 5
    %v4644 = vsel %vm2252, %v4637, %v4643
    %4645 = vrot.lane.b32.xlu0 %v4632, 121
    %v4646 = vpop.permute.xlu0 %4645
    %4647 = vrot.lane.b32.xlu0 %v4635, 121
    %v4648 = vpop.permute.xlu0 %4647
    %4649 = vrot.lane.b32.xlu0 %v4638, 121
    %v4650 = vpop.permute.xlu0 %4649
    %4651 = vrot.lane.b32.xlu0 %v4640, 121
    %v4652 = vpop.permute.xlu0 %4651
    %4653 = vrot.lane.b32.xlu0 %v4642, 121
    %v4654 = vpop.permute.xlu0 %4653
    %4655 = vrot.lane.b32.xlu0 %v4644, 121
    %v4656 = vpop.permute.xlu0 %4655
    %v4657 = vsel %vm1257, %v4646, %v4648
    %v4658 = vsel %vm1257, %v4648, %v4650
    %v4659 = vsel %vm1257, %v4652, %v4654
    %v4660 = vsel %vm1257, %v4654, %v4656
    %v4665 = vadd.f32 %v4269, %v4657
    %v4666 = vadd.f32 %v4270, %v4658
    %v4667 = vadd.f32 %v4271, %v4659
    %v4668 = vadd.f32 %v4272, %v4660
    %s4669 = scalar_lea.vmem [#allocation5], 1696
    %v4670 = vld [vmem:[%s4669] sm:$0xff]
    %v4671 = vld [vmem:[%s4669 + $0x8] sm:$0xff]
    %v4672 = vld [vmem:[%s4669 + $0x10] sm:$0xff]
    %v4673 = vld [vmem:[%s4669 + $0x18] sm:$0xff]
    %v4678 = vrot.slane %v4670, 3
    %v4679 = vrot.slane %v4671, 3
    %v4680 = vrot.slane %v4672, 3
    %v4681 = vsel %vm2277, %v4678, %v4680
    %v4682 = vrot.slane %v4673, 3
    %v4683 = vsel %vm2277, %v4679, %v4682
    %4684 = vrot.lane.b32.xlu0 %v4678, 8
    %v4685 = vpop.permute.xlu0 %4684
    %4686 = vrot.lane.b32.xlu0 %v4679, 8
    %v4687 = vpop.permute.xlu0 %4686
    %4688 = vrot.lane.b32.xlu0 %v4681, 8
    %v4689 = vpop.permute.xlu0 %4688
    %4690 = vrot.lane.b32.xlu0 %v4683, 8
    %v4691 = vpop.permute.xlu0 %4690
    %4692 = vrot.lane.b32.xlu0 %v4680, 8
    %v4693 = vpop.permute.xlu0 %4692
    %4694 = vrot.lane.b32.xlu0 %v4682, 8
    %v4695 = vpop.permute.xlu0 %4694
    %v4696 = vsel %vm454, %v4685, %v4687
    %v4697 = vsel %vm454, %v4689, %v4691
    %v4698 = vsel %vm454, %v4693, %v4695
    %v4708 = vmul.f32 %v3906, %v4685
    %v4709 = vmul.f32 %v3907, %v4696
    %v4710 = vmul.f32 %v3908, %v4687
    %v4711 = vmul.f32 %v503, %v4689
    %v4712 = vmul.f32 %v504, %v4697
    %v4713 = vmul.f32 %v505, %v4691
    %v4714 = vmul.f32 %v3909, %v4693
    %v4715 = vmul.f32 %v3910, %v4698
    %v4716 = vmul.f32 %v3911, %v4695
    %v4726 = vrot.slane %v4708, 5
    %v4727 = vrot.slane %v4711, 5
    %v4728 = vsel %vm2252, %v4726, %v4727
    %v4729 = vrot.slane %v4709, 5
    %v4730 = vrot.slane %v4712, 5
    %v4731 = vsel %vm2252, %v4729, %v4730
    %v4732 = vrot.slane %v4710, 5
    %v4733 = vrot.slane %v4713, 5
    %v4734 = vsel %vm2252, %v4732, %v4733
    %v4735 = vrot.slane %v4714, 5
    %v4736 = vsel %vm2252, %v4727, %v4735
    %v4737 = vrot.slane %v4715, 5
    %v4738 = vsel %vm2252, %v4730, %v4737
    %v4739 = vrot.slane %v4716, 5
    %v4740 = vsel %vm2252, %v4733, %v4739
    %4741 = vrot.lane.b32.xlu0 %v4728, 121
    %v4742 = vpop.permute.xlu0 %4741
    %4743 = vrot.lane.b32.xlu0 %v4731, 121
    %v4744 = vpop.permute.xlu0 %4743
    %4745 = vrot.lane.b32.xlu0 %v4734, 121
    %v4746 = vpop.permute.xlu0 %4745
    %4747 = vrot.lane.b32.xlu0 %v4736, 121
    %v4748 = vpop.permute.xlu0 %4747
    %4749 = vrot.lane.b32.xlu0 %v4738, 121
    %v4750 = vpop.permute.xlu0 %4749
    %4751 = vrot.lane.b32.xlu0 %v4740, 121
    %v4752 = vpop.permute.xlu0 %4751
    %v4753 = vsel %vm1257, %v4742, %v4744
    %v4754 = vsel %vm1257, %v4744, %v4746
    %v4755 = vsel %vm1257, %v4748, %v4750
    %v4756 = vsel %vm1257, %v4750, %v4752
    %v4763 = vadd.f32 %v4367, %v4753
    %v4764 = vadd.f32 %v4368, %v4754
    %v4765 = vadd.f32 %v4369, %v4746
    %v4766 = vadd.f32 %v4370, %v4755
    %v4767 = vadd.f32 %v4371, %v4756
    %v4768 = vadd.f32 %v4372, %v4752
    %v4769 = vld [vmem:[#allocation2] sm:$0xc0]
    %v4770 = vld [vmem:[#allocation2 + $0x8] sm:$0xc0]
    %v4771 = vld [vmem:[#allocation2 + $0x10] sm:$0xc0]
    %v4772 = vld [vmem:[#allocation2 + $0x30] sm:$0x3f]
    %v4773 = vld [vmem:[#allocation2 + $0x38] sm:$0x3f]
    %v4774 = vld [vmem:[#allocation2 + $0x40] sm:$0x3f]
    %s4775 = scalar_lea.vmem [#allocation5], 1728
    %v4776 = vld [vmem:[%s4775] sm:$0xff]
    %v4777 = vld [vmem:[%s4775 + $0x8] sm:$0xff]
    %v4778 = vld [vmem:[%s4775 + $0x10] sm:$0xff]
    %v4779 = vld [vmem:[%s4775 + $0x18] sm:$0xff]
    %v4784 = vrot.slane %v4776, 2
    %v4785 = vrot.slane %v4777, 2
    %v4786 = vrot.slane %v4778, 2
    %v4787 = vsel %vm1410, %v4784, %v4786
    %v4788 = vrot.slane %v4779, 2
    %v4789 = vsel %vm1410, %v4785, %v4788
    %v4796 = vmul.f32 %v4769, %v4784
    %v4797 = vmul.f32 %v4770, %v4785
    %v4798 = vmul.f32 %v503, %v4787
    %v4799 = vmul.f32 %v504, %v4789
    %v4800 = vmul.f32 %v4772, %v4786
    %v4801 = vmul.f32 %v4773, %v4788
    %v4808 = vrot.slane %v4796, 6
    %v4809 = vrot.slane %v4798, 6
    %v4810 = vsel %vm1385, %v4808, %v4809
    %v4811 = vrot.slane %v4797, 6
    %v4812 = vrot.slane %v4799, 6
    %v4813 = vsel %vm1385, %v4811, %v4812
    %v4814 = vrot.slane %v4800, 6
    %v4815 = vsel %vm1385, %v4809, %v4814
    %v4816 = vrot.slane %v4801, 6
    %v4817 = vsel %vm1385, %v4812, %v4816
    %4818 = vrot.lane.b32.xlu0 %v4810, 2
    %v4819 = vpop.permute.xlu0 %4818
    %4820 = vrot.lane.b32.xlu0 %v4813, 2
    %v4821 = vpop.permute.xlu0 %4820
    %4822 = vrot.lane.b32.xlu0 %v4815, 2
    %v4823 = vpop.permute.xlu0 %4822
    %4824 = vrot.lane.b32.xlu0 %v4817, 2
    %v4825 = vpop.permute.xlu0 %4824
    %v4826 = vsel %vm117, %v4819, %v4821
    %v4827 = vsel %vm117, %v4823, %v4825
    %v4834 = vadd.f32 %v4467, %v4819
    %v4835 = vadd.f32 %v4468, %v4826
    %v4836 = vadd.f32 %v4469, %v4821
    %v4837 = vadd.f32 %v4470, %v4823
    %v4838 = vadd.f32 %v4471, %v4827
    %v4839 = vadd.f32 %v4472, %v4825
    %s4840 = scalar_lea.vmem [#allocation5], 1760
    %v4841 = vld [vmem:[%s4840] sm:$0xff]
    %v4842 = vld [vmem:[%s4840 + $0x8] sm:$0xff]
    %v4843 = vld [vmem:[%s4840 + $0x10] sm:$0xff]
    %v4844 = vld [vmem:[%s4840 + $0x18] sm:$0xff]
    %v4849 = vrot.slane %v4841, 2
    %v4850 = vrot.slane %v4842, 2
    %v4851 = vrot.slane %v4843, 2
    %v4852 = vsel %vm1410, %v4849, %v4851
    %v4853 = vrot.slane %v4844, 2
    %v4854 = vsel %vm1410, %v4850, %v4853
    %4855 = vrot.lane.b32.xlu0 %v4849, 1
    %v4856 = vpop.permute.xlu0 %4855
    %4857 = vrot.lane.b32.xlu0 %v4850, 1
    %v4858 = vpop.permute.xlu0 %4857
    %4859 = vrot.lane.b32.xlu0 %v4852, 1
    %v4860 = vpop.permute.xlu0 %4859
    %4861 = vrot.lane.b32.xlu0 %v4854, 1
    %v4862 = vpop.permute.xlu0 %4861
    %4863 = vrot.lane.b32.xlu0 %v4851, 1
    %v4864 = vpop.permute.xlu0 %4863
    %4865 = vrot.lane.b32.xlu0 %v4853, 1
    %v4866 = vpop.permute.xlu0 %4865
    %v4867 = vsel %vm79, %v4856, %v4858
    %v4868 = vsel %vm79, %v4860, %v4862
    %v4869 = vsel %vm79, %v4864, %v4866
    %v4879 = vmul.f32 %v4769, %v4856
    %v4880 = vmul.f32 %v4770, %v4867
    %v4881 = vmul.f32 %v4771, %v4858
    %v4882 = vmul.f32 %v503, %v4860
    %v4883 = vmul.f32 %v504, %v4868
    %v4884 = vmul.f32 %v505, %v4862
    %v4885 = vmul.f32 %v4772, %v4864
    %v4886 = vmul.f32 %v4773, %v4869
    %v4887 = vmul.f32 %v4774, %v4866
    %v4897 = vrot.slane %v4879, 6
    %v4898 = vrot.slane %v4882, 6
    %v4899 = vsel %vm1385, %v4897, %v4898
    %v4900 = vrot.slane %v4880, 6
    %v4901 = vrot.slane %v4883, 6
    %v4902 = vsel %vm1385, %v4900, %v4901
    %v4903 = vrot.slane %v4881, 6
    %v4904 = vrot.slane %v4884, 6
    %v4905 = vsel %vm1385, %v4903, %v4904
    %v4906 = vrot.slane %v4885, 6
    %v4907 = vsel %vm1385, %v4898, %v4906
    %v4908 = vrot.slane %v4886, 6
    %v4909 = vsel %vm1385, %v4901, %v4908
    %v4910 = vrot.slane %v4887, 6
    %v4911 = vsel %vm1385, %v4904, %v4910
    %4912 = vrot.lane.b32.xlu0 %v4899, 2
    %v4913 = vpop.permute.xlu0 %4912
    %4914 = vrot.lane.b32.xlu0 %v4902, 2
    %v4915 = vpop.permute.xlu0 %4914
    %4916 = vrot.lane.b32.xlu0 %v4905, 2
    %v4917 = vpop.permute.xlu0 %4916
    %4918 = vrot.lane.b32.xlu0 %v4907, 2
    %v4919 = vpop.permute.xlu0 %4918
    %4920 = vrot.lane.b32.xlu0 %v4909, 2
    %v4921 = vpop.permute.xlu0 %4920
    %4922 = vrot.lane.b32.xlu0 %v4911, 2
    %v4923 = vpop.permute.xlu0 %4922
    %v4924 = vsel %vm117, %v4913, %v4915
    %v4925 = vsel %vm117, %v4915, %v4917
    %v4926 = vsel %vm117, %v4919, %v4921
    %v4927 = vsel %vm117, %v4921, %v4923
    %v4934 = vadd.f32 %v4567, %v4913
    %v4935 = vadd.f32 %v4568, %v4924
    %v4936 = vadd.f32 %v4569, %v4925
    %v4937 = vadd.f32 %v4570, %v4919
    %v4938 = vadd.f32 %v4571, %v4926
    %v4939 = vadd.f32 %v4572, %v4927
    %s4940 = scalar_lea.vmem [#allocation5], 1792
    %v4941 = vld [vmem:[%s4940] sm:$0xff]
    %v4942 = vld [vmem:[%s4940 + $0x8] sm:$0xff]
    %v4943 = vld [vmem:[%s4940 + $0x10] sm:$0xff]
    %v4944 = vld [vmem:[%s4940 + $0x18] sm:$0xff]
    %v4949 = vrot.slane %v4941, 2
    %v4950 = vrot.slane %v4942, 2
    %v4951 = vrot.slane %v4943, 2
    %v4952 = vsel %vm1410, %v4949, %v4951
    %v4953 = vrot.slane %v4944, 2
    %v4954 = vsel %vm1410, %v4950, %v4953
    %4955 = vrot.lane.b32.xlu0 %v4949, 2
    %v4956 = vpop.permute.xlu0 %4955
    %4957 = vrot.lane.b32.xlu0 %v4950, 2
    %v4958 = vpop.permute.xlu0 %4957
    %4959 = vrot.lane.b32.xlu0 %v4952, 2
    %v4960 = vpop.permute.xlu0 %4959
    %4961 = vrot.lane.b32.xlu0 %v4954, 2
    %v4962 = vpop.permute.xlu0 %4961
    %4963 = vrot.lane.b32.xlu0 %v4951, 2
    %v4964 = vpop.permute.xlu0 %4963
    %4965 = vrot.lane.b32.xlu0 %v4953, 2
    %v4966 = vpop.permute.xlu0 %4965
    %v4967 = vsel %vm117, %v4956, %v4958
    %v4968 = vsel %vm117, %v4960, %v4962
    %v4969 = vsel %vm117, %v4964, %v4966
    %v4979 = vmul.f32 %v4769, %v4956
    %v4980 = vmul.f32 %v4770, %v4967
    %v4981 = vmul.f32 %v4771, %v4958
    %v4982 = vmul.f32 %v503, %v4960
    %v4983 = vmul.f32 %v504, %v4968
    %v4984 = vmul.f32 %v505, %v4962
    %v4985 = vmul.f32 %v4772, %v4964
    %v4986 = vmul.f32 %v4773, %v4969
    %v4987 = vmul.f32 %v4774, %v4966
    %v4997 = vrot.slane %v4979, 6
    %v4998 = vrot.slane %v4982, 6
    %v4999 = vsel %vm1385, %v4997, %v4998
    %v5000 = vrot.slane %v4980, 6
    %v5001 = vrot.slane %v4983, 6
    %v5002 = vsel %vm1385, %v5000, %v5001
    %v5003 = vrot.slane %v4981, 6
    %v5004 = vrot.slane %v4984, 6
    %v5005 = vsel %vm1385, %v5003, %v5004
    %v5006 = vrot.slane %v4985, 6
    %v5007 = vsel %vm1385, %v4998, %v5006
    %v5008 = vrot.slane %v4986, 6
    %v5009 = vsel %vm1385, %v5001, %v5008
    %v5010 = vrot.slane %v4987, 6
    %v5011 = vsel %vm1385, %v5004, %v5010
    %5012 = vrot.lane.b32.xlu0 %v4999, 126
    %v5013 = vpop.permute.xlu0 %5012
    %5014 = vrot.lane.b32.xlu0 %v5002, 126
    %v5015 = vpop.permute.xlu0 %5014
    %5016 = vrot.lane.b32.xlu0 %v5005, 126
    %v5017 = vpop.permute.xlu0 %5016
    %5018 = vrot.lane.b32.xlu0 %v5007, 126
    %v5019 = vpop.permute.xlu0 %5018
    %5020 = vrot.lane.b32.xlu0 %v5009, 126
    %v5021 = vpop.permute.xlu0 %5020
    %5022 = vrot.lane.b32.xlu0 %v5011, 126
    %v5023 = vpop.permute.xlu0 %5022
    %v5024 = vsel %vm1627, %v5013, %v5015
    %v5025 = vsel %vm1627, %v5015, %v5017
    %v5026 = vsel %vm1627, %v5019, %v5021
    %v5027 = vsel %vm1627, %v5021, %v5023
    %v5032 = vadd.f32 %v4665, %v5024
    %v5033 = vadd.f32 %v4666, %v5025
    %v5034 = vadd.f32 %v4667, %v5026
    %v5035 = vadd.f32 %v4668, %v5027
    %s5036 = scalar_lea.vmem [#allocation5], 1824
    %v5037 = vld [vmem:[%s5036] sm:$0xff]
    %v5038 = vld [vmem:[%s5036 + $0x8] sm:$0xff]
    %v5039 = vld [vmem:[%s5036 + $0x10] sm:$0xff]
    %v5040 = vld [vmem:[%s5036 + $0x18] sm:$0xff]
    %v5045 = vrot.slane %v5037, 2
    %v5046 = vrot.slane %v5038, 2
    %v5047 = vrot.slane %v5039, 2
    %v5048 = vsel %vm1410, %v5045, %v5047
    %v5049 = vrot.slane %v5040, 2
    %v5050 = vsel %vm1410, %v5046, %v5049
    %5051 = vrot.lane.b32.xlu0 %v5045, 3
    %v5052 = vpop.permute.xlu0 %5051
    %5053 = vrot.lane.b32.xlu0 %v5046, 3
    %v5054 = vpop.permute.xlu0 %5053
    %5055 = vrot.lane.b32.xlu0 %v5048, 3
    %v5056 = vpop.permute.xlu0 %5055
    %5057 = vrot.lane.b32.xlu0 %v5050, 3
    %v5058 = vpop.permute.xlu0 %5057
    %5059 = vrot.lane.b32.xlu0 %v5047, 3
    %v5060 = vpop.permute.xlu0 %5059
    %5061 = vrot.lane.b32.xlu0 %v5049, 3
    %v5062 = vpop.permute.xlu0 %5061
    %v5063 = vsel %vm155, %v5052, %v5054
    %v5064 = vsel %vm155, %v5056, %v5058
    %v5065 = vsel %vm155, %v5060, %v5062
    %v5075 = vmul.f32 %v4769, %v5052
    %v5076 = vmul.f32 %v4770, %v5063
    %v5077 = vmul.f32 %v4771, %v5054
    %v5078 = vmul.f32 %v503, %v5056
    %v5079 = vmul.f32 %v504, %v5064
    %v5080 = vmul.f32 %v505, %v5058
    %v5081 = vmul.f32 %v4772, %v5060
    %v5082 = vmul.f32 %v4773, %v5065
    %v5083 = vmul.f32 %v4774, %v5062
    %v5093 = vrot.slane %v5075, 6
    %v5094 = vrot.slane %v5078, 6
    %v5095 = vsel %vm1385, %v5093, %v5094
    %v5096 = vrot.slane %v5076, 6
    %v5097 = vrot.slane %v5079, 6
    %v5098 = vsel %vm1385, %v5096, %v5097
    %v5099 = vrot.slane %v5077, 6
    %v5100 = vrot.slane %v5080, 6
    %v5101 = vsel %vm1385, %v5099, %v5100
    %v5102 = vrot.slane %v5081, 6
    %v5103 = vsel %vm1385, %v5094, %v5102
    %v5104 = vrot.slane %v5082, 6
    %v5105 = vsel %vm1385, %v5097, %v5104
    %v5106 = vrot.slane %v5083, 6
    %v5107 = vsel %vm1385, %v5100, %v5106
    %5108 = vrot.lane.b32.xlu0 %v5095, 126
    %v5109 = vpop.permute.xlu0 %5108
    %5110 = vrot.lane.b32.xlu0 %v5098, 126
    %v5111 = vpop.permute.xlu0 %5110
    %5112 = vrot.lane.b32.xlu0 %v5101, 126
    %v5113 = vpop.permute.xlu0 %5112
    %5114 = vrot.lane.b32.xlu0 %v5103, 126
    %v5115 = vpop.permute.xlu0 %5114
    %5116 = vrot.lane.b32.xlu0 %v5105, 126
    %v5117 = vpop.permute.xlu0 %5116
    %5118 = vrot.lane.b32.xlu0 %v5107, 126
    %v5119 = vpop.permute.xlu0 %5118
    %v5120 = vsel %vm1627, %v5109, %v5111
    %v5121 = vsel %vm1627, %v5111, %v5113
    %v5122 = vsel %vm1627, %v5115, %v5117
    %v5123 = vsel %vm1627, %v5117, %v5119
    %v5130 = vadd.f32 %v4763, %v5120
    %v5131 = vadd.f32 %v4764, %v5121
    %v5132 = vadd.f32 %v4765, %v5113
    %v5133 = vadd.f32 %v4766, %v5122
    %v5134 = vadd.f32 %v4767, %v5123
    %v5135 = vadd.f32 %v4768, %v5119
    %s5136 = scalar_lea.vmem [#allocation5], 1856
    %v5137 = vld [vmem:[%s5136] sm:$0xff]
    %v5138 = vld [vmem:[%s5136 + $0x8] sm:$0xff]
    %v5139 = vld [vmem:[%s5136 + $0x10] sm:$0xff]
    %v5140 = vld [vmem:[%s5136 + $0x18] sm:$0xff]
    %v5145 = vrot.slane %v5137, 2
    %v5146 = vrot.slane %v5138, 2
    %v5147 = vrot.slane %v5139, 2
    %v5148 = vsel %vm1410, %v5145, %v5147
    %v5149 = vrot.slane %v5140, 2
    %v5150 = vsel %vm1410, %v5146, %v5149
    %5151 = vrot.lane.b32.xlu0 %v5145, 4
    %v5152 = vpop.permute.xlu0 %5151
    %5153 = vrot.lane.b32.xlu0 %v5146, 4
    %v5154 = vpop.permute.xlu0 %5153
    %5155 = vrot.lane.b32.xlu0 %v5148, 4
    %v5156 = vpop.permute.xlu0 %5155
    %5157 = vrot.lane.b32.xlu0 %v5150, 4
    %v5158 = vpop.permute.xlu0 %5157
    %5159 = vrot.lane.b32.xlu0 %v5147, 4
    %v5160 = vpop.permute.xlu0 %5159
    %5161 = vrot.lane.b32.xlu0 %v5149, 4
    %v5162 = vpop.permute.xlu0 %5161
    %v5163 = vsel %vm193, %v5152, %v5154
    %v5164 = vsel %vm193, %v5156, %v5158
    %v5165 = vsel %vm193, %v5160, %v5162
    %v5175 = vmul.f32 %v4769, %v5152
    %v5176 = vmul.f32 %v4770, %v5163
    %v5177 = vmul.f32 %v4771, %v5154
    %v5178 = vmul.f32 %v503, %v5156
    %v5179 = vmul.f32 %v504, %v5164
    %v5180 = vmul.f32 %v505, %v5158
    %v5181 = vmul.f32 %v4772, %v5160
    %v5182 = vmul.f32 %v4773, %v5165
    %v5183 = vmul.f32 %v4774, %v5162
    %v5193 = vrot.slane %v5175, 6
    %v5194 = vrot.slane %v5178, 6
    %v5195 = vsel %vm1385, %v5193, %v5194
    %v5196 = vrot.slane %v5176, 6
    %v5197 = vrot.slane %v5179, 6
    %v5198 = vsel %vm1385, %v5196, %v5197
    %v5199 = vrot.slane %v5177, 6
    %v5200 = vrot.slane %v5180, 6
    %v5201 = vsel %vm1385, %v5199, %v5200
    %v5202 = vrot.slane %v5181, 6
    %v5203 = vsel %vm1385, %v5194, %v5202
    %v5204 = vrot.slane %v5182, 6
    %v5205 = vsel %vm1385, %v5197, %v5204
    %v5206 = vrot.slane %v5183, 6
    %v5207 = vsel %vm1385, %v5200, %v5206
    %5208 = vrot.lane.b32.xlu0 %v5195, 126
    %v5209 = vpop.permute.xlu0 %5208
    %5210 = vrot.lane.b32.xlu0 %v5198, 126
    %v5211 = vpop.permute.xlu0 %5210
    %5212 = vrot.lane.b32.xlu0 %v5201, 126
    %v5213 = vpop.permute.xlu0 %5212
    %5214 = vrot.lane.b32.xlu0 %v5203, 126
    %v5215 = vpop.permute.xlu0 %5214
    %5216 = vrot.lane.b32.xlu0 %v5205, 126
    %v5217 = vpop.permute.xlu0 %5216
    %5218 = vrot.lane.b32.xlu0 %v5207, 126
    %v5219 = vpop.permute.xlu0 %5218
    %v5220 = vsel %vm1627, %v5209, %v5211
    %v5221 = vsel %vm1627, %v5211, %v5213
    %v5222 = vsel %vm1627, %v5215, %v5217
    %v5223 = vsel %vm1627, %v5217, %v5219
    %v5230 = vadd.f32 %v4834, %v5220
    %v5231 = vadd.f32 %v4835, %v5221
    %v5232 = vadd.f32 %v4836, %v5213
    %v5233 = vadd.f32 %v4837, %v5222
    %v5234 = vadd.f32 %v4838, %v5223
    %v5235 = vadd.f32 %v4839, %v5219
    %s5236 = scalar_lea.vmem [#allocation5], 1888
    %v5237 = vld [vmem:[%s5236] sm:$0xff]
    %v5238 = vld [vmem:[%s5236 + $0x8] sm:$0xff]
    %v5239 = vld [vmem:[%s5236 + $0x10] sm:$0xff]
    %v5240 = vld [vmem:[%s5236 + $0x18] sm:$0xff]
    %v5245 = vrot.slane %v5237, 2
    %v5246 = vrot.slane %v5238, 2
    %v5247 = vrot.slane %v5239, 2
    %v5248 = vsel %vm1410, %v5245, %v5247
    %v5249 = vrot.slane %v5240, 2
    %v5250 = vsel %vm1410, %v5246, %v5249
    %5251 = vrot.lane.b32.xlu0 %v5245, 5
    %v5252 = vpop.permute.xlu0 %5251
    %5253 = vrot.lane.b32.xlu0 %v5246, 5
    %v5254 = vpop.permute.xlu0 %5253
    %5255 = vrot.lane.b32.xlu0 %v5248, 5
    %v5256 = vpop.permute.xlu0 %5255
    %5257 = vrot.lane.b32.xlu0 %v5250, 5
    %v5258 = vpop.permute.xlu0 %5257
    %5259 = vrot.lane.b32.xlu0 %v5247, 5
    %v5260 = vpop.permute.xlu0 %5259
    %5261 = vrot.lane.b32.xlu0 %v5249, 5
    %v5262 = vpop.permute.xlu0 %5261
    %v5263 = vsel %vm256, %v5252, %v5254
    %v5264 = vsel %vm256, %v5256, %v5258
    %v5265 = vsel %vm256, %v5260, %v5262
    %v5275 = vmul.f32 %v4769, %v5252
    %v5276 = vmul.f32 %v4770, %v5263
    %v5277 = vmul.f32 %v4771, %v5254
    %v5278 = vmul.f32 %v503, %v5256
    %v5279 = vmul.f32 %v504, %v5264
    %v5280 = vmul.f32 %v505, %v5258
    %v5281 = vmul.f32 %v4772, %v5260
    %v5282 = vmul.f32 %v4773, %v5265
    %v5283 = vmul.f32 %v4774, %v5262
    %v5293 = vrot.slane %v5275, 6
    %v5294 = vrot.slane %v5278, 6
    %v5295 = vsel %vm1385, %v5293, %v5294
    %v5296 = vrot.slane %v5276, 6
    %v5297 = vrot.slane %v5279, 6
    %v5298 = vsel %vm1385, %v5296, %v5297
    %v5299 = vrot.slane %v5277, 6
    %v5300 = vrot.slane %v5280, 6
    %v5301 = vsel %vm1385, %v5299, %v5300
    %v5302 = vrot.slane %v5281, 6
    %v5303 = vsel %vm1385, %v5294, %v5302
    %v5304 = vrot.slane %v5282, 6
    %v5305 = vsel %vm1385, %v5297, %v5304
    %v5306 = vrot.slane %v5283, 6
    %v5307 = vsel %vm1385, %v5300, %v5306
    %5308 = vrot.lane.b32.xlu0 %v5295, 126
    %v5309 = vpop.permute.xlu0 %5308
    %5310 = vrot.lane.b32.xlu0 %v5298, 126
    %v5311 = vpop.permute.xlu0 %5310
    %5312 = vrot.lane.b32.xlu0 %v5301, 126
    %v5313 = vpop.permute.xlu0 %5312
    %5314 = vrot.lane.b32.xlu0 %v5303, 126
    %v5315 = vpop.permute.xlu0 %5314
    %5316 = vrot.lane.b32.xlu0 %v5305, 126
    %v5317 = vpop.permute.xlu0 %5316
    %5318 = vrot.lane.b32.xlu0 %v5307, 126
    %v5319 = vpop.permute.xlu0 %5318
    %v5320 = vsel %vm1627, %v5309, %v5311
    %v5321 = vsel %vm1627, %v5311, %v5313
    %v5322 = vsel %vm1627, %v5315, %v5317
    %v5323 = vsel %vm1627, %v5317, %v5319
    %v5330 = vadd.f32 %v4934, %v5320
    %v5331 = vadd.f32 %v4935, %v5321
    %v5332 = vadd.f32 %v4936, %v5313
    %v5333 = vadd.f32 %v4937, %v5322
    %v5334 = vadd.f32 %v4938, %v5323
    %v5335 = vadd.f32 %v4939, %v5319
    %s5336 = scalar_lea.vmem [#allocation5], 1920
    %v5337 = vld [vmem:[%s5336] sm:$0xff]
    %v5338 = vld [vmem:[%s5336 + $0x8] sm:$0xff]
    %v5339 = vld [vmem:[%s5336 + $0x10] sm:$0xff]
    %v5340 = vld [vmem:[%s5336 + $0x18] sm:$0xff]
    %v5345 = vrot.slane %v5337, 2
    %v5346 = vrot.slane %v5338, 2
    %v5347 = vrot.slane %v5339, 2
    %v5348 = vsel %vm1410, %v5345, %v5347
    %v5349 = vrot.slane %v5340, 2
    %v5350 = vsel %vm1410, %v5346, %v5349
    %5351 = vrot.lane.b32.xlu0 %v5345, 6
    %v5352 = vpop.permute.xlu0 %5351
    %5353 = vrot.lane.b32.xlu0 %v5346, 6
    %v5354 = vpop.permute.xlu0 %5353
    %5355 = vrot.lane.b32.xlu0 %v5348, 6
    %v5356 = vpop.permute.xlu0 %5355
    %5357 = vrot.lane.b32.xlu0 %v5350, 6
    %v5358 = vpop.permute.xlu0 %5357
    %5359 = vrot.lane.b32.xlu0 %v5347, 6
    %v5360 = vpop.permute.xlu0 %5359
    %5361 = vrot.lane.b32.xlu0 %v5349, 6
    %v5362 = vpop.permute.xlu0 %5361
    %v5363 = vsel %vm322, %v5352, %v5354
    %v5364 = vsel %vm322, %v5356, %v5358
    %v5365 = vsel %vm322, %v5360, %v5362
    %v5375 = vmul.f32 %v4769, %v5352
    %v5376 = vmul.f32 %v4770, %v5363
    %v5377 = vmul.f32 %v4771, %v5354
    %v5378 = vmul.f32 %v503, %v5356
    %v5379 = vmul.f32 %v504, %v5364
    %v5380 = vmul.f32 %v505, %v5358
    %v5381 = vmul.f32 %v4772, %v5360
    %v5382 = vmul.f32 %v4773, %v5365
    %v5383 = vmul.f32 %v4774, %v5362
    %v5393 = vrot.slane %v5375, 6
    %v5394 = vrot.slane %v5378, 6
    %v5395 = vsel %vm1385, %v5393, %v5394
    %v5396 = vrot.slane %v5376, 6
    %v5397 = vrot.slane %v5379, 6
    %v5398 = vsel %vm1385, %v5396, %v5397
    %v5399 = vrot.slane %v5377, 6
    %v5400 = vrot.slane %v5380, 6
    %v5401 = vsel %vm1385, %v5399, %v5400
    %v5402 = vrot.slane %v5381, 6
    %v5403 = vsel %vm1385, %v5394, %v5402
    %v5404 = vrot.slane %v5382, 6
    %v5405 = vsel %vm1385, %v5397, %v5404
    %v5406 = vrot.slane %v5383, 6
    %v5407 = vsel %vm1385, %v5400, %v5406
    %5408 = vrot.lane.b32.xlu0 %v5395, 122
    %v5409 = vpop.permute.xlu0 %5408
    %5410 = vrot.lane.b32.xlu0 %v5398, 122
    %v5411 = vpop.permute.xlu0 %5410
    %5412 = vrot.lane.b32.xlu0 %v5401, 122
    %v5413 = vpop.permute.xlu0 %5412
    %5414 = vrot.lane.b32.xlu0 %v5403, 122
    %v5415 = vpop.permute.xlu0 %5414
    %5416 = vrot.lane.b32.xlu0 %v5405, 122
    %v5417 = vpop.permute.xlu0 %5416
    %5418 = vrot.lane.b32.xlu0 %v5407, 122
    %v5419 = vpop.permute.xlu0 %5418
    %v5420 = vsel %vm2024, %v5409, %v5411
    %v5421 = vsel %vm2024, %v5411, %v5413
    %v5422 = vsel %vm2024, %v5415, %v5417
    %v5423 = vsel %vm2024, %v5417, %v5419
    %v5428 = vadd.f32 %v5032, %v5420
    %v5429 = vadd.f32 %v5033, %v5421
    %v5430 = vadd.f32 %v5034, %v5422
    %v5431 = vadd.f32 %v5035, %v5423
    %s5432 = scalar_lea.vmem [#allocation5], 1952
    %v5433 = vld [vmem:[%s5432] sm:$0xff]
    %v5434 = vld [vmem:[%s5432 + $0x8] sm:$0xff]
    %v5435 = vld [vmem:[%s5432 + $0x10] sm:$0xff]
    %v5436 = vld [vmem:[%s5432 + $0x18] sm:$0xff]
    %v5441 = vrot.slane %v5433, 2
    %v5442 = vrot.slane %v5434, 2
    %v5443 = vrot.slane %v5435, 2
    %v5444 = vsel %vm1410, %v5441, %v5443
    %v5445 = vrot.slane %v5436, 2
    %v5446 = vsel %vm1410, %v5442, %v5445
    %5447 = vrot.lane.b32.xlu0 %v5441, 7
    %v5448 = vpop.permute.xlu0 %5447
    %5449 = vrot.lane.b32.xlu0 %v5442, 7
    %v5450 = vpop.permute.xlu0 %5449
    %5451 = vrot.lane.b32.xlu0 %v5444, 7
    %v5452 = vpop.permute.xlu0 %5451
    %5453 = vrot.lane.b32.xlu0 %v5446, 7
    %v5454 = vpop.permute.xlu0 %5453
    %5455 = vrot.lane.b32.xlu0 %v5443, 7
    %v5456 = vpop.permute.xlu0 %5455
    %5457 = vrot.lane.b32.xlu0 %v5445, 7
    %v5458 = vpop.permute.xlu0 %5457
    %v5459 = vsel %vm388, %v5448, %v5450
    %v5460 = vsel %vm388, %v5452, %v5454
    %v5461 = vsel %vm388, %v5456, %v5458
    %v5471 = vmul.f32 %v4769, %v5448
    %v5472 = vmul.f32 %v4770, %v5459
    %v5473 = vmul.f32 %v4771, %v5450
    %v5474 = vmul.f32 %v503, %v5452
    %v5475 = vmul.f32 %v504, %v5460
    %v5476 = vmul.f32 %v505, %v5454
    %v5477 = vmul.f32 %v4772, %v5456
    %v5478 = vmul.f32 %v4773, %v5461
    %v5479 = vmul.f32 %v4774, %v5458
    %v5489 = vrot.slane %v5471, 6
    %v5490 = vrot.slane %v5474, 6
    %v5491 = vsel %vm1385, %v5489, %v5490
    %v5492 = vrot.slane %v5472, 6
    %v5493 = vrot.slane %v5475, 6
    %v5494 = vsel %vm1385, %v5492, %v5493
    %v5495 = vrot.slane %v5473, 6
    %v5496 = vrot.slane %v5476, 6
    %v5497 = vsel %vm1385, %v5495, %v5496
    %v5498 = vrot.slane %v5477, 6
    %v5499 = vsel %vm1385, %v5490, %v5498
    %v5500 = vrot.slane %v5478, 6
    %v5501 = vsel %vm1385, %v5493, %v5500
    %v5502 = vrot.slane %v5479, 6
    %v5503 = vsel %vm1385, %v5496, %v5502
    %5504 = vrot.lane.b32.xlu0 %v5491, 122
    %v5505 = vpop.permute.xlu0 %5504
    %5506 = vrot.lane.b32.xlu0 %v5494, 122
    %v5507 = vpop.permute.xlu0 %5506
    %5508 = vrot.lane.b32.xlu0 %v5497, 122
    %v5509 = vpop.permute.xlu0 %5508
    %5510 = vrot.lane.b32.xlu0 %v5499, 122
    %v5511 = vpop.permute.xlu0 %5510
    %5512 = vrot.lane.b32.xlu0 %v5501, 122
    %v5513 = vpop.permute.xlu0 %5512
    %5514 = vrot.lane.b32.xlu0 %v5503, 122
    %v5515 = vpop.permute.xlu0 %5514
    %v5516 = vsel %vm2024, %v5505, %v5507
    %v5517 = vsel %vm2024, %v5507, %v5509
    %v5518 = vsel %vm2024, %v5511, %v5513
    %v5519 = vsel %vm2024, %v5513, %v5515
    %v5526 = vadd.f32 %v5130, %v5516
    %v5527 = vadd.f32 %v5131, %v5517
    %v5528 = vadd.f32 %v5132, %v5509
    %v5529 = vadd.f32 %v5133, %v5518
    %v5530 = vadd.f32 %v5134, %v5519
    %v5531 = vadd.f32 %v5135, %v5515
    %s5532 = scalar_lea.vmem [#allocation5], 1984
    %v5533 = vld [vmem:[%s5532] sm:$0xff]
    %v5534 = vld [vmem:[%s5532 + $0x8] sm:$0xff]
    %v5535 = vld [vmem:[%s5532 + $0x10] sm:$0xff]
    %v5536 = vld [vmem:[%s5532 + $0x18] sm:$0xff]
    %v5541 = vrot.slane %v5533, 2
    %v5542 = vrot.slane %v5534, 2
    %v5543 = vrot.slane %v5535, 2
    %v5544 = vsel %vm1410, %v5541, %v5543
    %v5545 = vrot.slane %v5536, 2
    %v5546 = vsel %vm1410, %v5542, %v5545
    %5547 = vrot.lane.b32.xlu0 %v5541, 8
    %v5548 = vpop.permute.xlu0 %5547
    %5549 = vrot.lane.b32.xlu0 %v5542, 8
    %v5550 = vpop.permute.xlu0 %5549
    %5551 = vrot.lane.b32.xlu0 %v5544, 8
    %v5552 = vpop.permute.xlu0 %5551
    %5553 = vrot.lane.b32.xlu0 %v5546, 8
    %v5554 = vpop.permute.xlu0 %5553
    %5555 = vrot.lane.b32.xlu0 %v5543, 8
    %v5556 = vpop.permute.xlu0 %5555
    %5557 = vrot.lane.b32.xlu0 %v5545, 8
    %v5558 = vpop.permute.xlu0 %5557
    %v5559 = vsel %vm454, %v5548, %v5550
    %v5560 = vsel %vm454, %v5552, %v5554
    %v5561 = vsel %vm454, %v5556, %v5558
    %v5571 = vmul.f32 %v4769, %v5548
    %v5572 = vmul.f32 %v4770, %v5559
    %v5573 = vmul.f32 %v4771, %v5550
    %v5574 = vmul.f32 %v503, %v5552
    %v5575 = vmul.f32 %v504, %v5560
    %v5576 = vmul.f32 %v505, %v5554
    %v5577 = vmul.f32 %v4772, %v5556
    %v5578 = vmul.f32 %v4773, %v5561
    %v5579 = vmul.f32 %v4774, %v5558
    %v5589 = vrot.slane %v5571, 6
    %v5590 = vrot.slane %v5574, 6
    %v5591 = vsel %vm1385, %v5589, %v5590
    %v5592 = vrot.slane %v5572, 6
    %v5593 = vrot.slane %v5575, 6
    %v5594 = vsel %vm1385, %v5592, %v5593
    %v5595 = vrot.slane %v5573, 6
    %v5596 = vrot.slane %v5576, 6
    %v5597 = vsel %vm1385, %v5595, %v5596
    %v5598 = vrot.slane %v5577, 6
    %v5599 = vsel %vm1385, %v5590, %v5598
    %v5600 = vrot.slane %v5578, 6
    %v5601 = vsel %vm1385, %v5593, %v5600
    %v5602 = vrot.slane %v5579, 6
    %v5603 = vsel %vm1385, %v5596, %v5602
    %5604 = vrot.lane.b32.xlu0 %v5591, 122
    %v5605 = vpop.permute.xlu0 %5604
    %5606 = vrot.lane.b32.xlu0 %v5594, 122
    %v5607 = vpop.permute.xlu0 %5606
    %5608 = vrot.lane.b32.xlu0 %v5597, 122
    %v5609 = vpop.permute.xlu0 %5608
    %5610 = vrot.lane.b32.xlu0 %v5599, 122
    %v5611 = vpop.permute.xlu0 %5610
    %5612 = vrot.lane.b32.xlu0 %v5601, 122
    %v5613 = vpop.permute.xlu0 %5612
    %5614 = vrot.lane.b32.xlu0 %v5603, 122
    %v5615 = vpop.permute.xlu0 %5614
    %v5616 = vsel %vm2024, %v5605, %v5607
    %v5617 = vsel %vm2024, %v5607, %v5609
    %v5618 = vsel %vm2024, %v5611, %v5613
    %v5619 = vsel %vm2024, %v5613, %v5615
    %v5626 = vadd.f32 %v5230, %v5616
    %v5627 = vadd.f32 %v5231, %v5617
    %v5628 = vadd.f32 %v5232, %v5609
    %v5629 = vadd.f32 %v5233, %v5618
    %v5630 = vadd.f32 %v5234, %v5619
    %v5631 = vadd.f32 %v5235, %v5615
    %v5632 = vld [vmem:[#allocation2] sm:$0x80]
    %v5633 = vld [vmem:[#allocation2 + $0x8] sm:$0x80]
    %v5634 = vld [vmem:[#allocation2 + $0x10] sm:$0x80]
    %v5635 = vld [vmem:[#allocation2 + $0x30] sm:$0x7f]
    %v5636 = vld [vmem:[#allocation2 + $0x38] sm:$0x7f]
    %v5637 = vld [vmem:[#allocation2 + $0x40] sm:$0x7f]
    %s5638 = scalar_lea.vmem [#allocation5], 2016
    %v5639 = vld [vmem:[%s5638] sm:$0xff]
    %v5640 = vld [vmem:[%s5638 + $0x8] sm:$0xff]
    %v5641 = vld [vmem:[%s5638 + $0x10] sm:$0xff]
    %v5642 = vld [vmem:[%s5638 + $0x18] sm:$0xff]
    %v5647 = vrot.slane %v5639, 1
    %v5648 = vrot.slane %v5640, 1
    %v5649 = vrot.slane %v5641, 1
    %v5650 = vsel %vm543, %v5647, %v5649
    %v5651 = vrot.slane %v5642, 1
    %v5652 = vsel %vm543, %v5648, %v5651
    %v5659 = vmul.f32 %v5632, %v5647
    %v5660 = vmul.f32 %v5633, %v5648
    %v5661 = vmul.f32 %v503, %v5650
    %v5662 = vmul.f32 %v504, %v5652
    %v5663 = vmul.f32 %v5635, %v5649
    %v5664 = vmul.f32 %v5636, %v5651
    %v5671 = vrot.slane %v5659, 7
    %v5672 = vrot.slane %v5661, 7
    %v5673 = vsel %vm518, %v5671, %v5672
    %v5674 = vrot.slane %v5660, 7
    %v5675 = vrot.slane %v5662, 7
    %v5676 = vsel %vm518, %v5674, %v5675
    %v5677 = vrot.slane %v5663, 7
    %v5678 = vsel %vm518, %v5672, %v5677
    %v5679 = vrot.slane %v5664, 7
    %v5680 = vsel %vm518, %v5675, %v5679
    %5681 = vrot.lane.b32.xlu0 %v5673, 3
    %v5682 = vpop.permute.xlu0 %5681
    %5683 = vrot.lane.b32.xlu0 %v5676, 3
    %v5684 = vpop.permute.xlu0 %5683
    %5685 = vrot.lane.b32.xlu0 %v5678, 3
    %v5686 = vpop.permute.xlu0 %5685
    %5687 = vrot.lane.b32.xlu0 %v5680, 3
    %v5688 = vpop.permute.xlu0 %5687
    %v5689 = vsel %vm155, %v5682, %v5684
    %v5690 = vsel %vm155, %v5686, %v5688
    %v5697 = vadd.f32 %v5330, %v5682
    %v5698 = vadd.f32 %v5331, %v5689
    %v5699 = vadd.f32 %v5332, %v5684
    %v5700 = vadd.f32 %v5333, %v5686
    %v5701 = vadd.f32 %v5334, %v5690
    %v5702 = vadd.f32 %v5335, %v5688
    %s5703 = scalar_lea.vmem [#allocation5], 2048
    %v5704 = vld [vmem:[%s5703] sm:$0xff]
    %v5705 = vld [vmem:[%s5703 + $0x8] sm:$0xff]
    %v5706 = vld [vmem:[%s5703 + $0x10] sm:$0xff]
    %v5707 = vld [vmem:[%s5703 + $0x18] sm:$0xff]
    %v5712 = vrot.slane %v5704, 1
    %v5713 = vrot.slane %v5705, 1
    %v5714 = vrot.slane %v5706, 1
    %v5715 = vsel %vm543, %v5712, %v5714
    %v5716 = vrot.slane %v5707, 1
    %v5717 = vsel %vm543, %v5713, %v5716
    %5718 = vrot.lane.b32.xlu0 %v5712, 1
    %v5719 = vpop.permute.xlu0 %5718
    %5720 = vrot.lane.b32.xlu0 %v5713, 1
    %v5721 = vpop.permute.xlu0 %5720
    %5722 = vrot.lane.b32.xlu0 %v5715, 1
    %v5723 = vpop.permute.xlu0 %5722
    %5724 = vrot.lane.b32.xlu0 %v5717, 1
    %v5725 = vpop.permute.xlu0 %5724
    %5726 = vrot.lane.b32.xlu0 %v5714, 1
    %v5727 = vpop.permute.xlu0 %5726
    %5728 = vrot.lane.b32.xlu0 %v5716, 1
    %v5729 = vpop.permute.xlu0 %5728
    %v5730 = vsel %vm79, %v5719, %v5721
    %v5731 = vsel %vm79, %v5723, %v5725
    %v5732 = vsel %vm79, %v5727, %v5729
    %v5742 = vmul.f32 %v5632, %v5719
    %v5743 = vmul.f32 %v5633, %v5730
    %v5744 = vmul.f32 %v5634, %v5721
    %v5745 = vmul.f32 %v503, %v5723
    %v5746 = vmul.f32 %v504, %v5731
    %v5747 = vmul.f32 %v505, %v5725
    %v5748 = vmul.f32 %v5635, %v5727
    %v5749 = vmul.f32 %v5636, %v5732
    %v5750 = vmul.f32 %v5637, %v5729
    %v5760 = vrot.slane %v5742, 7
    %v5761 = vrot.slane %v5745, 7
    %v5762 = vsel %vm518, %v5760, %v5761
    %v5763 = vrot.slane %v5743, 7
    %v5764 = vrot.slane %v5746, 7
    %v5765 = vsel %vm518, %v5763, %v5764
    %v5766 = vrot.slane %v5744, 7
    %v5767 = vrot.slane %v5747, 7
    %v5768 = vsel %vm518, %v5766, %v5767
    %v5769 = vrot.slane %v5748, 7
    %v5770 = vsel %vm518, %v5761, %v5769
    %v5771 = vrot.slane %v5749, 7
    %v5772 = vsel %vm518, %v5764, %v5771
    %v5773 = vrot.slane %v5750, 7
    %v5774 = vsel %vm518, %v5767, %v5773
    %5775 = vrot.lane.b32.xlu0 %v5762, 127
    %v5776 = vpop.permute.xlu0 %5775
    %5777 = vrot.lane.b32.xlu0 %v5765, 127
    %v5778 = vpop.permute.xlu0 %5777
    %5779 = vrot.lane.b32.xlu0 %v5768, 127
    %v5780 = vpop.permute.xlu0 %5779
    %5781 = vrot.lane.b32.xlu0 %v5770, 127
    %v5782 = vpop.permute.xlu0 %5781
    %5783 = vrot.lane.b32.xlu0 %v5772, 127
    %v5784 = vpop.permute.xlu0 %5783
    %5785 = vrot.lane.b32.xlu0 %v5774, 127
    %v5786 = vpop.permute.xlu0 %5785
    %v5787 = vsel %vm2394, %v5776, %v5778
    %v5788 = vsel %vm2394, %v5778, %v5780
    %v5789 = vsel %vm2394, %v5782, %v5784
    %v5790 = vsel %vm2394, %v5784, %v5786
    %v5795 = vadd.f32 %v5428, %v5787
    %v5796 = vadd.f32 %v5429, %v5788
    %v5797 = vadd.f32 %v5430, %v5789
    %v5798 = vadd.f32 %v5431, %v5790
    %s5799 = scalar_lea.vmem [#allocation5], 2080
    %v5800 = vld [vmem:[%s5799] sm:$0xff]
    %v5801 = vld [vmem:[%s5799 + $0x8] sm:$0xff]
    %v5802 = vld [vmem:[%s5799 + $0x10] sm:$0xff]
    %v5803 = vld [vmem:[%s5799 + $0x18] sm:$0xff]
    %v5808 = vrot.slane %v5800, 1
    %v5809 = vrot.slane %v5801, 1
    %v5810 = vrot.slane %v5802, 1
    %v5811 = vsel %vm543, %v5808, %v5810
    %v5812 = vrot.slane %v5803, 1
    %v5813 = vsel %vm543, %v5809, %v5812
    %5814 = vrot.lane.b32.xlu0 %v5808, 2
    %v5815 = vpop.permute.xlu0 %5814
    %5816 = vrot.lane.b32.xlu0 %v5809, 2
    %v5817 = vpop.permute.xlu0 %5816
    %5818 = vrot.lane.b32.xlu0 %v5811, 2
    %v5819 = vpop.permute.xlu0 %5818
    %5820 = vrot.lane.b32.xlu0 %v5813, 2
    %v5821 = vpop.permute.xlu0 %5820
    %5822 = vrot.lane.b32.xlu0 %v5810, 2
    %v5823 = vpop.permute.xlu0 %5822
    %5824 = vrot.lane.b32.xlu0 %v5812, 2
    %v5825 = vpop.permute.xlu0 %5824
    %v5826 = vsel %vm117, %v5815, %v5817
    %v5827 = vsel %vm117, %v5819, %v5821
    %v5828 = vsel %vm117, %v5823, %v5825
    %v5838 = vmul.f32 %v5632, %v5815
    %v5839 = vmul.f32 %v5633, %v5826
    %v5840 = vmul.f32 %v5634, %v5817
    %v5841 = vmul.f32 %v503, %v5819
    %v5842 = vmul.f32 %v504, %v5827
    %v5843 = vmul.f32 %v505, %v5821
    %v5844 = vmul.f32 %v5635, %v5823
    %v5845 = vmul.f32 %v5636, %v5828
    %v5846 = vmul.f32 %v5637, %v5825
    %v5856 = vrot.slane %v5838, 7
    %v5857 = vrot.slane %v5841, 7
    %v5858 = vsel %vm518, %v5856, %v5857
    %v5859 = vrot.slane %v5839, 7
    %v5860 = vrot.slane %v5842, 7
    %v5861 = vsel %vm518, %v5859, %v5860
    %v5862 = vrot.slane %v5840, 7
    %v5863 = vrot.slane %v5843, 7
    %v5864 = vsel %vm518, %v5862, %v5863
    %v5865 = vrot.slane %v5844, 7
    %v5866 = vsel %vm518, %v5857, %v5865
    %v5867 = vrot.slane %v5845, 7
    %v5868 = vsel %vm518, %v5860, %v5867
    %v5869 = vrot.slane %v5846, 7
    %v5870 = vsel %vm518, %v5863, %v5869
    %5871 = vrot.lane.b32.xlu0 %v5858, 127
    %v5872 = vpop.permute.xlu0 %5871
    %5873 = vrot.lane.b32.xlu0 %v5861, 127
    %v5874 = vpop.permute.xlu0 %5873
    %5875 = vrot.lane.b32.xlu0 %v5864, 127
    %v5876 = vpop.permute.xlu0 %5875
    %5877 = vrot.lane.b32.xlu0 %v5866, 127
    %v5878 = vpop.permute.xlu0 %5877
    %5879 = vrot.lane.b32.xlu0 %v5868, 127
    %v5880 = vpop.permute.xlu0 %5879
    %5881 = vrot.lane.b32.xlu0 %v5870, 127
    %v5882 = vpop.permute.xlu0 %5881
    %v5883 = vsel %vm2394, %v5872, %v5874
    %v5884 = vsel %vm2394, %v5874, %v5876
    %v5885 = vsel %vm2394, %v5878, %v5880
    %v5886 = vsel %vm2394, %v5880, %v5882
    %v5893 = vadd.f32 %v5526, %v5883
    %v5894 = vadd.f32 %v5527, %v5884
    %v5895 = vadd.f32 %v5528, %v5876
    %v5896 = vadd.f32 %v5529, %v5885
    %v5897 = vadd.f32 %v5530, %v5886
    %v5898 = vadd.f32 %v5531, %v5882
    %s5899 = scalar_lea.vmem [#allocation5], 2112
    %v5900 = vld [vmem:[%s5899] sm:$0xff]
    %v5901 = vld [vmem:[%s5899 + $0x8] sm:$0xff]
    %v5902 = vld [vmem:[%s5899 + $0x10] sm:$0xff]
    %v5903 = vld [vmem:[%s5899 + $0x18] sm:$0xff]
    %v5908 = vrot.slane %v5900, 1
    %v5909 = vrot.slane %v5901, 1
    %v5910 = vrot.slane %v5902, 1
    %v5911 = vsel %vm543, %v5908, %v5910
    %v5912 = vrot.slane %v5903, 1
    %v5913 = vsel %vm543, %v5909, %v5912
    %5914 = vrot.lane.b32.xlu0 %v5908, 3
    %v5915 = vpop.permute.xlu0 %5914
    %5916 = vrot.lane.b32.xlu0 %v5909, 3
    %v5917 = vpop.permute.xlu0 %5916
    %5918 = vrot.lane.b32.xlu0 %v5911, 3
    %v5919 = vpop.permute.xlu0 %5918
    %5920 = vrot.lane.b32.xlu0 %v5913, 3
    %v5921 = vpop.permute.xlu0 %5920
    %5922 = vrot.lane.b32.xlu0 %v5910, 3
    %v5923 = vpop.permute.xlu0 %5922
    %5924 = vrot.lane.b32.xlu0 %v5912, 3
    %v5925 = vpop.permute.xlu0 %5924
    %v5926 = vsel %vm155, %v5915, %v5917
    %v5927 = vsel %vm155, %v5919, %v5921
    %v5928 = vsel %vm155, %v5923, %v5925
    %v5938 = vmul.f32 %v5632, %v5915
    %v5939 = vmul.f32 %v5633, %v5926
    %v5940 = vmul.f32 %v5634, %v5917
    %v5941 = vmul.f32 %v503, %v5919
    %v5942 = vmul.f32 %v504, %v5927
    %v5943 = vmul.f32 %v505, %v5921
    %v5944 = vmul.f32 %v5635, %v5923
    %v5945 = vmul.f32 %v5636, %v5928
    %v5946 = vmul.f32 %v5637, %v5925
    %v5956 = vrot.slane %v5938, 7
    %v5957 = vrot.slane %v5941, 7
    %v5958 = vsel %vm518, %v5956, %v5957
    %v5959 = vrot.slane %v5939, 7
    %v5960 = vrot.slane %v5942, 7
    %v5961 = vsel %vm518, %v5959, %v5960
    %v5962 = vrot.slane %v5940, 7
    %v5963 = vrot.slane %v5943, 7
    %v5964 = vsel %vm518, %v5962, %v5963
    %v5965 = vrot.slane %v5944, 7
    %v5966 = vsel %vm518, %v5957, %v5965
    %v5967 = vrot.slane %v5945, 7
    %v5968 = vsel %vm518, %v5960, %v5967
    %v5969 = vrot.slane %v5946, 7
    %v5970 = vsel %vm518, %v5963, %v5969
    %5971 = vrot.lane.b32.xlu0 %v5958, 127
    %v5972 = vpop.permute.xlu0 %5971
    %5973 = vrot.lane.b32.xlu0 %v5961, 127
    %v5974 = vpop.permute.xlu0 %5973
    %5975 = vrot.lane.b32.xlu0 %v5964, 127
    %v5976 = vpop.permute.xlu0 %5975
    %5977 = vrot.lane.b32.xlu0 %v5966, 127
    %v5978 = vpop.permute.xlu0 %5977
    %5979 = vrot.lane.b32.xlu0 %v5968, 127
    %v5980 = vpop.permute.xlu0 %5979
    %5981 = vrot.lane.b32.xlu0 %v5970, 127
    %v5982 = vpop.permute.xlu0 %5981
    %v5983 = vsel %vm2394, %v5972, %v5974
    %v5984 = vsel %vm2394, %v5974, %v5976
    %v5985 = vsel %vm2394, %v5978, %v5980
    %v5986 = vsel %vm2394, %v5980, %v5982
    %v5993 = vadd.f32 %v5626, %v5983
    %v5994 = vadd.f32 %v5627, %v5984
    %v5995 = vadd.f32 %v5628, %v5976
    %v5996 = vadd.f32 %v5629, %v5985
    %v5997 = vadd.f32 %v5630, %v5986
    %v5998 = vadd.f32 %v5631, %v5982
    %s5999 = scalar_lea.vmem [#allocation5], 2144
    %v6000 = vld [vmem:[%s5999] sm:$0xff]
    %v6001 = vld [vmem:[%s5999 + $0x8] sm:$0xff]
    %v6002 = vld [vmem:[%s5999 + $0x10] sm:$0xff]
    %v6003 = vld [vmem:[%s5999 + $0x18] sm:$0xff]
    %v6008 = vrot.slane %v6000, 1
    %v6009 = vrot.slane %v6001, 1
    %v6010 = vrot.slane %v6002, 1
    %v6011 = vsel %vm543, %v6008, %v6010
    %v6012 = vrot.slane %v6003, 1
    %v6013 = vsel %vm543, %v6009, %v6012
    %6014 = vrot.lane.b32.xlu0 %v6008, 4
    %v6015 = vpop.permute.xlu0 %6014
    %6016 = vrot.lane.b32.xlu0 %v6009, 4
    %v6017 = vpop.permute.xlu0 %6016
    %6018 = vrot.lane.b32.xlu0 %v6011, 4
    %v6019 = vpop.permute.xlu0 %6018
    %6020 = vrot.lane.b32.xlu0 %v6013, 4
    %v6021 = vpop.permute.xlu0 %6020
    %6022 = vrot.lane.b32.xlu0 %v6010, 4
    %v6023 = vpop.permute.xlu0 %6022
    %6024 = vrot.lane.b32.xlu0 %v6012, 4
    %v6025 = vpop.permute.xlu0 %6024
    %v6026 = vsel %vm193, %v6015, %v6017
    %v6027 = vsel %vm193, %v6019, %v6021
    %v6028 = vsel %vm193, %v6023, %v6025
    %v6038 = vmul.f32 %v5632, %v6015
    %v6039 = vmul.f32 %v5633, %v6026
    %v6040 = vmul.f32 %v5634, %v6017
    %v6041 = vmul.f32 %v503, %v6019
    %v6042 = vmul.f32 %v504, %v6027
    %v6043 = vmul.f32 %v505, %v6021
    %v6044 = vmul.f32 %v5635, %v6023
    %v6045 = vmul.f32 %v5636, %v6028
    %v6046 = vmul.f32 %v5637, %v6025
    %v6056 = vrot.slane %v6038, 7
    %v6057 = vrot.slane %v6041, 7
    %v6058 = vsel %vm518, %v6056, %v6057
    %v6059 = vrot.slane %v6039, 7
    %v6060 = vrot.slane %v6042, 7
    %v6061 = vsel %vm518, %v6059, %v6060
    %v6062 = vrot.slane %v6040, 7
    %v6063 = vrot.slane %v6043, 7
    %v6064 = vsel %vm518, %v6062, %v6063
    %v6065 = vrot.slane %v6044, 7
    %v6066 = vsel %vm518, %v6057, %v6065
    %v6067 = vrot.slane %v6045, 7
    %v6068 = vsel %vm518, %v6060, %v6067
    %v6069 = vrot.slane %v6046, 7
    %v6070 = vsel %vm518, %v6063, %v6069
    %6071 = vrot.lane.b32.xlu0 %v6058, 127
    %v6072 = vpop.permute.xlu0 %6071
    %6073 = vrot.lane.b32.xlu0 %v6061, 127
    %v6074 = vpop.permute.xlu0 %6073
    %6075 = vrot.lane.b32.xlu0 %v6064, 127
    %v6076 = vpop.permute.xlu0 %6075
    %6077 = vrot.lane.b32.xlu0 %v6066, 127
    %v6078 = vpop.permute.xlu0 %6077
    %6079 = vrot.lane.b32.xlu0 %v6068, 127
    %v6080 = vpop.permute.xlu0 %6079
    %6081 = vrot.lane.b32.xlu0 %v6070, 127
    %v6082 = vpop.permute.xlu0 %6081
    %v6083 = vsel %vm2394, %v6072, %v6074
    %v6084 = vsel %vm2394, %v6074, %v6076
    %v6085 = vsel %vm2394, %v6078, %v6080
    %v6086 = vsel %vm2394, %v6080, %v6082
    %v6093 = vadd.f32 %v5697, %v6083
    %v6094 = vadd.f32 %v5698, %v6084
    %v6095 = vadd.f32 %v5699, %v6076
    %v6096 = vadd.f32 %v5700, %v6085
    %v6097 = vadd.f32 %v5701, %v6086
    %v6098 = vadd.f32 %v5702, %v6082
    %s6099 = scalar_lea.vmem [#allocation5], 2176
    %v6100 = vld [vmem:[%s6099] sm:$0xff]
    %v6101 = vld [vmem:[%s6099 + $0x8] sm:$0xff]
    %v6102 = vld [vmem:[%s6099 + $0x10] sm:$0xff]
    %v6103 = vld [vmem:[%s6099 + $0x18] sm:$0xff]
    %v6108 = vrot.slane %v6100, 1
    %v6109 = vrot.slane %v6101, 1
    %v6110 = vrot.slane %v6102, 1
    %v6111 = vsel %vm543, %v6108, %v6110
    %v6112 = vrot.slane %v6103, 1
    %v6113 = vsel %vm543, %v6109, %v6112
    %6114 = vrot.lane.b32.xlu0 %v6108, 5
    %v6115 = vpop.permute.xlu0 %6114
    %6116 = vrot.lane.b32.xlu0 %v6109, 5
    %v6117 = vpop.permute.xlu0 %6116
    %6118 = vrot.lane.b32.xlu0 %v6111, 5
    %v6119 = vpop.permute.xlu0 %6118
    %6120 = vrot.lane.b32.xlu0 %v6113, 5
    %v6121 = vpop.permute.xlu0 %6120
    %6122 = vrot.lane.b32.xlu0 %v6110, 5
    %v6123 = vpop.permute.xlu0 %6122
    %6124 = vrot.lane.b32.xlu0 %v6112, 5
    %v6125 = vpop.permute.xlu0 %6124
    %v6126 = vsel %vm256, %v6115, %v6117
    %v6127 = vsel %vm256, %v6119, %v6121
    %v6128 = vsel %vm256, %v6123, %v6125
    %v6138 = vmul.f32 %v5632, %v6115
    %v6139 = vmul.f32 %v5633, %v6126
    %v6140 = vmul.f32 %v5634, %v6117
    %v6141 = vmul.f32 %v503, %v6119
    %v6142 = vmul.f32 %v504, %v6127
    %v6143 = vmul.f32 %v505, %v6121
    %v6144 = vmul.f32 %v5635, %v6123
    %v6145 = vmul.f32 %v5636, %v6128
    %v6146 = vmul.f32 %v5637, %v6125
    %v6156 = vrot.slane %v6138, 7
    %v6157 = vrot.slane %v6141, 7
    %v6158 = vsel %vm518, %v6156, %v6157
    %v6159 = vrot.slane %v6139, 7
    %v6160 = vrot.slane %v6142, 7
    %v6161 = vsel %vm518, %v6159, %v6160
    %v6162 = vrot.slane %v6140, 7
    %v6163 = vrot.slane %v6143, 7
    %v6164 = vsel %vm518, %v6162, %v6163
    %v6165 = vrot.slane %v6144, 7
    %v6166 = vsel %vm518, %v6157, %v6165
    %v6167 = vrot.slane %v6145, 7
    %v6168 = vsel %vm518, %v6160, %v6167
    %v6169 = vrot.slane %v6146, 7
    %v6170 = vsel %vm518, %v6163, %v6169
    %6171 = vrot.lane.b32.xlu0 %v6158, 123
    %v6172 = vpop.permute.xlu0 %6171
    %6173 = vrot.lane.b32.xlu0 %v6161, 123
    %v6174 = vpop.permute.xlu0 %6173
    %6175 = vrot.lane.b32.xlu0 %v6164, 123
    %v6176 = vpop.permute.xlu0 %6175
    %6177 = vrot.lane.b32.xlu0 %v6166, 123
    %v6178 = vpop.permute.xlu0 %6177
    %6179 = vrot.lane.b32.xlu0 %v6168, 123
    %v6180 = vpop.permute.xlu0 %6179
    %6181 = vrot.lane.b32.xlu0 %v6170, 123
    %v6182 = vpop.permute.xlu0 %6181
    %v6183 = vsel %vm2791, %v6172, %v6174
    %v6184 = vsel %vm2791, %v6174, %v6176
    %v6185 = vsel %vm2791, %v6178, %v6180
    %v6186 = vsel %vm2791, %v6180, %v6182
    %v6191 = vadd.f32 %v5795, %v6183
    %v6192 = vadd.f32 %v5796, %v6184
    %v6193 = vadd.f32 %v5797, %v6185
    %v6194 = vadd.f32 %v5798, %v6186
    %s6195 = scalar_lea.vmem [#allocation5], 2208
    %v6196 = vld [vmem:[%s6195] sm:$0xff]
    %v6197 = vld [vmem:[%s6195 + $0x8] sm:$0xff]
    %v6198 = vld [vmem:[%s6195 + $0x10] sm:$0xff]
    %v6199 = vld [vmem:[%s6195 + $0x18] sm:$0xff]
    %v6204 = vrot.slane %v6196, 1
    %v6205 = vrot.slane %v6197, 1
    %v6206 = vrot.slane %v6198, 1
    %v6207 = vsel %vm543, %v6204, %v6206
    %v6208 = vrot.slane %v6199, 1
    %v6209 = vsel %vm543, %v6205, %v6208
    %6210 = vrot.lane.b32.xlu0 %v6204, 6
    %v6211 = vpop.permute.xlu0 %6210
    %6212 = vrot.lane.b32.xlu0 %v6205, 6
    %v6213 = vpop.permute.xlu0 %6212
    %6214 = vrot.lane.b32.xlu0 %v6207, 6
    %v6215 = vpop.permute.xlu0 %6214
    %6216 = vrot.lane.b32.xlu0 %v6209, 6
    %v6217 = vpop.permute.xlu0 %6216
    %6218 = vrot.lane.b32.xlu0 %v6206, 6
    %v6219 = vpop.permute.xlu0 %6218
    %6220 = vrot.lane.b32.xlu0 %v6208, 6
    %v6221 = vpop.permute.xlu0 %6220
    %v6222 = vsel %vm322, %v6211, %v6213
    %v6223 = vsel %vm322, %v6215, %v6217
    %v6224 = vsel %vm322, %v6219, %v6221
    %v6234 = vmul.f32 %v5632, %v6211
    %v6235 = vmul.f32 %v5633, %v6222
    %v6236 = vmul.f32 %v5634, %v6213
    %v6237 = vmul.f32 %v503, %v6215
    %v6238 = vmul.f32 %v504, %v6223
    %v6239 = vmul.f32 %v505, %v6217
    %v6240 = vmul.f32 %v5635, %v6219
    %v6241 = vmul.f32 %v5636, %v6224
    %v6242 = vmul.f32 %v5637, %v6221
    %v6252 = vrot.slane %v6234, 7
    %v6253 = vrot.slane %v6237, 7
    %v6254 = vsel %vm518, %v6252, %v6253
    %v6255 = vrot.slane %v6235, 7
    %v6256 = vrot.slane %v6238, 7
    %v6257 = vsel %vm518, %v6255, %v6256
    %v6258 = vrot.slane %v6236, 7
    %v6259 = vrot.slane %v6239, 7
    %v6260 = vsel %vm518, %v6258, %v6259
    %v6261 = vrot.slane %v6240, 7
    %v6262 = vsel %vm518, %v6253, %v6261
    %v6263 = vrot.slane %v6241, 7
    %v6264 = vsel %vm518, %v6256, %v6263
    %v6265 = vrot.slane %v6242, 7
    %v6266 = vsel %vm518, %v6259, %v6265
    %6267 = vrot.lane.b32.xlu0 %v6254, 123
    %v6268 = vpop.permute.xlu0 %6267
    %6269 = vrot.lane.b32.xlu0 %v6257, 123
    %v6270 = vpop.permute.xlu0 %6269
    %6271 = vrot.lane.b32.xlu0 %v6260, 123
    %v6272 = vpop.permute.xlu0 %6271
    %6273 = vrot.lane.b32.xlu0 %v6262, 123
    %v6274 = vpop.permute.xlu0 %6273
    %6275 = vrot.lane.b32.xlu0 %v6264, 123
    %v6276 = vpop.permute.xlu0 %6275
    %6277 = vrot.lane.b32.xlu0 %v6266, 123
    %v6278 = vpop.permute.xlu0 %6277
    %v6279 = vsel %vm2791, %v6268, %v6270
    %v6280 = vsel %vm2791, %v6270, %v6272
    %v6281 = vsel %vm2791, %v6274, %v6276
    %v6282 = vsel %vm2791, %v6276, %v6278
    %v6289 = vadd.f32 %v5893, %v6279
    %v6290 = vadd.f32 %v5894, %v6280
    %v6291 = vadd.f32 %v5895, %v6272
    %v6292 = vadd.f32 %v5896, %v6281
    %v6293 = vadd.f32 %v5897, %v6282
    %v6294 = vadd.f32 %v5898, %v6278
    %s6295 = scalar_lea.vmem [#allocation5], 2240
    %v6296 = vld [vmem:[%s6295] sm:$0xff]
    %v6297 = vld [vmem:[%s6295 + $0x8] sm:$0xff]
    %v6298 = vld [vmem:[%s6295 + $0x10] sm:$0xff]
    %v6299 = vld [vmem:[%s6295 + $0x18] sm:$0xff]
    %v6304 = vrot.slane %v6296, 1
    %v6305 = vrot.slane %v6297, 1
    %v6306 = vrot.slane %v6298, 1
    %v6307 = vsel %vm543, %v6304, %v6306
    %v6308 = vrot.slane %v6299, 1
    %v6309 = vsel %vm543, %v6305, %v6308
    %6310 = vrot.lane.b32.xlu0 %v6304, 7
    %v6311 = vpop.permute.xlu0 %6310
    %6312 = vrot.lane.b32.xlu0 %v6305, 7
    %v6313 = vpop.permute.xlu0 %6312
    %6314 = vrot.lane.b32.xlu0 %v6307, 7
    %v6315 = vpop.permute.xlu0 %6314
    %6316 = vrot.lane.b32.xlu0 %v6309, 7
    %v6317 = vpop.permute.xlu0 %6316
    %6318 = vrot.lane.b32.xlu0 %v6306, 7
    %v6319 = vpop.permute.xlu0 %6318
    %6320 = vrot.lane.b32.xlu0 %v6308, 7
    %v6321 = vpop.permute.xlu0 %6320
    %v6322 = vsel %vm388, %v6311, %v6313
    %v6323 = vsel %vm388, %v6315, %v6317
    %v6324 = vsel %vm388, %v6319, %v6321
    %v6334 = vmul.f32 %v5632, %v6311
    %v6335 = vmul.f32 %v5633, %v6322
    %v6336 = vmul.f32 %v5634, %v6313
    %v6337 = vmul.f32 %v503, %v6315
    %v6338 = vmul.f32 %v504, %v6323
    %v6339 = vmul.f32 %v505, %v6317
    %v6340 = vmul.f32 %v5635, %v6319
    %v6341 = vmul.f32 %v5636, %v6324
    %v6342 = vmul.f32 %v5637, %v6321
    %v6352 = vrot.slane %v6334, 7
    %v6353 = vrot.slane %v6337, 7
    %v6354 = vsel %vm518, %v6352, %v6353
    %v6355 = vrot.slane %v6335, 7
    %v6356 = vrot.slane %v6338, 7
    %v6357 = vsel %vm518, %v6355, %v6356
    %v6358 = vrot.slane %v6336, 7
    %v6359 = vrot.slane %v6339, 7
    %v6360 = vsel %vm518, %v6358, %v6359
    %v6361 = vrot.slane %v6340, 7
    %v6362 = vsel %vm518, %v6353, %v6361
    %v6363 = vrot.slane %v6341, 7
    %v6364 = vsel %vm518, %v6356, %v6363
    %v6365 = vrot.slane %v6342, 7
    %v6366 = vsel %vm518, %v6359, %v6365
    %6367 = vrot.lane.b32.xlu0 %v6354, 123
    %v6368 = vpop.permute.xlu0 %6367
    %6369 = vrot.lane.b32.xlu0 %v6357, 123
    %v6370 = vpop.permute.xlu0 %6369
    %6371 = vrot.lane.b32.xlu0 %v6360, 123
    %v6372 = vpop.permute.xlu0 %6371
    %6373 = vrot.lane.b32.xlu0 %v6362, 123
    %v6374 = vpop.permute.xlu0 %6373
    %6375 = vrot.lane.b32.xlu0 %v6364, 123
    %v6376 = vpop.permute.xlu0 %6375
    %6377 = vrot.lane.b32.xlu0 %v6366, 123
    %v6378 = vpop.permute.xlu0 %6377
    %v6379 = vsel %vm2791, %v6368, %v6370
    %v6380 = vsel %vm2791, %v6370, %v6372
    %v6381 = vsel %vm2791, %v6374, %v6376
    %v6382 = vsel %vm2791, %v6376, %v6378
    %v6389 = vadd.f32 %v5993, %v6379
    %v6390 = vadd.f32 %v5994, %v6380
    %v6391 = vadd.f32 %v5995, %v6372
    %v6392 = vadd.f32 %v5996, %v6381
    %v6393 = vadd.f32 %v5997, %v6382
    %v6394 = vadd.f32 %v5998, %v6378
    %s6395 = scalar_lea.vmem [#allocation5], 2272
    %v6396 = vld [vmem:[%s6395] sm:$0xff]
    %v6397 = vld [vmem:[%s6395 + $0x8] sm:$0xff]
    %v6398 = vld [vmem:[%s6395 + $0x10] sm:$0xff]
    %v6399 = vld [vmem:[%s6395 + $0x18] sm:$0xff]
    %v6404 = vrot.slane %v6396, 1
    %v6405 = vrot.slane %v6397, 1
    %v6406 = vrot.slane %v6398, 1
    %v6407 = vsel %vm543, %v6404, %v6406
    %v6408 = vrot.slane %v6399, 1
    %v6409 = vsel %vm543, %v6405, %v6408
    %6410 = vrot.lane.b32.xlu0 %v6404, 8
    %v6411 = vpop.permute.xlu0 %6410
    %6412 = vrot.lane.b32.xlu0 %v6405, 8
    %v6413 = vpop.permute.xlu0 %6412
    %6414 = vrot.lane.b32.xlu0 %v6407, 8
    %v6415 = vpop.permute.xlu0 %6414
    %6416 = vrot.lane.b32.xlu0 %v6409, 8
    %v6417 = vpop.permute.xlu0 %6416
    %6418 = vrot.lane.b32.xlu0 %v6406, 8
    %v6419 = vpop.permute.xlu0 %6418
    %6420 = vrot.lane.b32.xlu0 %v6408, 8
    %v6421 = vpop.permute.xlu0 %6420
    %v6422 = vsel %vm454, %v6411, %v6413
    %v6423 = vsel %vm454, %v6415, %v6417
    %v6424 = vsel %vm454, %v6419, %v6421
    %v6434 = vmul.f32 %v5632, %v6411
    %v6435 = vmul.f32 %v5633, %v6422
    %v6436 = vmul.f32 %v5634, %v6413
    %v6437 = vmul.f32 %v503, %v6415
    %v6438 = vmul.f32 %v504, %v6423
    %v6439 = vmul.f32 %v505, %v6417
    %v6440 = vmul.f32 %v5635, %v6419
    %v6441 = vmul.f32 %v5636, %v6424
    %v6442 = vmul.f32 %v5637, %v6421
    %v6452 = vrot.slane %v6434, 7
    %v6453 = vrot.slane %v6437, 7
    %v6454 = vsel %vm518, %v6452, %v6453
    %v6455 = vrot.slane %v6435, 7
    %v6456 = vrot.slane %v6438, 7
    %v6457 = vsel %vm518, %v6455, %v6456
    %v6458 = vrot.slane %v6436, 7
    %v6459 = vrot.slane %v6439, 7
    %v6460 = vsel %vm518, %v6458, %v6459
    %v6461 = vrot.slane %v6440, 7
    %v6462 = vsel %vm518, %v6453, %v6461
    %v6463 = vrot.slane %v6441, 7
    %v6464 = vsel %vm518, %v6456, %v6463
    %v6465 = vrot.slane %v6442, 7
    %v6466 = vsel %vm518, %v6459, %v6465
    %6467 = vrot.lane.b32.xlu0 %v6454, 123
    %v6468 = vpop.permute.xlu0 %6467
    %6469 = vrot.lane.b32.xlu0 %v6457, 123
    %v6470 = vpop.permute.xlu0 %6469
    %6471 = vrot.lane.b32.xlu0 %v6460, 123
    %v6472 = vpop.permute.xlu0 %6471
    %6473 = vrot.lane.b32.xlu0 %v6462, 123
    %v6474 = vpop.permute.xlu0 %6473
    %6475 = vrot.lane.b32.xlu0 %v6464, 123
    %v6476 = vpop.permute.xlu0 %6475
    %6477 = vrot.lane.b32.xlu0 %v6466, 123
    %v6478 = vpop.permute.xlu0 %6477
    %v6479 = vsel %vm2791, %v6468, %v6470
    %v6480 = vsel %vm2791, %v6470, %v6472
    %v6481 = vsel %vm2791, %v6474, %v6476
    %v6482 = vsel %vm2791, %v6476, %v6478
    %v6489 = vadd.f32 %v6093, %v6479
    %v6490 = vadd.f32 %v6094, %v6480
    %v6491 = vadd.f32 %v6095, %v6472
    %v6492 = vadd.f32 %v6096, %v6481
    %v6493 = vadd.f32 %v6097, %v6482
    %v6494 = vadd.f32 %v6098, %v6478
    %v6495 = vld [vmem:[#allocation2 + $0x30] sm:$0xff]
    %v6496 = vld [vmem:[#allocation2 + $0x38] sm:$0xff]
    %v6497 = vld [vmem:[#allocation2 + $0x40] sm:$0xff]
    %s6498 = scalar_lea.vmem [#allocation5], 2304
    %v6499 = vld [vmem:[%s6498] sm:$0xff]
    %v6500 = vld [vmem:[%s6498 + $0x8] sm:$0xff]
    %v6501 = vld [vmem:[%s6498 + $0x10] sm:$0xff]
    %v6502 = vld [vmem:[%s6498 + $0x18] sm:$0xff]
    %v6503 = vmul.f32 %v503, %v6499
    %v6504 = vmul.f32 %v504, %v6500
    %v6505 = vmul.f32 %v6495, %v6501
    %v6506 = vmul.f32 %v6496, %v6502
    %v6507 = vadd.f32 %v6191, %v6503
    %v6508 = vadd.f32 %v6192, %v6504
    %v6509 = vadd.f32 %v6193, %v6505
    %v6510 = vadd.f32 %v6194, %v6506
    %s6511 = scalar_lea.vmem [#allocation5], 2336
    %v6512 = vld [vmem:[%s6511] sm:$0xff]
    %v6513 = vld [vmem:[%s6511 + $0x8] sm:$0xff]
    %v6514 = vld [vmem:[%s6511 + $0x10] sm:$0xff]
    %v6515 = vld [vmem:[%s6511 + $0x18] sm:$0xff]
    %6520 = vrot.lane.b32.xlu0 %v6512, 1
    %v6521 = vpop.permute.xlu0 %6520
    %6522 = vrot.lane.b32.xlu0 %v6513, 1
    %v6523 = vpop.permute.xlu0 %6522
    %6524 = vrot.lane.b32.xlu0 %v6514, 1
    %v6525 = vpop.permute.xlu0 %6524
    %6526 = vrot.lane.b32.xlu0 %v6515, 1
    %v6527 = vpop.permute.xlu0 %6526
    %v6528 = vsel %vm79, %v6521, %v6523
    %v6529 = vsel %vm79, %v6525, %v6527
    %v6536 = vmul.f32 %v503, %v6521
    %v6537 = vmul.f32 %v504, %v6528
    %v6538 = vmul.f32 %v505, %v6523
    %v6539 = vmul.f32 %v6495, %v6525
    %v6540 = vmul.f32 %v6496, %v6529
    %v6541 = vmul.f32 %v6497, %v6527
    %v6542 = vadd.f32 %v6289, %v6536
    %v6543 = vadd.f32 %v6290, %v6537
    %v6544 = vadd.f32 %v6291, %v6538
    %v6545 = vadd.f32 %v6292, %v6539
    %v6546 = vadd.f32 %v6293, %v6540
    %v6547 = vadd.f32 %v6294, %v6541
    %s6548 = scalar_lea.vmem [#allocation5], 2368
    %v6549 = vld [vmem:[%s6548] sm:$0xff]
    %v6550 = vld [vmem:[%s6548 + $0x8] sm:$0xff]
    %v6551 = vld [vmem:[%s6548 + $0x10] sm:$0xff]
    %v6552 = vld [vmem:[%s6548 + $0x18] sm:$0xff]
    %6557 = vrot.lane.b32.xlu0 %v6549, 2
    %v6558 = vpop.permute.xlu0 %6557
    %6559 = vrot.lane.b32.xlu0 %v6550, 2
    %v6560 = vpop.permute.xlu0 %6559
    %6561 = vrot.lane.b32.xlu0 %v6551, 2
    %v6562 = vpop.permute.xlu0 %6561
    %6563 = vrot.lane.b32.xlu0 %v6552, 2
    %v6564 = vpop.permute.xlu0 %6563
    %v6565 = vsel %vm117, %v6558, %v6560
    %v6566 = vsel %vm117, %v6562, %v6564
    %v6573 = vmul.f32 %v503, %v6558
    %v6574 = vmul.f32 %v504, %v6565
    %v6575 = vmul.f32 %v505, %v6560
    %v6576 = vmul.f32 %v6495, %v6562
    %v6577 = vmul.f32 %v6496, %v6566
    %v6578 = vmul.f32 %v6497, %v6564
    %v6579 = vadd.f32 %v6389, %v6573
    %v6580 = vadd.f32 %v6390, %v6574
    %v6581 = vadd.f32 %v6391, %v6575
    %v6582 = vadd.f32 %v6392, %v6576
    %v6583 = vadd.f32 %v6393, %v6577
    %v6584 = vadd.f32 %v6394, %v6578
    %s6585 = scalar_lea.vmem [#allocation5], 2400
    %v6586 = vld [vmem:[%s6585] sm:$0xff]
    %v6587 = vld [vmem:[%s6585 + $0x8] sm:$0xff]
    %v6588 = vld [vmem:[%s6585 + $0x10] sm:$0xff]
    %v6589 = vld [vmem:[%s6585 + $0x18] sm:$0xff]
    %6594 = vrot.lane.b32.xlu0 %v6586, 3
    %v6595 = vpop.permute.xlu0 %6594
    %6596 = vrot.lane.b32.xlu0 %v6587, 3
    %v6597 = vpop.permute.xlu0 %6596
    %6598 = vrot.lane.b32.xlu0 %v6588, 3
    %v6599 = vpop.permute.xlu0 %6598
    %6600 = vrot.lane.b32.xlu0 %v6589, 3
    %v6601 = vpop.permute.xlu0 %6600
    %v6602 = vsel %vm155, %v6595, %v6597
    %v6603 = vsel %vm155, %v6599, %v6601
    %v6610 = vmul.f32 %v503, %v6595
    %v6611 = vmul.f32 %v504, %v6602
    %v6612 = vmul.f32 %v505, %v6597
    %v6613 = vmul.f32 %v6495, %v6599
    %v6614 = vmul.f32 %v6496, %v6603
    %v6615 = vmul.f32 %v6497, %v6601
    %v6616 = vadd.f32 %v6489, %v6610
    %v6617 = vadd.f32 %v6490, %v6611
    %v6618 = vadd.f32 %v6491, %v6612
    %v6619 = vadd.f32 %v6492, %v6613
    %v6620 = vadd.f32 %v6493, %v6614
    %v6621 = vadd.f32 %v6494, %v6615
    %s6622 = scalar_lea.vmem [#allocation5], 2432
    %v6623 = vld [vmem:[%s6622] sm:$0xff]
    %v6624 = vld [vmem:[%s6622 + $0x8] sm:$0xff]
    %v6625 = vld [vmem:[%s6622 + $0x10] sm:$0xff]
    %v6626 = vld [vmem:[%s6622 + $0x18] sm:$0xff]
    %6631 = vrot.lane.b32.xlu0 %v6623, 4
    %v6632 = vpop.permute.xlu0 %6631
    %6633 = vrot.lane.b32.xlu0 %v6624, 4
    %v6634 = vpop.permute.xlu0 %6633
    %6635 = vrot.lane.b32.xlu0 %v6625, 4
    %v6636 = vpop.permute.xlu0 %6635
    %6637 = vrot.lane.b32.xlu0 %v6626, 4
    %v6638 = vpop.permute.xlu0 %6637
    %v6639 = vsel %vm193, %v6632, %v6634
    %v6640 = vsel %vm193, %v6636, %v6638
    %v6647 = vmul.f32 %v503, %v6632
    %v6648 = vmul.f32 %v504, %v6639
    %v6649 = vmul.f32 %v505, %v6634
    %v6650 = vmul.f32 %v6495, %v6636
    %v6651 = vmul.f32 %v6496, %v6640
    %v6652 = vmul.f32 %v6497, %v6638
    %6659 = vrot.lane.b32.xlu0 %v6647, 124
    %v6660 = vpop.permute.xlu0 %6659
    %6661 = vrot.lane.b32.xlu0 %v6648, 124
    %v6662 = vpop.permute.xlu0 %6661
    %6663 = vrot.lane.b32.xlu0 %v6649, 124
    %v6664 = vpop.permute.xlu0 %6663
    %6665 = vrot.lane.b32.xlu0 %v6650, 124
    %v6666 = vpop.permute.xlu0 %6665
    %6667 = vrot.lane.b32.xlu0 %v6651, 124
    %v6668 = vpop.permute.xlu0 %6667
    %6669 = vrot.lane.b32.xlu0 %v6652, 124
    %v6670 = vpop.permute.xlu0 %6669
    %v6671 = vsel %vm226, %v6660, %v6662
    %v6672 = vsel %vm226, %v6662, %v6664
    %v6673 = vsel %vm226, %v6666, %v6668
    %v6674 = vsel %vm226, %v6668, %v6670
    %v6679 = vadd.f32 %v6507, %v6671
    %v6680 = vadd.f32 %v6508, %v6672
    %v6681 = vadd.f32 %v6509, %v6673
    %v6682 = vadd.f32 %v6510, %v6674
    %s6683 = scalar_lea.vmem [#allocation5], 2464
    %v6684 = vld [vmem:[%s6683] sm:$0xff]
    %v6685 = vld [vmem:[%s6683 + $0x8] sm:$0xff]
    %v6686 = vld [vmem:[%s6683 + $0x10] sm:$0xff]
    %v6687 = vld [vmem:[%s6683 + $0x18] sm:$0xff]
    %6692 = vrot.lane.b32.xlu0 %v6684, 5
    %v6693 = vpop.permute.xlu0 %6692
    %6694 = vrot.lane.b32.xlu0 %v6685, 5
    %v6695 = vpop.permute.xlu0 %6694
    %6696 = vrot.lane.b32.xlu0 %v6686, 5
    %v6697 = vpop.permute.xlu0 %6696
    %6698 = vrot.lane.b32.xlu0 %v6687, 5
    %v6699 = vpop.permute.xlu0 %6698
    %v6700 = vsel %vm256, %v6693, %v6695
    %v6701 = vsel %vm256, %v6697, %v6699
    %v6708 = vmul.f32 %v503, %v6693
    %v6709 = vmul.f32 %v504, %v6700
    %v6710 = vmul.f32 %v505, %v6695
    %v6711 = vmul.f32 %v6495, %v6697
    %v6712 = vmul.f32 %v6496, %v6701
    %v6713 = vmul.f32 %v6497, %v6699
    %6720 = vrot.lane.b32.xlu0 %v6708, 124
    %v6721 = vpop.permute.xlu0 %6720
    %6722 = vrot.lane.b32.xlu0 %v6709, 124
    %v6723 = vpop.permute.xlu0 %6722
    %6724 = vrot.lane.b32.xlu0 %v6710, 124
    %v6725 = vpop.permute.xlu0 %6724
    %6726 = vrot.lane.b32.xlu0 %v6711, 124
    %v6727 = vpop.permute.xlu0 %6726
    %6728 = vrot.lane.b32.xlu0 %v6712, 124
    %v6729 = vpop.permute.xlu0 %6728
    %6730 = vrot.lane.b32.xlu0 %v6713, 124
    %v6731 = vpop.permute.xlu0 %6730
    %v6732 = vsel %vm226, %v6721, %v6723
    %v6733 = vsel %vm226, %v6723, %v6725
    %v6734 = vsel %vm226, %v6727, %v6729
    %v6735 = vsel %vm226, %v6729, %v6731
    %v6742 = vadd.f32 %v6542, %v6732
    %v6743 = vadd.f32 %v6543, %v6733
    %v6744 = vadd.f32 %v6544, %v6725
    %v6745 = vadd.f32 %v6545, %v6734
    %v6746 = vadd.f32 %v6546, %v6735
    %v6747 = vadd.f32 %v6547, %v6731
    %s6748 = scalar_lea.vmem [#allocation5], 2496
    %v6749 = vld [vmem:[%s6748] sm:$0xff]
    %v6750 = vld [vmem:[%s6748 + $0x8] sm:$0xff]
    %v6751 = vld [vmem:[%s6748 + $0x10] sm:$0xff]
    %v6752 = vld [vmem:[%s6748 + $0x18] sm:$0xff]
    %6757 = vrot.lane.b32.xlu0 %v6749, 6
    %v6758 = vpop.permute.xlu0 %6757
    %6759 = vrot.lane.b32.xlu0 %v6750, 6
    %v6760 = vpop.permute.xlu0 %6759
    %6761 = vrot.lane.b32.xlu0 %v6751, 6
    %v6762 = vpop.permute.xlu0 %6761
    %6763 = vrot.lane.b32.xlu0 %v6752, 6
    %v6764 = vpop.permute.xlu0 %6763
    %v6765 = vsel %vm322, %v6758, %v6760
    %v6766 = vsel %vm322, %v6762, %v6764
    %v6773 = vmul.f32 %v503, %v6758
    %v6774 = vmul.f32 %v504, %v6765
    %v6775 = vmul.f32 %v505, %v6760
    %v6776 = vmul.f32 %v6495, %v6762
    %v6777 = vmul.f32 %v6496, %v6766
    %v6778 = vmul.f32 %v6497, %v6764
    %6785 = vrot.lane.b32.xlu0 %v6773, 124
    %v6786 = vpop.permute.xlu0 %6785
    %6787 = vrot.lane.b32.xlu0 %v6774, 124
    %v6788 = vpop.permute.xlu0 %6787
    %6789 = vrot.lane.b32.xlu0 %v6775, 124
    %v6790 = vpop.permute.xlu0 %6789
    %6791 = vrot.lane.b32.xlu0 %v6776, 124
    %v6792 = vpop.permute.xlu0 %6791
    %6793 = vrot.lane.b32.xlu0 %v6777, 124
    %v6794 = vpop.permute.xlu0 %6793
    %6795 = vrot.lane.b32.xlu0 %v6778, 124
    %v6796 = vpop.permute.xlu0 %6795
    %v6797 = vsel %vm226, %v6786, %v6788
    %v6798 = vsel %vm226, %v6788, %v6790
    %v6799 = vsel %vm226, %v6792, %v6794
    %v6800 = vsel %vm226, %v6794, %v6796
    %v6807 = vadd.f32 %v6579, %v6797
    %v6808 = vadd.f32 %v6580, %v6798
    %v6809 = vadd.f32 %v6581, %v6790
    %v6810 = vadd.f32 %v6582, %v6799
    %v6811 = vadd.f32 %v6583, %v6800
    %v6812 = vadd.f32 %v6584, %v6796
    %s6813 = scalar_lea.vmem [#allocation5], 2528
    %v6814 = vld [vmem:[%s6813] sm:$0xff]
    %v6815 = vld [vmem:[%s6813 + $0x8] sm:$0xff]
    %v6816 = vld [vmem:[%s6813 + $0x10] sm:$0xff]
    %v6817 = vld [vmem:[%s6813 + $0x18] sm:$0xff]
    %6822 = vrot.lane.b32.xlu0 %v6814, 7
    %v6823 = vpop.permute.xlu0 %6822
    %6824 = vrot.lane.b32.xlu0 %v6815, 7
    %v6825 = vpop.permute.xlu0 %6824
    %6826 = vrot.lane.b32.xlu0 %v6816, 7
    %v6827 = vpop.permute.xlu0 %6826
    %6828 = vrot.lane.b32.xlu0 %v6817, 7
    %v6829 = vpop.permute.xlu0 %6828
    %v6830 = vsel %vm388, %v6823, %v6825
    %v6831 = vsel %vm388, %v6827, %v6829
    %v6838 = vmul.f32 %v503, %v6823
    %v6839 = vmul.f32 %v504, %v6830
    %v6840 = vmul.f32 %v505, %v6825
    %v6841 = vmul.f32 %v6495, %v6827
    %v6842 = vmul.f32 %v6496, %v6831
    %v6843 = vmul.f32 %v6497, %v6829
    %6850 = vrot.lane.b32.xlu0 %v6838, 124
    %v6851 = vpop.permute.xlu0 %6850
    %6852 = vrot.lane.b32.xlu0 %v6839, 124
    %v6853 = vpop.permute.xlu0 %6852
    %6854 = vrot.lane.b32.xlu0 %v6840, 124
    %v6855 = vpop.permute.xlu0 %6854
    %6856 = vrot.lane.b32.xlu0 %v6841, 124
    %v6857 = vpop.permute.xlu0 %6856
    %6858 = vrot.lane.b32.xlu0 %v6842, 124
    %v6859 = vpop.permute.xlu0 %6858
    %6860 = vrot.lane.b32.xlu0 %v6843, 124
    %v6861 = vpop.permute.xlu0 %6860
    %v6862 = vsel %vm226, %v6851, %v6853
    %v6863 = vsel %vm226, %v6853, %v6855
    %v6864 = vsel %vm226, %v6857, %v6859
    %v6865 = vsel %vm226, %v6859, %v6861
    %v6872 = vadd.f32 %v6616, %v6862
    %v6873 = vadd.f32 %v6617, %v6863
    %v6874 = vadd.f32 %v6618, %v6855
    %v6875 = vadd.f32 %v6619, %v6864
    %v6876 = vadd.f32 %v6620, %v6865
    %v6877 = vadd.f32 %v6621, %v6861
    %s6878 = scalar_lea.vmem [#allocation5], 2560
    %v6879 = vld [vmem:[%s6878] sm:$0xff]
    %v6880 = vld [vmem:[%s6878 + $0x8] sm:$0xff]
    %v6881 = vld [vmem:[%s6878 + $0x10] sm:$0xff]
    %v6882 = vld [vmem:[%s6878 + $0x18] sm:$0xff]
    %6887 = vrot.lane.b32.xlu0 %v6879, 8
    %v6888 = vpop.permute.xlu0 %6887
    %6889 = vrot.lane.b32.xlu0 %v6880, 8
    %v6890 = vpop.permute.xlu0 %6889
    %6891 = vrot.lane.b32.xlu0 %v6881, 8
    %v6892 = vpop.permute.xlu0 %6891
    %6893 = vrot.lane.b32.xlu0 %v6882, 8
    %v6894 = vpop.permute.xlu0 %6893
    %v6895 = vsel %vm454, %v6888, %v6890
    %v6896 = vsel %vm454, %v6892, %v6894
    %v6903 = vmul.f32 %v503, %v6888
    %v6904 = vmul.f32 %v504, %v6895
    %v6905 = vmul.f32 %v505, %v6890
    %v6906 = vmul.f32 %v6495, %v6892
    %v6907 = vmul.f32 %v6496, %v6896
    %v6908 = vmul.f32 %v6497, %v6894
    %6915 = vrot.lane.b32.xlu0 %v6903, 120
    %v6916 = vpop.permute.xlu0 %6915
    %6917 = vrot.lane.b32.xlu0 %v6904, 120
    %v6918 = vpop.permute.xlu0 %6917
    %6919 = vrot.lane.b32.xlu0 %v6905, 120
    %v6920 = vpop.permute.xlu0 %6919
    %6921 = vrot.lane.b32.xlu0 %v6906, 120
    %v6922 = vpop.permute.xlu0 %6921
    %6923 = vrot.lane.b32.xlu0 %v6907, 120
    %v6924 = vpop.permute.xlu0 %6923
    %6925 = vrot.lane.b32.xlu0 %v6908, 120
    %v6926 = vpop.permute.xlu0 %6925
    %v6927 = vsel %vm487, %v6916, %v6918
    %v6928 = vsel %vm487, %v6918, %v6920
    %v6929 = vsel %vm487, %v6922, %v6924
    %v6930 = vsel %vm487, %v6924, %v6926
    %v6935 = vadd.f32 %v6679, %v6927
    %v6936 = vadd.f32 %v6680, %v6928
    %v6937 = vadd.f32 %v6681, %v6929
    %v6938 = vadd.f32 %v6682, %v6930
    %6945 = vrot.lane.b32.xlu0 %v6742, 127
    %v6946 = vpop.permute.xlu0 %6945
    %6947 = vrot.lane.b32.xlu0 %v6743, 127
    %v6948 = vpop.permute.xlu0 %6947
    %6949 = vrot.lane.b32.xlu0 %v6744, 127
    %v6950 = vpop.permute.xlu0 %6949
    %6951 = vrot.lane.b32.xlu0 %v6745, 127
    %v6952 = vpop.permute.xlu0 %6951
    %6953 = vrot.lane.b32.xlu0 %v6746, 127
    %v6954 = vpop.permute.xlu0 %6953
    %6955 = vrot.lane.b32.xlu0 %v6747, 127
    %v6956 = vpop.permute.xlu0 %6955
    %v6957 = vsel %vm2394, %v6946, %v6948
    %v6958 = vsel %vm2394, %v6948, %v6950
    %v6959 = vsel %vm2394, %v6952, %v6954
    %v6960 = vsel %vm2394, %v6954, %v6956
    %v6965 = vadd.f32 %v6935, %v6957
    %v6966 = vadd.f32 %v6936, %v6958
    %v6967 = vadd.f32 %v6937, %v6959
    %v6968 = vadd.f32 %v6938, %v6960
    %6975 = vrot.lane.b32.xlu0 %v6872, 127
    %v6976 = vpop.permute.xlu0 %6975
    %6977 = vrot.lane.b32.xlu0 %v6873, 127
    %v6978 = vpop.permute.xlu0 %6977
    %6979 = vrot.lane.b32.xlu0 %v6874, 127
    %v6980 = vpop.permute.xlu0 %6979
    %6981 = vrot.lane.b32.xlu0 %v6875, 127
    %v6982 = vpop.permute.xlu0 %6981
    %6983 = vrot.lane.b32.xlu0 %v6876, 127
    %v6984 = vpop.permute.xlu0 %6983
    %6985 = vrot.lane.b32.xlu0 %v6877, 127
    %v6986 = vpop.permute.xlu0 %6985
    %v6987 = vsel %vm2394, %v6976, %v6978
    %v6988 = vsel %vm2394, %v6978, %v6980
    %v6989 = vsel %vm2394, %v6982, %v6984
    %v6990 = vsel %vm2394, %v6984, %v6986
    %v6997 = vadd.f32 %v6807, %v6987
    %v6998 = vadd.f32 %v6808, %v6988
    %v6999 = vadd.f32 %v6809, %v6980
    %v7000 = vadd.f32 %v6810, %v6989
    %v7001 = vadd.f32 %v6811, %v6990
    %v7002 = vadd.f32 %v6812, %v6986
    %7009 = vrot.lane.b32.xlu0 %v6997, 126
    %v7010 = vpop.permute.xlu0 %7009
    %7011 = vrot.lane.b32.xlu0 %v6998, 126
    %v7012 = vpop.permute.xlu0 %7011
    %7013 = vrot.lane.b32.xlu0 %v6999, 126
    %v7014 = vpop.permute.xlu0 %7013
    %7015 = vrot.lane.b32.xlu0 %v7000, 126
    %v7016 = vpop.permute.xlu0 %7015
    %7017 = vrot.lane.b32.xlu0 %v7001, 126
    %v7018 = vpop.permute.xlu0 %7017
    %7019 = vrot.lane.b32.xlu0 %v7002, 126
    %v7020 = vpop.permute.xlu0 %7019
    %v7021 = vsel %vm1627, %v7010, %v7012
    %v7022 = vsel %vm1627, %v7012, %v7014
    %v7023 = vsel %vm1627, %v7016, %v7018
    %v7024 = vsel %vm1627, %v7018, %v7020
    %v7029 = vadd.f32 %v6965, %v7021
    %v7030 = vadd.f32 %v6966, %v7022
    %v7031 = vadd.f32 %v6967, %v7023
    %v7032 = vadd.f32 %v6968, %v7024
    %7033 = vst [vmem:[#allocation7] sm:$0xff] %v7029
    %7034 = vst [vmem:[#allocation7 + $0x8] sm:$0xff] %v7030
    %7035 = vst [vmem:[#allocation7 + $0x10] sm:$0xff] %v7031
    %7036 = vst [vmem:[#allocation7 + $0x18] sm:$0xff] %v7032
    // Predicated region
    $region18: #{tpu_custom_call.1} parent=1 // pred_check
      _
    $region19: #{tpu_custom_call.1} parent=1 // pred_check_branch
      %7038 = sbr.rel (0) target = $region21
    $region20: #{tpu_custom_call.1} parent=1 // pred_region
      %7040 = vsyncadd [#allocation4], 0
      %s7041 = sshll.u32 [#allocation7], 4
      %s7042 = int_to_ptr.vmem [resolvable:$true] %s7041
      %s7043 = sshll.u32 %s2, 4
      %s7044 = int_to_ptr.hbm [resolvable:$true] %s7043
      %7049 = dma.vmem_to_hbm [thread:$0]  %s7042, 512, %s7044, [#allocation4], 256, 256, 16
    $region21: #{tpu_custom_call.1} parent=1 // pred_fallthru
      _
    // Predicated region
    $region22: #{tpu_custom_call.1} parent=1 // pred_check
      _
    $region23: #{tpu_custom_call.1} parent=1 // pred_check_branch
      %7051 = sbr.rel (0) target = $region25
    $region24: #{tpu_custom_call.1} parent=1 // pred_region
      %7053 = dma.done [#allocation4], 512
    $region25: #{tpu_custom_call.1} parent=1 // pred_fallthru
      _
    %7054 = vsyncpa [#allocation3], 1
    %7055 = vsyncpa [#allocation6], 1
    %7056 = vsyncpa [#allocation4], 1

</llo_original>
